<compile_context>
chip_gen: v5e
topology: v5e:2x2
jax: 0.10.0
libtpu: 0.0.40
codegen_flags: <defaults>
</compile_context>

<pallas_src>
import jax
import jax.numpy as jnp
from jax import lax
from jax.experimental import pallas as pl
from jax.experimental.pallas import tpu as pltpu

NEG_SLOPE = 0.01  # nn.LeakyReLU default


def _leaky(y):
    return jnp.where(y >= 0, y, NEG_SLOPE * y)


def _row_tile(n):
    # Full block for small/medium N (single grid step, no pipeline overhead),
    # 512-row tiles otherwise (per-step overhead amortized, still <1 MiB/tile).
    if n <= 1024:
        return n
    return 512


try:
    _DEVICE_KIND = jax.devices()[0].device_kind.lower()
except Exception:  # pragma: no cover - CPU/interpret fallback
    _DEVICE_KIND = ""
# bf16 MACs pack 2x on the v6e/v7x VPU; v5 has no bf16 VALU, so keep f32 there.
_DW_MAC_DTYPE = jnp.float32 if "v5" in _DEVICE_KIND else jnp.bfloat16


# ---------------------------------------------------------------------------
# Kernel 1: fused CNN_denoise (BN folded):  leaky(leaky(x @ W1' + b1') @ W2' + b2')
# bf16 MXU operands, f32 accumulation.
# ---------------------------------------------------------------------------
def denoise_kernel(x_ref, w1_ref, b1_ref, w2_ref, b2_ref, o_ref):
    h = jnp.dot(x_ref[...].astype(jnp.bfloat16), w1_ref[...],
                preferred_element_type=jnp.float32) + b1_ref[...]
    h = _leaky(h)
    y = jnp.dot(h.astype(jnp.bfloat16), w2_ref[...],
                preferred_element_type=jnp.float32) + b2_ref[...]
    o_ref[...] = _leaky(y)


def denoise(x, w1, b1, w2, b2):
    n, cin = x.shape
    hid = w1.shape[1]
    cout = w2.shape[1]
    tm = _row_tile(n)
    return pl.pallas_call(
        denoise_kernel,
        out_shape=jax.ShapeDtypeStruct((n, cout), jnp.float32),
        grid=(pl.cdiv(n, tm),),
        in_specs=[
            pl.BlockSpec((tm, cin), lambda i: (i, 0)),
            pl.BlockSpec((cin, hid), lambda i: (0, 0)),
            pl.BlockSpec((1, hid), lambda i: (0, 0)),
            pl.BlockSpec((hid, cout), lambda i: (0, 0)),
            pl.BlockSpec((1, cout), lambda i: (0, 0)),
        ],
        out_specs=pl.BlockSpec((tm, cout), lambda i: (i, 0)),
        compiler_params=pltpu.CompilerParams(dimension_semantics=("parallel",)),
    )(x, w1.astype(jnp.bfloat16), b1.reshape(1, -1),
      w2.astype(jnp.bfloat16), b2.reshape(1, -1))


# ---------------------------------------------------------------------------
# Kernel 2: fused CNN branch (CNNCONV(128, 64, k=5)):
#   pw  = leaky( (BN(x) folded) @ W_pw )            (point conv, bias=False, bf16 MXU)
#   out = leaky( depthwise5x5(pw) + b_dw )          (padding in a VMEM scratch,
#                                                    halo-only zeroing, per-dy partials)
# ---------------------------------------------------------------------------
def cnn_branch_kernel(x_ref, wpw_ref, bpw_ref, wdw_ref, bdw_ref, o_ref, xp_ref):
    H, W, Cout = o_ref.shape
    Cin = x_ref.shape[-1]
    mac_dt = xp_ref.dtype

    # point conv (BN folded into wpw/bpw), on pixel-major rows, bf16 MXU / f32 acc
    x = x_ref[...].reshape(H * W, Cin)
    pw = jnp.dot(x.astype(jnp.bfloat16), wpw_ref[...],
                 preferred_element_type=jnp.float32) + bpw_ref[...]
    pw = _leaky(pw).reshape(H, W, Cout)

    # zero only the 2-wide halo strips (4 thin writes), then store the interior.
    zrow = jnp.zeros((2, W + 4, Cout), mac_dt)
    zcol = jnp.zeros((H, 2, Cout), mac_dt)
    xp_ref[pl.ds(0, 2), :, :] = zrow
    xp_ref[pl.ds(H + 2, 2), :, :] = zrow
    xp_ref[pl.ds(2, H), pl.ds(0, 2), :] = zcol
    xp_ref[pl.ds(2, H), pl.ds(W + 2, 2), :] = zcol
    xp_ref[pl.ds(2, H), pl.ds(2, W), :] = pw.astype(mac_dt)

    wk = wdw_ref[...]  # (5, 5, Cout) in mac_dt
    acc = jnp.zeros((H, W, Cout), jnp.float32)
    # Per-dy partials; each tap is re-read from VMEM so live ranges stay bounded
    # (no 5 resident shifted slabs).  Partial accumulates in mac_dt, folded into
    # the f32 accumulator once per dy.
    for dy in range(5):
        part = jnp.zeros((H, W, Cout), mac_dt)
        for dx in range(5):
            part = part + xp_ref[pl.ds(dy, H), pl.ds(dx, W), :] * wk[dy, dx, :]
        acc = acc + part.astype(jnp.float32)
    # TODO(synk): pack two W-columns per vreg (C=64 -> 128 lanes, odd dx via
    # pltpu.roll by 64 lanes) for lane-dense VPU MACs on all generations.
    o_ref[...] = _leaky(acc + bdw_ref[...]).astype(o_ref.dtype)


def cnn_branch(x_hwc, wpw, bpw, wdw, bdw):
    H, W, Cin = x_hwc.shape
    Cout = wpw.shape[1]
    # TODO(synk): for large scenes, tile rows with a 2-row halo (grid=(H/TH,),
    # dimension_semantics=("parallel",)) instead of grid=(1,), to cap VMEM and
    # use both v7x TensorCores.  At demo scale everything fits in one block.
    return pl.pallas_call(
        cnn_branch_kernel,
        out_shape=jax.ShapeDtypeStruct((H, W, Cout), jnp.bfloat16),
        grid=(1,),
        in_specs=[
            pl.BlockSpec((H, W, Cin), lambda i: (0, 0, 0)),
            pl.BlockSpec((Cin, Cout), lambda i: (0, 0)),
            pl.BlockSpec((1, Cout), lambda i: (0, 0)),
            pl.BlockSpec((5, 5, Cout), lambda i: (0, 0, 0)),
            pl.BlockSpec((1, 1, Cout), lambda i: (0, 0, 0)),
        ],
        out_specs=pl.BlockSpec((H, W, Cout), lambda i: (0, 0, 0)),
        scratch_shapes=[pltpu.VMEM((H + 4, W + 4, Cout), _DW_MAC_DTYPE)],
    )(x_hwc, wpw.astype(jnp.bfloat16), bpw.reshape(1, -1),
      wdw.astype(_DW_MAC_DTYPE), bdw.reshape(1, 1, -1))


# ---------------------------------------------------------------------------
# Kernel 3: fused GCN branch (3 GNN layers, eval mode, res=False) + classifier:
#   per layer: x <- L2-row-normalize(x) (rsqrt); h = x @ W' + b_in  (BN1d folded)
#              y = leaky( A_hat @ h + b_out )       (A_hat bf16 resident once, f32 acc)
#   tail:  softmax( concat([gcn, cnn], -1) @ Wcls + b )
#        = softmax( gcn @ Wg + cnn @ Wc + b )       (split-weight matmul, no HBM concat)
# ---------------------------------------------------------------------------
def gcn_classify_kernel(x_ref, a_ref, c_ref,
                        w1_ref, bi1_ref, bo1_ref,
                        w2_ref, bi2_ref, bo2_ref,
                        w3_ref, bi3_ref, bo3_ref,
                        wg_ref, wc_ref, b_ref, o_ref):
    a = a_ref[...]  # bf16 (N, N), resident once for the 3 layers

    def layer(x, w_ref, bi_ref, bo_ref):
        # F.normalize default: p=2, dim=1, eps=1e-12 (rsqrt on the EUP slot)
        sumsq = jnp.sum(x * x, axis=1, keepdims=True)
        xn = x * lax.rsqrt(jnp.maximum(sumsq, 1e-24))
        # BatchNorm1d (eval) folded: (xn*scale + shift) @ W == xn @ W' + b_in.
        # b_in is added BEFORE propagation so it flows through A_hat (matches
        # BN -> GCNConv composition); the GCN bias b_out is added after.
        h = jnp.dot(xn.astype(jnp.bfloat16), w_ref[...],
                    preferred_element_type=jnp.float32) + bi_ref[...]
        y = jnp.dot(a, h.astype(jnp.bfloat16),
                    preferred_element_type=jnp.float32) + bo_ref[...]
        return _leaky(y)
        # F.dropout(p=0.2) skipped — inference (training=False) makes it a no-op.

    g = layer(x_ref[...], w1_ref, bi1_ref, bo1_ref)
    g = layer(g, w2_ref, bi2_ref, bo2_ref)
    g = layer(g, w3_ref, bi3_ref, bo3_ref)

    y = (jnp.dot(g.astype(jnp.bfloat16), wg_ref[...], preferred_element_type=jnp.float32)
         + jnp.dot(c_ref[...], wc_ref[...], preferred_element_type=jnp.float32)
         + b_ref[...])
    m = jnp.max(y, axis=-1, keepdims=True)
    e = jnp.exp(y - m)
    o_ref[...] = e / jnp.sum(e, axis=-1, keepdims=True)
    # NOTE: class_count(=6) output lanes are not lane-dense; acceptable since the
    # classifier is fused and negligible relative to the rest of the forward.


def gcn_classify(x, a_bf16, layers, cnn_bf16, wg, wc, b):
    n, c0 = x.shape
    (w1, bi1, bo1), (w2, bi2, bo2), (w3, bi3, bo3) = layers
    c1, c2, c3 = w1.shape[1], w2.shape[1], w3.shape[1]
    cc = cnn_bf16.shape[1]
    co = wg.shape[1]

    def full(shape):
        return pl.BlockSpec(shape, lambda *_: (0,) * len(shape))

    # Fully-resident A_hat path.  Footprint estimate: double-buffered inputs/outputs
    # plus live f32 activations.  TODO(synk): for N beyond ~4k on v7x (64 MiB VMEM)
    # switch to a tiled propagation (rows "parallel", k "arbitrary", f32 acc scratch
    # with pl.when init/finalize), optionally block-sparse A_hat via
    # PrefetchScalarGridSpec to skip all-zero column blocks.
    need = (2 * 2 * n * n                                   # A_hat bf16 (x2 buffers)
            + 2 * 4 * n * c0                                # x f32
            + 2 * 2 * n * cc                                # cnn bf16
            + 2 * 4 * n * co                                # output f32
            + 4 * 4 * n * max(c1, c2, c3)                   # live activations
            + 2 * 2 * (c0 * c1 + c1 * c2 + c2 * c3 + (c3 + cc) * co))  # bf16 weights
    vmem_limit = int(min(48 * 1024 * 1024, max(32 * 1024 * 1024, 2 * need)))

    bf = jnp.bfloat16
    return pl.pallas_call(
        gcn_classify_kernel,
        out_shape=jax.ShapeDtypeStruct((n, co), jnp.float32),
        grid=(1,),
        in_specs=[
            full((n, c0)), full((n, n)), full((n, cc)),
            full((c0, c1)), full((1, c1)), full((1, c1)),
            full((c1, c2)), full((1, c2)), full((1, c2)),
            full((c2, c3)), full((1, c3)), full((1, c3)),
            full((c3, co)), full((cc, co)), full((1, co)),
        ],
        out_specs=full((n, co)),
        compiler_params=pltpu.CompilerParams(vmem_limit_bytes=vmem_limit),
    )(x, a_bf16, cnn_bf16,
      w1.astype(bf), bi1.reshape(1, -1), bo1.reshape(1, -1),
      w2.astype(bf), bi2.reshape(1, -1), bo2.reshape(1, -1),
      w3.astype(bf), bi3.reshape(1, -1), bo3.reshape(1, -1),
      wg.astype(bf), wc.astype(bf), b.reshape(1, -1))


# ---------------------------------------------------------------------------
# Parameter construction (deterministic; eval-mode BN folded into the weights)
# ---------------------------------------------------------------------------
def bn_fold(gamma, beta, mean, var, eps=1e-5):
    scale = gamma / jnp.sqrt(var + eps)
    shift = beta - mean * scale
    return scale, shift


def make_bn_params(key, c):
    k1, k2, k3, k4 = jax.random.split(key, 4)
    gamma = 1.0 + 0.1 * jax.random.normal(k1, (c,), jnp.float32)
    beta = 0.1 * jax.random.normal(k2, (c,), jnp.float32)
    mean = 0.1 * jax.random.normal(k3, (c,), jnp.float32)
    var = 1.0 + 0.1 * jnp.abs(jax.random.normal(k4, (c,), jnp.float32))
    return bn_fold(gamma, beta, mean, var)


def make_linear(key, cin, cout, bias=True):
    kw, kb = jax.random.split(key)
    w = 0.1 * jax.random.normal(kw, (cin, cout), jnp.float32)
    b = (0.1 * jax.random.normal(kb, (cout,), jnp.float32)) if bias else jnp.zeros((cout,), jnp.float32)
    return w, b


def init_params(key, channel, hide, class_count):
    keys = jax.random.split(key, 16)
    p = {}
    # CNN_denoise: BN2d + 1x1 conv (+leaky), twice; BN folded into the conv weights.
    s1, t1 = make_bn_params(keys[0], channel)
    w1, b1 = make_linear(keys[1], channel, hide)
    p["dn_w1"], p["dn_b1"] = s1[:, None] * w1, t1 @ w1 + b1
    s2, t2 = make_bn_params(keys[2], hide)
    w2, b2 = make_linear(keys[3], hide, hide)
    p["dn_w2"], p["dn_b2"] = s2[:, None] * w2, t2 @ w2 + b2
    # CNN_Branch: CNNCONV(128, 64, k=5): BN2d(128) folded into point_conv (bias=False).
    sc, tc = make_bn_params(keys[4], 128)
    wpw, _ = make_linear(keys[5], 128, 64, bias=False)
    p["cnn_pw_w"], p["cnn_pw_b"] = sc[:, None] * wpw, tc @ wpw
    p["cnn_dww"] = 0.1 * jax.random.normal(keys[6], (5, 5, 64), jnp.float32)   # depthwise 5x5
    p["cnn_dwb"] = 0.1 * jax.random.normal(keys[7], (64,), jnp.float32)
    # GCN_Branch: 3 layers (128->128, 128->128, 128->64); BN1d folded into the GCN weight.
    gcn = []
    dims = [(hide, 128), (128, 128), (128, 64)]
    for li, (ci, co) in enumerate(dims):
        kbn, kw = jax.random.split(keys[8 + li])
        scale, shift = make_bn_params(kbn, ci)
        w, b = make_linear(kw, ci, co)
        gcn.append((scale[:, None] * w, shift @ w, b))   # (W', b_in, b_out)
    p["gcn"] = tuple(gcn)
    # Softmax_linear (128 -> class_count); torch.cat([GCN, CNN]) order means the
    # first 64 input rows of the weight act on the GCN half, the last 64 on CNN.
    wcls, bcls = make_linear(keys[12], 128, class_count)
    p["cls_wg"], p["cls_wc"], p["cls_b"] = wcls[:64], wcls[64:], bcls
    return p


def normalize_adjacency(a):
    n = a.shape[0]
    a = a + jnp.eye(n, dtype=a.dtype)
    deg = jnp.sum(a, axis=1)
    d_inv_sqrt = 1.0 / jnp.sqrt(jnp.maximum(deg, 1e-12))
    return a * d_inv_sqrt[:, None] * d_inv_sqrt[None, :]


# ---------------------------------------------------------------------------
# MPNNCNN forward (FLAG=100 path)
# ---------------------------------------------------------------------------
@jax.jit
def mpnncnn_forward(x_hwc, a_hat, p):
    h, w, c = x_hwc.shape
    n = h * w
    x_flat = x_hwc.reshape(n, c)

    # CNN_denoise (both layers fused, BN folded, bf16 MXU)
    clean = denoise(x_flat, p["dn_w1"], p["dn_b1"], p["dn_w2"], p["dn_b2"])          # (N, 128) f32

    # CNN_Branch (pointconv + pad + depthwise 5x5 fused, bf16 output)
    cnn_result = cnn_branch(clean.reshape(h, w, -1), p["cnn_pw_w"], p["cnn_pw_b"],
                            p["cnn_dww"], p["cnn_dwb"]).reshape(n, -1)               # (N, 64) bf16

    # GCN_Branch (3 layers) + concat + classifier + softmax, all fused;
    # A_hat resident once in bf16, split-weight classifier (no HBM concat).
    return gcn_classify(clean, a_hat.astype(jnp.bfloat16), p["gcn"], cnn_result,
                        p["cls_wg"], p["cls_wc"], p["cls_b"])                        # (N, class_count)


if __name__ == "__main__":
    H, W, C = 8, 8, 16        # small hyperspectral cube
    HIDE = 128
    CLASS_COUNT = 6
    N = H * W

    key = jax.random.PRNGKey(0)
    k_x, k_a, k_p = jax.random.split(key, 3)

    x = jax.random.normal(k_x, (H, W, C), jnp.float32)

    # random symmetric binary adjacency over the N pixels/superpixels
    a_raw = (jax.random.uniform(k_a, (N, N)) < 0.1).astype(jnp.float32)
    a_sym = jnp.maximum(a_raw, a_raw.T) * (1.0 - jnp.eye(N))
    a_hat = normalize_adjacency(a_sym)

    params = init_params(k_p, C, HIDE, CLASS_COUNT)

    out = mpnncnn_forward(x, a_hat, params)
    out = jax.block_until_ready(out)

    assert out.shape == (N, CLASS_COUNT), out.shape
    # softmax rows must sum to 1
    assert bool(jnp.allclose(jnp.sum(out, axis=-1), 1.0, atol=1e-4))
    print("KERNEL_OK")
</pallas_src>

<mosaic_0001>
module attributes {stable_mosaic.version = 11 : i64} {
  func.func @gcn_classify_kernel(%arg0: i32, %arg1: memref<64x128xf32, #tpu.memory_space<vmem>>, %arg2: memref<64x64xbf16, #tpu.memory_space<vmem>>, %arg3: memref<64x64xbf16, #tpu.memory_space<vmem>>, %arg4: memref<128x128xbf16, #tpu.memory_space<vmem>>, %arg5: memref<1x128xf32, #tpu.memory_space<vmem>>, %arg6: memref<1x128xf32, #tpu.memory_space<vmem>>, %arg7: memref<128x128xbf16, #tpu.memory_space<vmem>>, %arg8: memref<1x128xf32, #tpu.memory_space<vmem>>, %arg9: memref<1x128xf32, #tpu.memory_space<vmem>>, %arg10: memref<128x64xbf16, #tpu.memory_space<vmem>>, %arg11: memref<1x64xf32, #tpu.memory_space<vmem>>, %arg12: memref<1x64xf32, #tpu.memory_space<vmem>>, %arg13: memref<64x6xbf16, #tpu.memory_space<vmem>>, %arg14: memref<64x6xbf16, #tpu.memory_space<vmem>>, %arg15: memref<1x6xf32, #tpu.memory_space<vmem>>, %arg16: memref<64x6xf32, #tpu.memory_space<vmem>>) attributes {dimension_semantics = [#tpu.dimension_semantics<arbitrary>], iteration_bounds = array<i64: 1>, scalar_prefetch = 0 : i64, scratch_operands = 0 : i64, tpu.core_type = #tpu.core_type<tc>, window_params = [{pipeline_mode = #tpu.pipeline_mode<synchronous>, transform_indices = @transform_0, window_bounds = array<i64: 64, 128>}, {pipeline_mode = #tpu.pipeline_mode<synchronous>, transform_indices = @transform_1, window_bounds = array<i64: 64, 64>}, {pipeline_mode = #tpu.pipeline_mode<synchronous>, transform_indices = @transform_2, window_bounds = array<i64: 64, 64>}, {pipeline_mode = #tpu.pipeline_mode<synchronous>, transform_indices = @transform_3, window_bounds = array<i64: 128, 128>}, {pipeline_mode = #tpu.pipeline_mode<synchronous>, transform_indices = @transform_4, window_bounds = array<i64: 1, 128>}, {pipeline_mode = #tpu.pipeline_mode<synchronous>, transform_indices = @transform_5, window_bounds = array<i64: 1, 128>}, {pipeline_mode = #tpu.pipeline_mode<synchronous>, transform_indices = @transform_6, window_bounds = array<i64: 128, 128>}, {pipeline_mode = #tpu.pipeline_mode<synchronous>, transform_indices = @transform_7, window_bounds = array<i64: 1, 128>}, {pipeline_mode = #tpu.pipeline_mode<synchronous>, transform_indices = @transform_8, window_bounds = array<i64: 1, 128>}, {pipeline_mode = #tpu.pipeline_mode<synchronous>, transform_indices = @transform_9, window_bounds = array<i64: 128, 64>}, {pipeline_mode = #tpu.pipeline_mode<synchronous>, transform_indices = @transform_10, window_bounds = array<i64: 1, 64>}, {pipeline_mode = #tpu.pipeline_mode<synchronous>, transform_indices = @transform_11, window_bounds = array<i64: 1, 64>}, {pipeline_mode = #tpu.pipeline_mode<synchronous>, transform_indices = @transform_12, window_bounds = array<i64: 64, 6>}, {pipeline_mode = #tpu.pipeline_mode<synchronous>, transform_indices = @transform_13, window_bounds = array<i64: 64, 6>}, {pipeline_mode = #tpu.pipeline_mode<synchronous>, transform_indices = @transform_14, window_bounds = array<i64: 1, 6>}, {pipeline_mode = #tpu.pipeline_mode<synchronous>, transform_indices = @transform_15, window_bounds = array<i64: 64, 6>}]} {
    %c0 = arith.constant 0 : index
    %c0_0 = arith.constant 0 : index
    %0 = vector.load %arg2[%c0, %c0_0] : memref<64x64xbf16, #tpu.memory_space<vmem>>, vector<64x64xbf16>
    %c0_1 = arith.constant 0 : index
    %c0_2 = arith.constant 0 : index
    %1 = vector.load %arg1[%c0_1, %c0_2] : memref<64x128xf32, #tpu.memory_space<vmem>>, vector<64x128xf32>
    %2 = arith.mulf %1, %1 : vector<64x128xf32>
    %cst = arith.constant dense<0.000000e+00> : vector<64xf32>
    %3 = vector.multi_reduction <add>, %2, %cst [1] : vector<64x128xf32> to vector<64xf32>
    %4 = vector.shape_cast %3 : vector<64xf32> to vector<64x1xf32>
    %cst_3 = arith.constant 1.000000e-24 : f32
    %5 = vector.broadcast %cst_3 : f32 to vector<64x1xf32>
    %6 = arith.maximumf %4, %5 : vector<64x1xf32>
    %7 = math.rsqrt %6 : vector<64x1xf32>
    %8 = vector.broadcast %7 : vector<64x1xf32> to vector<64x128xf32>
    %9 = arith.mulf %1, %8 : vector<64x128xf32>
    %10 = arith.truncf %9 : vector<64x128xf32> to vector<64x128xbf16>
    %c0_4 = arith.constant 0 : index
    %c0_5 = arith.constant 0 : index
    %11 = vector.load %arg4[%c0_4, %c0_5] : memref<128x128xbf16, #tpu.memory_space<vmem>>, vector<128x128xbf16>
    %cst_6 = arith.constant dense<0.000000e+00> : vector<64x128xf32>
    %12 = tpu.matmul %10, %11, %cst_6 {dimension_numbers = #tpu.dot_dimension_numbers<[1], [0], [0], [1], [0, 0, 1, 1], [], []>} : vector<64x128xbf16>, vector<128x128xbf16>, vector<64x128xf32> -> vector<64x128xf32>
    %c0_7 = arith.constant 0 : index
    %c0_8 = arith.constant 0 : index
    %13 = vector.load %arg5[%c0_7, %c0_8] : memref<1x128xf32, #tpu.memory_space<vmem>>, vector<1x128xf32>
    %14 = vector.broadcast %13 : vector<1x128xf32> to vector<64x128xf32>
    %15 = arith.addf %12, %14 : vector<64x128xf32>
    %16 = arith.truncf %15 : vector<64x128xf32> to vector<64x128xbf16>
    %cst_9 = arith.constant dense<0.000000e+00> : vector<64x128xf32>
    %17 = tpu.matmul %0, %16, %cst_9 {dimension_numbers = #tpu.dot_dimension_numbers<[1], [0], [0], [1], [0, 0, 1, 1], [], []>} : vector<64x64xbf16>, vector<64x128xbf16>, vector<64x128xf32> -> vector<64x128xf32>
    %c0_10 = arith.constant 0 : index
    %c0_11 = arith.constant 0 : index
    %18 = vector.load %arg6[%c0_10, %c0_11] : memref<1x128xf32, #tpu.memory_space<vmem>>, vector<1x128xf32>
    %19 = vector.broadcast %18 : vector<1x128xf32> to vector<64x128xf32>
    %20 = arith.addf %17, %19 : vector<64x128xf32>
    %cst_12 = arith.constant 0.000000e+00 : f32
    %21 = vector.broadcast %cst_12 : f32 to vector<64x128xf32>
    %22 = arith.cmpf oge, %20, %21 : vector<64x128xf32>
    %cst_13 = arith.constant 0.00999999977 : f32
    %23 = vector.broadcast %cst_13 : f32 to vector<64x128xf32>
    %24 = arith.mulf %23, %20 : vector<64x128xf32>
    %25 = arith.select %22, %20, %24 : vector<64x128xi1>, vector<64x128xf32>
    %26 = arith.mulf %25, %25 : vector<64x128xf32>
    %cst_14 = arith.constant dense<0.000000e+00> : vector<64xf32>
    %27 = vector.multi_reduction <add>, %26, %cst_14 [1] : vector<64x128xf32> to vector<64xf32>
    %28 = vector.shape_cast %27 : vector<64xf32> to vector<64x1xf32>
    %cst_15 = arith.constant 1.000000e-24 : f32
    %29 = vector.broadcast %cst_15 : f32 to vector<64x1xf32>
    %30 = arith.maximumf %28, %29 : vector<64x1xf32>
    %31 = math.rsqrt %30 : vector<64x1xf32>
    %32 = vector.broadcast %31 : vector<64x1xf32> to vector<64x128xf32>
    %33 = arith.mulf %25, %32 : vector<64x128xf32>
    %34 = arith.truncf %33 : vector<64x128xf32> to vector<64x128xbf16>
    %c0_16 = arith.constant 0 : index
    %c0_17 = arith.constant 0 : index
    %35 = vector.load %arg7[%c0_16, %c0_17] : memref<128x128xbf16, #tpu.memory_space<vmem>>, vector<128x128xbf16>
    %cst_18 = arith.constant dense<0.000000e+00> : vector<64x128xf32>
    %36 = tpu.matmul %34, %35, %cst_18 {dimension_numbers = #tpu.dot_dimension_numbers<[1], [0], [0], [1], [0, 0, 1, 1], [], []>} : vector<64x128xbf16>, vector<128x128xbf16>, vector<64x128xf32> -> vector<64x128xf32>
    %c0_19 = arith.constant 0 : index
    %c0_20 = arith.constant 0 : index
    %37 = vector.load %arg8[%c0_19, %c0_20] : memref<1x128xf32, #tpu.memory_space<vmem>>, vector<1x128xf32>
    %38 = vector.broadcast %37 : vector<1x128xf32> to vector<64x128xf32>
    %39 = arith.addf %36, %38 : vector<64x128xf32>
    %40 = arith.truncf %39 : vector<64x128xf32> to vector<64x128xbf16>
    %cst_21 = arith.constant dense<0.000000e+00> : vector<64x128xf32>
    %41 = tpu.matmul %0, %40, %cst_21 {dimension_numbers = #tpu.dot_dimension_numbers<[1], [0], [0], [1], [0, 0, 1, 1], [], []>} : vector<64x64xbf16>, vector<64x128xbf16>, vector<64x128xf32> -> vector<64x128xf32>
    %c0_22 = arith.constant 0 : index
    %c0_23 = arith.constant 0 : index
    %42 = vector.load %arg9[%c0_22, %c0_23] : memref<1x128xf32, #tpu.memory_space<vmem>>, vector<1x128xf32>
    %43 = vector.broadcast %42 : vector<1x128xf32> to vector<64x128xf32>
    %44 = arith.addf %41, %43 : vector<64x128xf32>
    %cst_24 = arith.constant 0.000000e+00 : f32
    %45 = vector.broadcast %cst_24 : f32 to vector<64x128xf32>
    %46 = arith.cmpf oge, %44, %45 : vector<64x128xf32>
    %cst_25 = arith.constant 0.00999999977 : f32
    %47 = vector.broadcast %cst_25 : f32 to vector<64x128xf32>
    %48 = arith.mulf %47, %44 : vector<64x128xf32>
    %49 = arith.select %46, %44, %48 : vector<64x128xi1>, vector<64x128xf32>
    %50 = arith.mulf %49, %49 : vector<64x128xf32>
    %cst_26 = arith.constant dense<0.000000e+00> : vector<64xf32>
    %51 = vector.multi_reduction <add>, %50, %cst_26 [1] : vector<64x128xf32> to vector<64xf32>
    %52 = vector.shape_cast %51 : vector<64xf32> to vector<64x1xf32>
    %cst_27 = arith.constant 1.000000e-24 : f32
    %53 = vector.broadcast %cst_27 : f32 to vector<64x1xf32>
    %54 = arith.maximumf %52, %53 : vector<64x1xf32>
    %55 = math.rsqrt %54 : vector<64x1xf32>
    %56 = vector.broadcast %55 : vector<64x1xf32> to vector<64x128xf32>
    %57 = arith.mulf %49, %56 : vector<64x128xf32>
    %58 = arith.truncf %57 : vector<64x128xf32> to vector<64x128xbf16>
    %c0_28 = arith.constant 0 : index
    %c0_29 = arith.constant 0 : index
    %59 = vector.load %arg10[%c0_28, %c0_29] : memref<128x64xbf16, #tpu.memory_space<vmem>>, vector<128x64xbf16>
    %cst_30 = arith.constant dense<0.000000e+00> : vector<64x64xf32>
    %60 = tpu.matmul %58, %59, %cst_30 {dimension_numbers = #tpu.dot_dimension_numbers<[1], [0], [0], [1], [0, 0, 1, 1], [], []>} : vector<64x128xbf16>, vector<128x64xbf16>, vector<64x64xf32> -> vector<64x64xf32>
    %c0_31 = arith.constant 0 : index
    %c0_32 = arith.constant 0 : index
    %61 = vector.load %arg11[%c0_31, %c0_32] : memref<1x64xf32, #tpu.memory_space<vmem>>, vector<1x64xf32>
    %62 = vector.broadcast %61 : vector<1x64xf32> to vector<64x64xf32>
    %63 = arith.addf %60, %62 : vector<64x64xf32>
    %64 = arith.truncf %63 : vector<64x64xf32> to vector<64x64xbf16>
    %cst_33 = arith.constant dense<0.000000e+00> : vector<64x64xf32>
    %65 = tpu.matmul %0, %64, %cst_33 {dimension_numbers = #tpu.dot_dimension_numbers<[1], [0], [0], [1], [0, 0, 1, 1], [], []>} : vector<64x64xbf16>, vector<64x64xbf16>, vector<64x64xf32> -> vector<64x64xf32>
    %c0_34 = arith.constant 0 : index
    %c0_35 = arith.constant 0 : index
    %66 = vector.load %arg12[%c0_34, %c0_35] : memref<1x64xf32, #tpu.memory_space<vmem>>, vector<1x64xf32>
    %67 = vector.broadcast %66 : vector<1x64xf32> to vector<64x64xf32>
    %68 = arith.addf %65, %67 : vector<64x64xf32>
    %cst_36 = arith.constant 0.000000e+00 : f32
    %69 = vector.broadcast %cst_36 : f32 to vector<64x64xf32>
    %70 = arith.cmpf oge, %68, %69 : vector<64x64xf32>
    %cst_37 = arith.constant 0.00999999977 : f32
    %71 = vector.broadcast %cst_37 : f32 to vector<64x64xf32>
    %72 = arith.mulf %71, %68 : vector<64x64xf32>
    %73 = arith.select %70, %68, %72 : vector<64x64xi1>, vector<64x64xf32>
    %74 = arith.truncf %73 : vector<64x64xf32> to vector<64x64xbf16>
    %c0_38 = arith.constant 0 : index
    %c0_39 = arith.constant 0 : index
    %75 = vector.load %arg13[%c0_38, %c0_39] : memref<64x6xbf16, #tpu.memory_space<vmem>>, vector<64x6xbf16>
    %cst_40 = arith.constant dense<0.000000e+00> : vector<64x6xf32>
    %76 = tpu.matmul %74, %75, %cst_40 {dimension_numbers = #tpu.dot_dimension_numbers<[1], [0], [0], [1], [0, 0, 1, 1], [], []>} : vector<64x64xbf16>, vector<64x6xbf16>, vector<64x6xf32> -> vector<64x6xf32>
    %c0_41 = arith.constant 0 : index
    %c0_42 = arith.constant 0 : index
    %77 = vector.load %arg3[%c0_41, %c0_42] : memref<64x64xbf16, #tpu.memory_space<vmem>>, vector<64x64xbf16>
    %c0_43 = arith.constant 0 : index
    %c0_44 = arith.constant 0 : index
    %78 = vector.load %arg14[%c0_43, %c0_44] : memref<64x6xbf16, #tpu.memory_space<vmem>>, vector<64x6xbf16>
    %cst_45 = arith.constant dense<0.000000e+00> : vector<64x6xf32>
    %79 = tpu.matmul %77, %78, %cst_45 {dimension_numbers = #tpu.dot_dimension_numbers<[1], [0], [0], [1], [0, 0, 1, 1], [], []>} : vector<64x64xbf16>, vector<64x6xbf16>, vector<64x6xf32> -> vector<64x6xf32>
    %80 = arith.addf %76, %79 : vector<64x6xf32>
    %c0_46 = arith.constant 0 : index
    %c0_47 = arith.constant 0 : index
    %81 = vector.load %arg15[%c0_46, %c0_47] : memref<1x6xf32, #tpu.memory_space<vmem>>, vector<1x6xf32>
    %82 = vector.broadcast %81 : vector<1x6xf32> to vector<64x6xf32>
    %83 = arith.addf %80, %82 : vector<64x6xf32>
    %cst_48 = arith.constant dense<0xFF800000> : vector<64xf32>
    %84 = vector.multi_reduction <maximumf>, %83, %cst_48 [1] : vector<64x6xf32> to vector<64xf32>
    %85 = vector.shape_cast %84 : vector<64xf32> to vector<64x1xf32>
    %86 = vector.broadcast %85 : vector<64x1xf32> to vector<64x6xf32>
    %87 = arith.subf %83, %86 : vector<64x6xf32>
    %88 = math.exp %87 : vector<64x6xf32>
    %cst_49 = arith.constant dense<0.000000e+00> : vector<64xf32>
    %89 = vector.multi_reduction <add>, %88, %cst_49 [1] : vector<64x6xf32> to vector<64xf32>
    %90 = vector.shape_cast %89 : vector<64xf32> to vector<64x1xf32>
    %91 = vector.broadcast %90 : vector<64x1xf32> to vector<64x6xf32>
    %92 = arith.divf %88, %91 : vector<64x6xf32>
    %c0_50 = arith.constant 0 : index
    %c0_51 = arith.constant 0 : index
    %93 = vector.load %arg16[%c0_50, %c0_51] : memref<64x6xf32, #tpu.memory_space<vmem>>, vector<64x6xf32>
    tpu.vector_store %arg16[%c0_50, %c0_51], %92 {strides = array<i32>} : memref<64x6xf32, #tpu.memory_space<vmem>>, vector<64x6xf32>,
    return
  }
  func.func @transform_0(%arg0: i32) -> (i32, i32) {
    %c0_i32 = arith.constant 0 : i32
    %c0_i32_0 = arith.constant 0 : i32
    %c0_i32_1 = arith.constant 0 : i32
    return %c0_i32, %c0_i32_0 : i32, i32
  }
  func.func @transform_1(%arg0: i32) -> (i32, i32) {
    %c0_i32 = arith.constant 0 : i32
    %c0_i32_0 = arith.constant 0 : i32
    %c0_i32_1 = arith.constant 0 : i32
    return %c0_i32, %c0_i32_0 : i32, i32
  }
  func.func @transform_2(%arg0: i32) -> (i32, i32) {
    %c0_i32 = arith.constant 0 : i32
    %c0_i32_0 = arith.constant 0 : i32
    %c0_i32_1 = arith.constant 0 : i32
    return %c0_i32, %c0_i32_0 : i32, i32
  }
  func.func @transform_3(%arg0: i32) -> (i32, i32) {
    %c0_i32 = arith.constant 0 : i32
    %c0_i32_0 = arith.constant 0 : i32
    %c0_i32_1 = arith.constant 0 : i32
    return %c0_i32, %c0_i32_0 : i32, i32
  }
  func.func @transform_4(%arg0: i32) -> (i32, i32) {
    %c0_i32 = arith.constant 0 : i32
    %c0_i32_0 = arith.constant 0 : i32
    %c0_i32_1 = arith.constant 0 : i32
    return %c0_i32, %c0_i32_0 : i32, i32
  }
  func.func @transform_5(%arg0: i32) -> (i32, i32) {
    %c0_i32 = arith.constant 0 : i32
    %c0_i32_0 = arith.constant 0 : i32
    %c0_i32_1 = arith.constant 0 : i32
    return %c0_i32, %c0_i32_0 : i32, i32
  }
  func.func @transform_6(%arg0: i32) -> (i32, i32) {
    %c0_i32 = arith.constant 0 : i32
    %c0_i32_0 = arith.constant 0 : i32
    %c0_i32_1 = arith.constant 0 : i32
    return %c0_i32, %c0_i32_0 : i32, i32
  }
  func.func @transform_7(%arg0: i32) -> (i32, i32) {
    %c0_i32 = arith.constant 0 : i32
    %c0_i32_0 = arith.constant 0 : i32
    %c0_i32_1 = arith.constant 0 : i32
    return %c0_i32, %c0_i32_0 : i32, i32
  }
  func.func @transform_8(%arg0: i32) -> (i32, i32) {
    %c0_i32 = arith.constant 0 : i32
    %c0_i32_0 = arith.constant 0 : i32
    %c0_i32_1 = arith.constant 0 : i32
    return %c0_i32, %c0_i32_0 : i32, i32
  }
  func.func @transform_9(%arg0: i32) -> (i32, i32) {
    %c0_i32 = arith.constant 0 : i32
    %c0_i32_0 = arith.constant 0 : i32
    %c0_i32_1 = arith.constant 0 : i32
    return %c0_i32, %c0_i32_0 : i32, i32
  }
  func.func @transform_10(%arg0: i32) -> (i32, i32) {
    %c0_i32 = arith.constant 0 : i32
    %c0_i32_0 = arith.constant 0 : i32
    %c0_i32_1 = arith.constant 0 : i32
    return %c0_i32, %c0_i32_0 : i32, i32
  }
  func.func @transform_11(%arg0: i32) -> (i32, i32) {
    %c0_i32 = arith.constant 0 : i32
    %c0_i32_0 = arith.constant 0 : i32
    %c0_i32_1 = arith.constant 0 : i32
    return %c0_i32, %c0_i32_0 : i32, i32
  }
  func.func @transform_12(%arg0: i32) -> (i32, i32) {
    %c0_i32 = arith.constant 0 : i32
    %c0_i32_0 = arith.constant 0 : i32
    %c0_i32_1 = arith.constant 0 : i32
    return %c0_i32, %c0_i32_0 : i32, i32
  }
  func.func @transform_13(%arg0: i32) -> (i32, i32) {
    %c0_i32 = arith.constant 0 : i32
    %c0_i32_0 = arith.constant 0 : i32
    %c0_i32_1 = arith.constant 0 : i32
    return %c0_i32, %c0_i32_0 : i32, i32
  }
  func.func @transform_14(%arg0: i32) -> (i32, i32) {
    %c0_i32 = arith.constant 0 : i32
    %c0_i32_0 = arith.constant 0 : i32
    %c0_i32_1 = arith.constant 0 : i32
    return %c0_i32, %c0_i32_0 : i32, i32
  }
  func.func @transform_15(%arg0: i32) -> (i32, i32) {
    %c0_i32 = arith.constant 0 : i32
    %c0_i32_0 = arith.constant 0 : i32
    %c0_i32_1 = arith.constant 0 : i32
    return %c0_i32, %c0_i32_0 : i32, i32
  }
}

module attributes {stable_mosaic.version = 11 : i64} {
  func.func @denoise_kernel(%arg0: i32, %arg1: memref<64x16xf32, #tpu.memory_space<vmem>>, %arg2: memref<16x128xbf16, #tpu.memory_space<vmem>>, %arg3: memref<1x128xf32, #tpu.memory_space<vmem>>, %arg4: memref<128x128xbf16, #tpu.memory_space<vmem>>, %arg5: memref<1x128xf32, #tpu.memory_space<vmem>>, %arg6: memref<64x128xf32, #tpu.memory_space<vmem>>) attributes {dimension_semantics = [#tpu.dimension_semantics<parallel>], iteration_bounds = array<i64: 1>, scalar_prefetch = 0 : i64, scratch_operands = 0 : i64, tpu.core_type = #tpu.core_type<tc>, window_params = [{transform_indices = @transform_0, window_bounds = array<i64: 64, 16>}, {pipeline_mode = #tpu.pipeline_mode<synchronous>, transform_indices = @transform_1, window_bounds = array<i64: 16, 128>}, {pipeline_mode = #tpu.pipeline_mode<synchronous>, transform_indices = @transform_2, window_bounds = array<i64: 1, 128>}, {pipeline_mode = #tpu.pipeline_mode<synchronous>, transform_indices = @transform_3, window_bounds = array<i64: 128, 128>}, {pipeline_mode = #tpu.pipeline_mode<synchronous>, transform_indices = @transform_4, window_bounds = array<i64: 1, 128>}, {transform_indices = @transform_5, window_bounds = array<i64: 64, 128>}]} {
    %c0 = arith.constant 0 : index
    %c0_0 = arith.constant 0 : index
    %0 = vector.load %arg1[%c0, %c0_0] : memref<64x16xf32, #tpu.memory_space<vmem>>, vector<64x16xf32>
    %1 = arith.truncf %0 : vector<64x16xf32> to vector<64x16xbf16>
    %c0_1 = arith.constant 0 : index
    %c0_2 = arith.constant 0 : index
    %2 = vector.load %arg2[%c0_1, %c0_2] : memref<16x128xbf16, #tpu.memory_space<vmem>>, vector<16x128xbf16>
    %cst = arith.constant dense<0.000000e+00> : vector<64x128xf32>
    %3 = tpu.matmul %1, %2, %cst {dimension_numbers = #tpu.dot_dimension_numbers<[1], [0], [0], [1], [0, 0, 1, 1], [], []>} : vector<64x16xbf16>, vector<16x128xbf16>, vector<64x128xf32> -> vector<64x128xf32>
    %c0_3 = arith.constant 0 : index
    %c0_4 = arith.constant 0 : index
    %4 = vector.load %arg3[%c0_3, %c0_4] : memref<1x128xf32, #tpu.memory_space<vmem>>, vector<1x128xf32>
    %5 = vector.broadcast %4 : vector<1x128xf32> to vector<64x128xf32>
    %6 = arith.addf %3, %5 : vector<64x128xf32>
    %cst_5 = arith.constant 0.000000e+00 : f32
    %7 = vector.broadcast %cst_5 : f32 to vector<64x128xf32>
    %8 = arith.cmpf oge, %6, %7 : vector<64x128xf32>
    %cst_6 = arith.constant 0.00999999977 : f32
    %9 = vector.broadcast %cst_6 : f32 to vector<64x128xf32>
    %10 = arith.mulf %9, %6 : vector<64x128xf32>
    %11 = arith.select %8, %6, %10 : vector<64x128xi1>, vector<64x128xf32>
    %12 = arith.truncf %11 : vector<64x128xf32> to vector<64x128xbf16>
    %c0_7 = arith.constant 0 : index
    %c0_8 = arith.constant 0 : index
    %13 = vector.load %arg4[%c0_7, %c0_8] : memref<128x128xbf16, #tpu.memory_space<vmem>>, vector<128x128xbf16>
    %cst_9 = arith.constant dense<0.000000e+00> : vector<64x128xf32>
    %14 = tpu.matmul %12, %13, %cst_9 {dimension_numbers = #tpu.dot_dimension_numbers<[1], [0], [0], [1], [0, 0, 1, 1], [], []>} : vector<64x128xbf16>, vector<128x128xbf16>, vector<64x128xf32> -> vector<64x128xf32>
    %c0_10 = arith.constant 0 : index
    %c0_11 = arith.constant 0 : index
    %15 = vector.load %arg5[%c0_10, %c0_11] : memref<1x128xf32, #tpu.memory_space<vmem>>, vector<1x128xf32>
    %16 = vector.broadcast %15 : vector<1x128xf32> to vector<64x128xf32>
    %17 = arith.addf %14, %16 : vector<64x128xf32>
    %cst_12 = arith.constant 0.000000e+00 : f32
    %18 = vector.broadcast %cst_12 : f32 to vector<64x128xf32>
    %19 = arith.cmpf oge, %17, %18 : vector<64x128xf32>
    %cst_13 = arith.constant 0.00999999977 : f32
    %20 = vector.broadcast %cst_13 : f32 to vector<64x128xf32>
    %21 = arith.mulf %20, %17 : vector<64x128xf32>
    %22 = arith.select %19, %17, %21 : vector<64x128xi1>, vector<64x128xf32>
    %c0_14 = arith.constant 0 : index
    %c0_15 = arith.constant 0 : index
    %23 = vector.load %arg6[%c0_14, %c0_15] : memref<64x128xf32, #tpu.memory_space<vmem>>, vector<64x128xf32>
    tpu.vector_store %arg6[%c0_14, %c0_15], %22 {strides = array<i32>} : memref<64x128xf32, #tpu.memory_space<vmem>>, vector<64x128xf32>,
    return
  }
  func.func @transform_0(%arg0: i32) -> (i32, i32) {
    %c0_i32 = arith.constant 0 : i32
    %c0_i32_0 = arith.constant 0 : i32
    return %arg0, %c0_i32 : i32, i32
  }
  func.func @transform_1(%arg0: i32) -> (i32, i32) {
    %c0_i32 = arith.constant 0 : i32
    %c0_i32_0 = arith.constant 0 : i32
    %c0_i32_1 = arith.constant 0 : i32
    return %c0_i32, %c0_i32_0 : i32, i32
  }
  func.func @transform_2(%arg0: i32) -> (i32, i32) {
    %c0_i32 = arith.constant 0 : i32
    %c0_i32_0 = arith.constant 0 : i32
    %c0_i32_1 = arith.constant 0 : i32
    return %c0_i32, %c0_i32_0 : i32, i32
  }
  func.func @transform_3(%arg0: i32) -> (i32, i32) {
    %c0_i32 = arith.constant 0 : i32
    %c0_i32_0 = arith.constant 0 : i32
    %c0_i32_1 = arith.constant 0 : i32
    return %c0_i32, %c0_i32_0 : i32, i32
  }
  func.func @transform_4(%arg0: i32) -> (i32, i32) {
    %c0_i32 = arith.constant 0 : i32
    %c0_i32_0 = arith.constant 0 : i32
    %c0_i32_1 = arith.constant 0 : i32
    return %c0_i32, %c0_i32_0 : i32, i32
  }
  func.func @transform_5(%arg0: i32) -> (i32, i32) {
    %c0_i32 = arith.constant 0 : i32
    %c0_i32_0 = arith.constant 0 : i32
    return %arg0, %c0_i32 : i32, i32
  }
}

module attributes {stable_mosaic.version = 11 : i64} {
  func.func @cnn_branch_kernel(%arg0: i32, %arg1: memref<8x8x128xf32, #tpu.memory_space<vmem>>, %arg2: memref<128x64xbf16, #tpu.memory_space<vmem>>, %arg3: memref<1x64xf32, #tpu.memory_space<vmem>>, %arg4: memref<5x5x64xbf16, #tpu.memory_space<vmem>>, %arg5: memref<1x1x64xf32, #tpu.memory_space<vmem>>, %arg6: memref<8x8x64xbf16, #tpu.memory_space<vmem>>, %arg7: memref<12x12x64xbf16, #tpu.memory_space<vmem>>) attributes {dimension_semantics = [#tpu.dimension_semantics<arbitrary>], iteration_bounds = array<i64: 1>, scalar_prefetch = 0 : i64, scratch_operands = 1 : i64, tpu.core_type = #tpu.core_type<tc>, window_params = [{pipeline_mode = #tpu.pipeline_mode<synchronous>, transform_indices = @transform_0, window_bounds = array<i64: 8, 8, 128>}, {pipeline_mode = #tpu.pipeline_mode<synchronous>, transform_indices = @transform_1, window_bounds = array<i64: 128, 64>}, {pipeline_mode = #tpu.pipeline_mode<synchronous>, transform_indices = @transform_2, window_bounds = array<i64: 1, 64>}, {pipeline_mode = #tpu.pipeline_mode<synchronous>, transform_indices = @transform_3, window_bounds = array<i64: 5, 5, 64>}, {pipeline_mode = #tpu.pipeline_mode<synchronous>, transform_indices = @transform_4, window_bounds = array<i64: 1, 1, 64>}, {pipeline_mode = #tpu.pipeline_mode<synchronous>, transform_indices = @transform_5, window_bounds = array<i64: 8, 8, 64>}]} {
    %c0 = arith.constant 0 : index
    %c0_0 = arith.constant 0 : index
    %c0_1 = arith.constant 0 : index
    %0 = vector.load %arg1[%c0, %c0_0, %c0_1] : memref<8x8x128xf32, #tpu.memory_space<vmem>>, vector<8x8x128xf32>
    %1 = vector.shape_cast %0 : vector<8x8x128xf32> to vector<64x128xf32>
    %2 = arith.truncf %1 : vector<64x128xf32> to vector<64x128xbf16>
    %c0_2 = arith.constant 0 : index
    %c0_3 = arith.constant 0 : index
    %3 = vector.load %arg2[%c0_2, %c0_3] : memref<128x64xbf16, #tpu.memory_space<vmem>>, vector<128x64xbf16>
    %cst = arith.constant dense<0.000000e+00> : vector<64x64xf32>
    %4 = tpu.matmul %2, %3, %cst {dimension_numbers = #tpu.dot_dimension_numbers<[1], [0], [0], [1], [0, 0, 1, 1], [], []>} : vector<64x128xbf16>, vector<128x64xbf16>, vector<64x64xf32> -> vector<64x64xf32>
    %c0_4 = arith.constant 0 : index
    %c0_5 = arith.constant 0 : index
    %5 = vector.load %arg3[%c0_4, %c0_5] : memref<1x64xf32, #tpu.memory_space<vmem>>, vector<1x64xf32>
    %6 = vector.broadcast %5 : vector<1x64xf32> to vector<64x64xf32>
    %7 = arith.addf %4, %6 : vector<64x64xf32>
    %cst_6 = arith.constant 0.000000e+00 : f32
    %8 = vector.broadcast %cst_6 : f32 to vector<64x64xf32>
    %9 = arith.cmpf oge, %7, %8 : vector<64x64xf32>
    %cst_7 = arith.constant 0.00999999977 : f32
    %10 = vector.broadcast %cst_7 : f32 to vector<64x64xf32>
    %11 = arith.mulf %10, %7 : vector<64x64xf32>
    %12 = arith.select %9, %7, %11 : vector<64x64xi1>, vector<64x64xf32>
    %13 = vector.shape_cast %12 : vector<64x64xf32> to vector<8x8x64xf32>
    %cst_8 = arith.constant 0.000000e+00 : bf16
    %14 = vector.broadcast %cst_8 : bf16 to vector<2x12x64xbf16>
    %cst_9 = arith.constant 0.000000e+00 : bf16
    %15 = vector.broadcast %cst_9 : bf16 to vector<8x2x64xbf16>
    %c0_10 = arith.constant 0 : index
    %c0_11 = arith.constant 0 : index
    %c0_12 = arith.constant 0 : index
    %16 = vector.load %arg7[%c0_10, %c0_11, %c0_12] : memref<12x12x64xbf16, #tpu.memory_space<vmem>>, vector<2x12x64xbf16>
    tpu.vector_store %arg7[%c0_10, %c0_11, %c0_12], %14 {strides = array<i32>} : memref<12x12x64xbf16, #tpu.memory_space<vmem>>, vector<2x12x64xbf16>,
    %c10 = arith.constant 10 : index
    %c0_13 = arith.constant 0 : index
    %c0_14 = arith.constant 0 : index
    %17 = vector.load %arg7[%c10, %c0_13, %c0_14] : memref<12x12x64xbf16, #tpu.memory_space<vmem>>, vector<2x12x64xbf16>
    tpu.vector_store %arg7[%c10, %c0_13, %c0_14], %14 {strides = array<i32>} : memref<12x12x64xbf16, #tpu.memory_space<vmem>>, vector<2x12x64xbf16>,
    %c2 = arith.constant 2 : index
    %c0_15 = arith.constant 0 : index
    %c0_16 = arith.constant 0 : index
    %18 = vector.load %arg7[%c2, %c0_15, %c0_16] : memref<12x12x64xbf16, #tpu.memory_space<vmem>>, vector<8x2x64xbf16>
    tpu.vector_store %arg7[%c2, %c0_15, %c0_16], %15 {strides = array<i32>} : memref<12x12x64xbf16, #tpu.memory_space<vmem>>, vector<8x2x64xbf16>,
    %c2_17 = arith.constant 2 : index
    %c10_18 = arith.constant 10 : index
    %c0_19 = arith.constant 0 : index
    %19 = vector.load %arg7[%c2_17, %c10_18, %c0_19] : memref<12x12x64xbf16, #tpu.memory_space<vmem>>, vector<8x2x64xbf16>
    tpu.vector_store %arg7[%c2_17, %c10_18, %c0_19], %15 {strides = array<i32>} : memref<12x12x64xbf16, #tpu.memory_space<vmem>>, vector<8x2x64xbf16>,
    %20 = arith.truncf %13 : vector<8x8x64xf32> to vector<8x8x64xbf16>
    %c2_20 = arith.constant 2 : index
    %c2_21 = arith.constant 2 : index
    %c0_22 = arith.constant 0 : index
    %21 = vector.load %arg7[%c2_20, %c2_21, %c0_22] : memref<12x12x64xbf16, #tpu.memory_space<vmem>>, vector<8x8x64xbf16>
    tpu.vector_store %arg7[%c2_20, %c2_21, %c0_22], %20 {strides = array<i32>} : memref<12x12x64xbf16, #tpu.memory_space<vmem>>, vector<8x8x64xbf16>,
    %c0_23 = arith.constant 0 : index
    %c0_24 = arith.constant 0 : index
    %c0_25 = arith.constant 0 : index
    %22 = vector.load %arg4[%c0_23, %c0_24, %c0_25] : memref<5x5x64xbf16, #tpu.memory_space<vmem>>, vector<5x5x64xbf16>
    %cst_26 = arith.constant 0.000000e+00 : f32
    %23 = vector.broadcast %cst_26 : f32 to vector<8x8x64xf32>
    %cst_27 = arith.constant 0.000000e+00 : bf16
    %24 = vector.broadcast %cst_27 : bf16 to vector<8x8x64xbf16>
    %c0_28 = arith.constant 0 : index
    %c0_29 = arith.constant 0 : index
    %c0_30 = arith.constant 0 : index
    %25 = vector.load %arg7[%c0_28, %c0_29, %c0_30] : memref<12x12x64xbf16, #tpu.memory_space<vmem>>, vector<8x8x64xbf16>
    %26 = vector.extract_strided_slice %22 {offsets = [0, 0, 0], sizes = [1, 1, 64], strides = [1, 1, 1]} : vector<5x5x64xbf16> to vector<1x1x64xbf16>
    %27 = vector.shape_cast %26 : vector<1x1x64xbf16> to vector<64xbf16>
    %28 = vector.shape_cast %27 : vector<64xbf16> to vector<1x1x64xbf16>
    %29 = vector.broadcast %28 : vector<1x1x64xbf16> to vector<8x8x64xbf16>
    %30 = arith.mulf %25, %29 : vector<8x8x64xbf16>
    %31 = arith.addf %24, %30 : vector<8x8x64xbf16>
    %c0_31 = arith.constant 0 : index
    %c1 = arith.constant 1 : index
    %c0_32 = arith.constant 0 : index
    %32 = vector.load %arg7[%c0_31, %c1, %c0_32] : memref<12x12x64xbf16, #tpu.memory_space<vmem>>, vector<8x8x64xbf16>
    %33 = vector.extract_strided_slice %22 {offsets = [0, 1, 0], sizes = [1, 1, 64], strides = [1, 1, 1]} : vector<5x5x64xbf16> to vector<1x1x64xbf16>
    %34 = vector.shape_cast %33 : vector<1x1x64xbf16> to vector<64xbf16>
    %35 = vector.shape_cast %34 : vector<64xbf16> to vector<1x1x64xbf16>
    %36 = vector.broadcast %35 : vector<1x1x64xbf16> to vector<8x8x64xbf16>
    %37 = arith.mulf %32, %36 : vector<8x8x64xbf16>
    %38 = arith.addf %31, %37 : vector<8x8x64xbf16>
    %c0_33 = arith.constant 0 : index
    %c2_34 = arith.constant 2 : index
    %c0_35 = arith.constant 0 : index
    %39 = vector.load %arg7[%c0_33, %c2_34, %c0_35] : memref<12x12x64xbf16, #tpu.memory_space<vmem>>, vector<8x8x64xbf16>
    %40 = vector.extract_strided_slice %22 {offsets = [0, 2, 0], sizes = [1, 1, 64], strides = [1, 1, 1]} : vector<5x5x64xbf16> to vector<1x1x64xbf16>
    %41 = vector.shape_cast %40 : vector<1x1x64xbf16> to vector<64xbf16>
    %42 = vector.shape_cast %41 : vector<64xbf16> to vector<1x1x64xbf16>
    %43 = vector.broadcast %42 : vector<1x1x64xbf16> to vector<8x8x64xbf16>
    %44 = arith.mulf %39, %43 : vector<8x8x64xbf16>
    %45 = arith.addf %38, %44 : vector<8x8x64xbf16>
    %c0_36 = arith.constant 0 : index
    %c3 = arith.constant 3 : index
    %c0_37 = arith.constant 0 : index
    %46 = vector.load %arg7[%c0_36, %c3, %c0_37] : memref<12x12x64xbf16, #tpu.memory_space<vmem>>, vector<8x8x64xbf16>
    %47 = vector.extract_strided_slice %22 {offsets = [0, 3, 0], sizes = [1, 1, 64], strides = [1, 1, 1]} : vector<5x5x64xbf16> to vector<1x1x64xbf16>
    %48 = vector.shape_cast %47 : vector<1x1x64xbf16> to vector<64xbf16>
    %49 = vector.shape_cast %48 : vector<64xbf16> to vector<1x1x64xbf16>
    %50 = vector.broadcast %49 : vector<1x1x64xbf16> to vector<8x8x64xbf16>
    %51 = arith.mulf %46, %50 : vector<8x8x64xbf16>
    %52 = arith.addf %45, %51 : vector<8x8x64xbf16>
    %c0_38 = arith.constant 0 : index
    %c4 = arith.constant 4 : index
    %c0_39 = arith.constant 0 : index
    %53 = vector.load %arg7[%c0_38, %c4, %c0_39] : memref<12x12x64xbf16, #tpu.memory_space<vmem>>, vector<8x8x64xbf16>
    %54 = vector.extract_strided_slice %22 {offsets = [0, 4, 0], sizes = [1, 1, 64], strides = [1, 1, 1]} : vector<5x5x64xbf16> to vector<1x1x64xbf16>
    %55 = vector.shape_cast %54 : vector<1x1x64xbf16> to vector<64xbf16>
    %56 = vector.shape_cast %55 : vector<64xbf16> to vector<1x1x64xbf16>
    %57 = vector.broadcast %56 : vector<1x1x64xbf16> to vector<8x8x64xbf16>
    %58 = arith.mulf %53, %57 : vector<8x8x64xbf16>
    %59 = arith.addf %52, %58 : vector<8x8x64xbf16>
    %60 = arith.extf %59 : vector<8x8x64xbf16> to vector<8x8x64xf32>
    %61 = arith.addf %23, %60 : vector<8x8x64xf32>
    %cst_40 = arith.constant 0.000000e+00 : bf16
    %62 = vector.broadcast %cst_40 : bf16 to vector<8x8x64xbf16>
    %c1_41 = arith.constant 1 : index
    %c0_42 = arith.constant 0 : index
    %c0_43 = arith.constant 0 : index
    %63 = vector.load %arg7[%c1_41, %c0_42, %c0_43] : memref<12x12x64xbf16, #tpu.memory_space<vmem>>, vector<8x8x64xbf16>
    %64 = vector.extract_strided_slice %22 {offsets = [1, 0, 0], sizes = [1, 1, 64], strides = [1, 1, 1]} : vector<5x5x64xbf16> to vector<1x1x64xbf16>
    %65 = vector.shape_cast %64 : vector<1x1x64xbf16> to vector<64xbf16>
    %66 = vector.shape_cast %65 : vector<64xbf16> to vector<1x1x64xbf16>
    %67 = vector.broadcast %66 : vector<1x1x64xbf16> to vector<8x8x64xbf16>
    %68 = arith.mulf %63, %67 : vector<8x8x64xbf16>
    %69 = arith.addf %62, %68 : vector<8x8x64xbf16>
    %c1_44 = arith.constant 1 : index
    %c1_45 = arith.constant 1 : index
    %c0_46 = arith.constant 0 : index
    %70 = vector.load %arg7[%c1_44, %c1_45, %c0_46] : memref<12x12x64xbf16, #tpu.memory_space<vmem>>, vector<8x8x64xbf16>
    %71 = vector.extract_strided_slice %22 {offsets = [1, 1, 0], sizes = [1, 1, 64], strides = [1, 1, 1]} : vector<5x5x64xbf16> to vector<1x1x64xbf16>
    %72 = vector.shape_cast %71 : vector<1x1x64xbf16> to vector<64xbf16>
    %73 = vector.shape_cast %72 : vector<64xbf16> to vector<1x1x64xbf16>
    %74 = vector.broadcast %73 : vector<1x1x64xbf16> to vector<8x8x64xbf16>
    %75 = arith.mulf %70, %74 : vector<8x8x64xbf16>
    %76 = arith.addf %69, %75 : vector<8x8x64xbf16>
    %c1_47 = arith.constant 1 : index
    %c2_48 = arith.constant 2 : index
    %c0_49 = arith.constant 0 : index
    %77 = vector.load %arg7[%c1_47, %c2_48, %c0_49] : memref<12x12x64xbf16, #tpu.memory_space<vmem>>, vector<8x8x64xbf16>
    %78 = vector.extract_strided_slice %22 {offsets = [1, 2, 0], sizes = [1, 1, 64], strides = [1, 1, 1]} : vector<5x5x64xbf16> to vector<1x1x64xbf16>
    %79 = vector.shape_cast %78 : vector<1x1x64xbf16> to vector<64xbf16>
    %80 = vector.shape_cast %79 : vector<64xbf16> to vector<1x1x64xbf16>
    %81 = vector.broadcast %80 : vector<1x1x64xbf16> to vector<8x8x64xbf16>
    %82 = arith.mulf %77, %81 : vector<8x8x64xbf16>
    %83 = arith.addf %76, %82 : vector<8x8x64xbf16>
    %c1_50 = arith.constant 1 : index
    %c3_51 = arith.constant 3 : index
    %c0_52 = arith.constant 0 : index
    %84 = vector.load %arg7[%c1_50, %c3_51, %c0_52] : memref<12x12x64xbf16, #tpu.memory_space<vmem>>, vector<8x8x64xbf16>
    %85 = vector.extract_strided_slice %22 {offsets = [1, 3, 0], sizes = [1, 1, 64], strides = [1, 1, 1]} : vector<5x5x64xbf16> to vector<1x1x64xbf16>
    %86 = vector.shape_cast %85 : vector<1x1x64xbf16> to vector<64xbf16>
    %87 = vector.shape_cast %86 : vector<64xbf16> to vector<1x1x64xbf16>
    %88 = vector.broadcast %87 : vector<1x1x64xbf16> to vector<8x8x64xbf16>
    %89 = arith.mulf %84, %88 : vector<8x8x64xbf16>
    %90 = arith.addf %83, %89 : vector<8x8x64xbf16>
    %c1_53 = arith.constant 1 : index
    %c4_54 = arith.constant 4 : index
    %c0_55 = arith.constant 0 : index
    %91 = vector.load %arg7[%c1_53, %c4_54, %c0_55] : memref<12x12x64xbf16, #tpu.memory_space<vmem>>, vector<8x8x64xbf16>
    %92 = vector.extract_strided_slice %22 {offsets = [1, 4, 0], sizes = [1, 1, 64], strides = [1, 1, 1]} : vector<5x5x64xbf16> to vector<1x1x64xbf16>
    %93 = vector.shape_cast %92 : vector<1x1x64xbf16> to vector<64xbf16>
    %94 = vector.shape_cast %93 : vector<64xbf16> to vector<1x1x64xbf16>
    %95 = vector.broadcast %94 : vector<1x1x64xbf16> to vector<8x8x64xbf16>
    %96 = arith.mulf %91, %95 : vector<8x8x64xbf16>
    %97 = arith.addf %90, %96 : vector<8x8x64xbf16>
    %98 = arith.extf %97 : vector<8x8x64xbf16> to vector<8x8x64xf32>
    %99 = arith.addf %61, %98 : vector<8x8x64xf32>
    %cst_56 = arith.constant 0.000000e+00 : bf16
    %100 = vector.broadcast %cst_56 : bf16 to vector<8x8x64xbf16>
    %c2_57 = arith.constant 2 : index
    %c0_58 = arith.constant 0 : index
    %c0_59 = arith.constant 0 : index
    %101 = vector.load %arg7[%c2_57, %c0_58, %c0_59] : memref<12x12x64xbf16, #tpu.memory_space<vmem>>, vector<8x8x64xbf16>
    %102 = vector.extract_strided_slice %22 {offsets = [2, 0, 0], sizes = [1, 1, 64], strides = [1, 1, 1]} : vector<5x5x64xbf16> to vector<1x1x64xbf16>
    %103 = vector.shape_cast %102 : vector<1x1x64xbf16> to vector<64xbf16>
    %104 = vector.shape_cast %103 : vector<64xbf16> to vector<1x1x64xbf16>
    %105 = vector.broadcast %104 : vector<1x1x64xbf16> to vector<8x8x64xbf16>
    %106 = arith.mulf %101, %105 : vector<8x8x64xbf16>
    %107 = arith.addf %100, %106 : vector<8x8x64xbf16>
    %c2_60 = arith.constant 2 : index
    %c1_61 = arith.constant 1 : index
    %c0_62 = arith.constant 0 : index
    %108 = vector.load %arg7[%c2_60, %c1_61, %c0_62] : memref<12x12x64xbf16, #tpu.memory_space<vmem>>, vector<8x8x64xbf16>
    %109 = vector.extract_strided_slice %22 {offsets = [2, 1, 0], sizes = [1, 1, 64], strides = [1, 1, 1]} : vector<5x5x64xbf16> to vector<1x1x64xbf16>
    %110 = vector.shape_cast %109 : vector<1x1x64xbf16> to vector<64xbf16>
    %111 = vector.shape_cast %110 : vector<64xbf16> to vector<1x1x64xbf16>
    %112 = vector.broadcast %111 : vector<1x1x64xbf16> to vector<8x8x64xbf16>
    %113 = arith.mulf %108, %112 : vector<8x8x64xbf16>
    %114 = arith.addf %107, %113 : vector<8x8x64xbf16>
    %c2_63 = arith.constant 2 : index
    %c2_64 = arith.constant 2 : index
    %c0_65 = arith.constant 0 : index
    %115 = vector.load %arg7[%c2_63, %c2_64, %c0_65] : memref<12x12x64xbf16, #tpu.memory_space<vmem>>, vector<8x8x64xbf16>
    %116 = vector.extract_strided_slice %22 {offsets = [2, 2, 0], sizes = [1, 1, 64], strides = [1, 1, 1]} : vector<5x5x64xbf16> to vector<1x1x64xbf16>
    %117 = vector.shape_cast %116 : vector<1x1x64xbf16> to vector<64xbf16>
    %118 = vector.shape_cast %117 : vector<64xbf16> to vector<1x1x64xbf16>
    %119 = vector.broadcast %118 : vector<1x1x64xbf16> to vector<8x8x64xbf16>
    %120 = arith.mulf %115, %119 : vector<8x8x64xbf16>
    %121 = arith.addf %114, %120 : vector<8x8x64xbf16>
    %c2_66 = arith.constant 2 : index
    %c3_67 = arith.constant 3 : index
    %c0_68 = arith.constant 0 : index
    %122 = vector.load %arg7[%c2_66, %c3_67, %c0_68] : memref<12x12x64xbf16, #tpu.memory_space<vmem>>, vector<8x8x64xbf16>
    %123 = vector.extract_strided_slice %22 {offsets = [2, 3, 0], sizes = [1, 1, 64], strides = [1, 1, 1]} : vector<5x5x64xbf16> to vector<1x1x64xbf16>
    %124 = vector.shape_cast %123 : vector<1x1x64xbf16> to vector<64xbf16>
    %125 = vector.shape_cast %124 : vector<64xbf16> to vector<1x1x64xbf16>
    %126 = vector.broadcast %125 : vector<1x1x64xbf16> to vector<8x8x64xbf16>
    %127 = arith.mulf %122, %126 : vector<8x8x64xbf16>
    %128 = arith.addf %121, %127 : vector<8x8x64xbf16>
    %c2_69 = arith.constant 2 : index
    %c4_70 = arith.constant 4 : index
    %c0_71 = arith.constant 0 : index
    %129 = vector.load %arg7[%c2_69, %c4_70, %c0_71] : memref<12x12x64xbf16, #tpu.memory_space<vmem>>, vector<8x8x64xbf16>
    %130 = vector.extract_strided_slice %22 {offsets = [2, 4, 0], sizes = [1, 1, 64], strides = [1, 1, 1]} : vector<5x5x64xbf16> to vector<1x1x64xbf16>
    %131 = vector.shape_cast %130 : vector<1x1x64xbf16> to vector<64xbf16>
    %132 = vector.shape_cast %131 : vector<64xbf16> to vector<1x1x64xbf16>
    %133 = vector.broadcast %132 : vector<1x1x64xbf16> to vector<8x8x64xbf16>
    %134 = arith.mulf %129, %133 : vector<8x8x64xbf16>
    %135 = arith.addf %128, %134 : vector<8x8x64xbf16>
    %136 = arith.extf %135 : vector<8x8x64xbf16> to vector<8x8x64xf32>
    %137 = arith.addf %99, %136 : vector<8x8x64xf32>
    %cst_72 = arith.constant 0.000000e+00 : bf16
    %138 = vector.broadcast %cst_72 : bf16 to vector<8x8x64xbf16>
    %c3_73 = arith.constant 3 : index
    %c0_74 = arith.constant 0 : index
    %c0_75 = arith.constant 0 : index
    %139 = vector.load %arg7[%c3_73, %c0_74, %c0_75] : memref<12x12x64xbf16, #tpu.memory_space<vmem>>, vector<8x8x64xbf16>
    %140 = vector.extract_strided_slice %22 {offsets = [3, 0, 0], sizes = [1, 1, 64], strides = [1, 1, 1]} : vector<5x5x64xbf16> to vector<1x1x64xbf16>
    %141 = vector.shape_cast %140 : vector<1x1x64xbf16> to vector<64xbf16>
    %142 = vector.shape_cast %141 : vector<64xbf16> to vector<1x1x64xbf16>
    %143 = vector.broadcast %142 : vector<1x1x64xbf16> to vector<8x8x64xbf16>
    %144 = arith.mulf %139, %143 : vector<8x8x64xbf16>
    %145 = arith.addf %138, %144 : vector<8x8x64xbf16>
    %c3_76 = arith.constant 3 : index
    %c1_77 = arith.constant 1 : index
    %c0_78 = arith.constant 0 : index
    %146 = vector.load %arg7[%c3_76, %c1_77, %c0_78] : memref<12x12x64xbf16, #tpu.memory_space<vmem>>, vector<8x8x64xbf16>
    %147 = vector.extract_strided_slice %22 {offsets = [3, 1, 0], sizes = [1, 1, 64], strides = [1, 1, 1]} : vector<5x5x64xbf16> to vector<1x1x64xbf16>
    %148 = vector.shape_cast %147 : vector<1x1x64xbf16> to vector<64xbf16>
    %149 = vector.shape_cast %148 : vector<64xbf16> to vector<1x1x64xbf16>
    %150 = vector.broadcast %149 : vector<1x1x64xbf16> to vector<8x8x64xbf16>
    %151 = arith.mulf %146, %150 : vector<8x8x64xbf16>
    %152 = arith.addf %145, %151 : vector<8x8x64xbf16>
    %c3_79 = arith.constant 3 : index
    %c2_80 = arith.constant 2 : index
    %c0_81 = arith.constant 0 : index
    %153 = vector.load %arg7[%c3_79, %c2_80, %c0_81] : memref<12x12x64xbf16, #tpu.memory_space<vmem>>, vector<8x8x64xbf16>
    %154 = vector.extract_strided_slice %22 {offsets = [3, 2, 0], sizes = [1, 1, 64], strides = [1, 1, 1]} : vector<5x5x64xbf16> to vector<1x1x64xbf16>
    %155 = vector.shape_cast %154 : vector<1x1x64xbf16> to vector<64xbf16>
    %156 = vector.shape_cast %155 : vector<64xbf16> to vector<1x1x64xbf16>
    %157 = vector.broadcast %156 : vector<1x1x64xbf16> to vector<8x8x64xbf16>
    %158 = arith.mulf %153, %157 : vector<8x8x64xbf16>
    %159 = arith.addf %152, %158 : vector<8x8x64xbf16>
    %c3_82 = arith.constant 3 : index
    %c3_83 = arith.constant 3 : index
    %c0_84 = arith.constant 0 : index
    %160 = vector.load %arg7[%c3_82, %c3_83, %c0_84] : memref<12x12x64xbf16, #tpu.memory_space<vmem>>, vector<8x8x64xbf16>
    %161 = vector.extract_strided_slice %22 {offsets = [3, 3, 0], sizes = [1, 1, 64], strides = [1, 1, 1]} : vector<5x5x64xbf16> to vector<1x1x64xbf16>
    %162 = vector.shape_cast %161 : vector<1x1x64xbf16> to vector<64xbf16>
    %163 = vector.shape_cast %162 : vector<64xbf16> to vector<1x1x64xbf16>
    %164 = vector.broadcast %163 : vector<1x1x64xbf16> to vector<8x8x64xbf16>
    %165 = arith.mulf %160, %164 : vector<8x8x64xbf16>
    %166 = arith.addf %159, %165 : vector<8x8x64xbf16>
    %c3_85 = arith.constant 3 : index
    %c4_86 = arith.constant 4 : index
    %c0_87 = arith.constant 0 : index
    %167 = vector.load %arg7[%c3_85, %c4_86, %c0_87] : memref<12x12x64xbf16, #tpu.memory_space<vmem>>, vector<8x8x64xbf16>
    %168 = vector.extract_strided_slice %22 {offsets = [3, 4, 0], sizes = [1, 1, 64], strides = [1, 1, 1]} : vector<5x5x64xbf16> to vector<1x1x64xbf16>
    %169 = vector.shape_cast %168 : vector<1x1x64xbf16> to vector<64xbf16>
    %170 = vector.shape_cast %169 : vector<64xbf16> to vector<1x1x64xbf16>
    %171 = vector.broadcast %170 : vector<1x1x64xbf16> to vector<8x8x64xbf16>
    %172 = arith.mulf %167, %171 : vector<8x8x64xbf16>
    %173 = arith.addf %166, %172 : vector<8x8x64xbf16>
    %174 = arith.extf %173 : vector<8x8x64xbf16> to vector<8x8x64xf32>
    %175 = arith.addf %137, %174 : vector<8x8x64xf32>
    %cst_88 = arith.constant 0.000000e+00 : bf16
    %176 = vector.broadcast %cst_88 : bf16 to vector<8x8x64xbf16>
    %c4_89 = arith.constant 4 : index
    %c0_90 = arith.constant 0 : index
    %c0_91 = arith.constant 0 : index
    %177 = vector.load %arg7[%c4_89, %c0_90, %c0_91] : memref<12x12x64xbf16, #tpu.memory_space<vmem>>, vector<8x8x64xbf16>
    %178 = vector.extract_strided_slice %22 {offsets = [4, 0, 0], sizes = [1, 1, 64], strides = [1, 1, 1]} : vector<5x5x64xbf16> to vector<1x1x64xbf16>
    %179 = vector.shape_cast %178 : vector<1x1x64xbf16> to vector<64xbf16>
    %180 = vector.shape_cast %179 : vector<64xbf16> to vector<1x1x64xbf16>
    %181 = vector.broadcast %180 : vector<1x1x64xbf16> to vector<8x8x64xbf16>
    %182 = arith.mulf %177, %181 : vector<8x8x64xbf16>
    %183 = arith.addf %176, %182 : vector<8x8x64xbf16>
    %c4_92 = arith.constant 4 : index
    %c1_93 = arith.constant 1 : index
    %c0_94 = arith.constant 0 : index
    %184 = vector.load %arg7[%c4_92, %c1_93, %c0_94] : memref<12x12x64xbf16, #tpu.memory_space<vmem>>, vector<8x8x64xbf16>
    %185 = vector.extract_strided_slice %22 {offsets = [4, 1, 0], sizes = [1, 1, 64], strides = [1, 1, 1]} : vector<5x5x64xbf16> to vector<1x1x64xbf16>
    %186 = vector.shape_cast %185 : vector<1x1x64xbf16> to vector<64xbf16>
    %187 = vector.shape_cast %186 : vector<64xbf16> to vector<1x1x64xbf16>
    %188 = vector.broadcast %187 : vector<1x1x64xbf16> to vector<8x8x64xbf16>
    %189 = arith.mulf %184, %188 : vector<8x8x64xbf16>
    %190 = arith.addf %183, %189 : vector<8x8x64xbf16>
    %c4_95 = arith.constant 4 : index
    %c2_96 = arith.constant 2 : index
    %c0_97 = arith.constant 0 : index
    %191 = vector.load %arg7[%c4_95, %c2_96, %c0_97] : memref<12x12x64xbf16, #tpu.memory_space<vmem>>, vector<8x8x64xbf16>
    %192 = vector.extract_strided_slice %22 {offsets = [4, 2, 0], sizes = [1, 1, 64], strides = [1, 1, 1]} : vector<5x5x64xbf16> to vector<1x1x64xbf16>
    %193 = vector.shape_cast %192 : vector<1x1x64xbf16> to vector<64xbf16>
    %194 = vector.shape_cast %193 : vector<64xbf16> to vector<1x1x64xbf16>
    %195 = vector.broadcast %194 : vector<1x1x64xbf16> to vector<8x8x64xbf16>
    %196 = arith.mulf %191, %195 : vector<8x8x64xbf16>
    %197 = arith.addf %190, %196 : vector<8x8x64xbf16>
    %c4_98 = arith.constant 4 : index
    %c3_99 = arith.constant 3 : index
    %c0_100 = arith.constant 0 : index
    %198 = vector.load %arg7[%c4_98, %c3_99, %c0_100] : memref<12x12x64xbf16, #tpu.memory_space<vmem>>, vector<8x8x64xbf16>
    %199 = vector.extract_strided_slice %22 {offsets = [4, 3, 0], sizes = [1, 1, 64], strides = [1, 1, 1]} : vector<5x5x64xbf16> to vector<1x1x64xbf16>
    %200 = vector.shape_cast %199 : vector<1x1x64xbf16> to vector<64xbf16>
    %201 = vector.shape_cast %200 : vector<64xbf16> to vector<1x1x64xbf16>
    %202 = vector.broadcast %201 : vector<1x1x64xbf16> to vector<8x8x64xbf16>
    %203 = arith.mulf %198, %202 : vector<8x8x64xbf16>
    %204 = arith.addf %197, %203 : vector<8x8x64xbf16>
    %c4_101 = arith.constant 4 : index
    %c4_102 = arith.constant 4 : index
    %c0_103 = arith.constant 0 : index
    %205 = vector.load %arg7[%c4_101, %c4_102, %c0_103] : memref<12x12x64xbf16, #tpu.memory_space<vmem>>, vector<8x8x64xbf16>
    %206 = vector.extract_strided_slice %22 {offsets = [4, 4, 0], sizes = [1, 1, 64], strides = [1, 1, 1]} : vector<5x5x64xbf16> to vector<1x1x64xbf16>
    %207 = vector.shape_cast %206 : vector<1x1x64xbf16> to vector<64xbf16>
    %208 = vector.shape_cast %207 : vector<64xbf16> to vector<1x1x64xbf16>
    %209 = vector.broadcast %208 : vector<1x1x64xbf16> to vector<8x8x64xbf16>
    %210 = arith.mulf %205, %209 : vector<8x8x64xbf16>
    %211 = arith.addf %204, %210 : vector<8x8x64xbf16>
    %212 = arith.extf %211 : vector<8x8x64xbf16> to vector<8x8x64xf32>
    %213 = arith.addf %175, %212 : vector<8x8x64xf32>
    %c0_104 = arith.constant 0 : index
    %c0_105 = arith.constant 0 : index
    %c0_106 = arith.constant 0 : index
    %214 = vector.load %arg5[%c0_104, %c0_105, %c0_106] : memref<1x1x64xf32, #tpu.memory_space<vmem>>, vector<1x1x64xf32>
    %215 = vector.broadcast %214 : vector<1x1x64xf32> to vector<8x8x64xf32>
    %216 = arith.addf %213, %215 : vector<8x8x64xf32>
    %cst_107 = arith.constant 0.000000e+00 : f32
    %217 = vector.broadcast %cst_107 : f32 to vector<8x8x64xf32>
    %218 = arith.cmpf oge, %216, %217 : vector<8x8x64xf32>
    %cst_108 = arith.constant 0.00999999977 : f32
    %219 = vector.broadcast %cst_108 : f32 to vector<8x8x64xf32>
    %220 = arith.mulf %219, %216 : vector<8x8x64xf32>
    %221 = arith.select %218, %216, %220 : vector<8x8x64xi1>, vector<8x8x64xf32>
    %222 = arith.truncf %221 : vector<8x8x64xf32> to vector<8x8x64xbf16>
    %c0_109 = arith.constant 0 : index
    %c0_110 = arith.constant 0 : index
    %c0_111 = arith.constant 0 : index
    %223 = vector.load %arg6[%c0_109, %c0_110, %c0_111] : memref<8x8x64xbf16, #tpu.memory_space<vmem>>, vector<8x8x64xbf16>
    tpu.vector_store %arg6[%c0_109, %c0_110, %c0_111], %222 {strides = array<i32>} : memref<8x8x64xbf16, #tpu.memory_space<vmem>>, vector<8x8x64xbf16>,
    return
  }
  func.func @transform_0(%arg0: i32) -> (i32, i32, i32) {
    %c0_i32 = arith.constant 0 : i32
    %c0_i32_0 = arith.constant 0 : i32
    %c0_i32_1 = arith.constant 0 : i32
    %c0_i32_2 = arith.constant 0 : i32
    return %c0_i32, %c0_i32_0, %c0_i32_1 : i32, i32, i32
  }
  func.func @transform_1(%arg0: i32) -> (i32, i32) {
    %c0_i32 = arith.constant 0 : i32
    %c0_i32_0 = arith.constant 0 : i32
    %c0_i32_1 = arith.constant 0 : i32
    return %c0_i32, %c0_i32_0 : i32, i32
  }
  func.func @transform_2(%arg0: i32) -> (i32, i32) {
    %c0_i32 = arith.constant 0 : i32
    %c0_i32_0 = arith.constant 0 : i32
    %c0_i32_1 = arith.constant 0 : i32
    return %c0_i32, %c0_i32_0 : i32, i32
  }
  func.func @transform_3(%arg0: i32) -> (i32, i32, i32) {
    %c0_i32 = arith.constant 0 : i32
    %c0_i32_0 = arith.constant 0 : i32
    %c0_i32_1 = arith.constant 0 : i32
    %c0_i32_2 = arith.constant 0 : i32
    return %c0_i32, %c0_i32_0, %c0_i32_1 : i32, i32, i32
  }
  func.func @transform_4(%arg0: i32) -> (i32, i32, i32) {
    %c0_i32 = arith.constant 0 : i32
    %c0_i32_0 = arith.constant 0 : i32
    %c0_i32_1 = arith.constant 0 : i32
    %c0_i32_2 = arith.constant 0 : i32
    return %c0_i32, %c0_i32_0, %c0_i32_1 : i32, i32, i32
  }
  func.func @transform_5(%arg0: i32) -> (i32, i32, i32) {
    %c0_i32 = arith.constant 0 : i32
    %c0_i32_0 = arith.constant 0 : i32
    %c0_i32_1 = arith.constant 0 : i32
    %c0_i32_2 = arith.constant 0 : i32
    return %c0_i32, %c0_i32_0, %c0_i32_1 : i32, i32, i32
  }
}

</mosaic_0001>

<llo_original>
// kernel: mpnncnn_forward.3
$region0: #{mpnncnn_forward.3}
  #allocation0 [shape = 'u32[]', space=smem, size = 0x4, offset = 0x4, fixed_abs, tag = 'smem constant byte address 0x4 - core index']
  #allocation1 [shape = 'u32[72,128]{1,0:T(1,128)}', space=vmem, size = 0x9000, scoped, tag = 'internal scratch']
  %s0 = inlined_call_operand.vmem [shape: f32[64,16], index: 0, kind: input, shape index: {}]
  %s1 = inlined_call_operand.vmem [shape: bf16[16,128], index: 1, kind: input, shape index: {}]
  %s2 = inlined_call_operand.vmem [shape: f32[1,128], index: 2, kind: input, shape index: {}]
  %s3 = inlined_call_operand.vmem [shape: bf16[128,128], index: 3, kind: input, shape index: {}]
  %s4 = inlined_call_operand.vmem [shape: f32[1,128], index: 4, kind: input, shape index: {}]
  %s5 = inlined_call_operand.vmem [shape: f32[64,128], index: 5, kind: output, shape index: {}]
  %s6 = sld [smem:[#allocation0]]
  $region30: #{mpnncnn_forward.3} parent=0
    _
  %s8 = ssub.s32 1, %s6
  %s9 = scalar_select 0, %s8, %s6
  // Predicated region
  $region2: #{mpnncnn_forward.3} parent=0 // pred_check
    _
  $region3: #{mpnncnn_forward.3} parent=0 // pred_check_branch
    %11 = sbr.rel (0) target = $region5
  $region4: #{mpnncnn_forward.3} parent=0 // pred_region
    _
  $region5: #{mpnncnn_forward.3} parent=0 // pred_fallthru
    _
  // Predicated region
  $region6: #{mpnncnn_forward.3} parent=0 // pred_check
    _
  $region7: #{mpnncnn_forward.3} parent=0 // pred_check_branch
    %13 = sbr.rel (0) target = $region9
  $region8: #{mpnncnn_forward.3} parent=0 // pred_region
    _
  $region9: #{mpnncnn_forward.3} parent=0 // pred_fallthru
    _
  // Predicated region
  $region10: #{mpnncnn_forward.3} parent=0 // pred_check
    _
  $region11: #{mpnncnn_forward.3} parent=0 // pred_check_branch
    %15 = sbr.rel (0) target = $region13
  $region12: #{mpnncnn_forward.3} parent=0 // pred_region
    _
  $region13: #{mpnncnn_forward.3} parent=0 // pred_fallthru
    _
  // Predicated region
  $region14: #{mpnncnn_forward.3} parent=0 // pred_check
    _
  $region15: #{mpnncnn_forward.3} parent=0 // pred_check_branch
    %17 = sbr.rel (0) target = $region17
  $region16: #{mpnncnn_forward.3} parent=0 // pred_region
    _
  $region17: #{mpnncnn_forward.3} parent=0 // pred_fallthru
    _
  // Predicated region
  $region18: #{mpnncnn_forward.3} parent=0 // pred_check
    _
  $region19: #{mpnncnn_forward.3} parent=0 // pred_check_branch
    %19 = sbr.rel (0) target = $region21
  $region20: #{mpnncnn_forward.3} parent=0 // pred_region
    _
  $region21: #{mpnncnn_forward.3} parent=0 // pred_fallthru
    _
  %v21 = vld [vmem:[%s0] sm:$0xff]
  %v22 = vld [vmem:[%s0 + $0x8] sm:$0xff]
  %v23 = vld [vmem:[%s0 + $0x10] sm:$0xff]
  %v24 = vld [vmem:[%s0 + $0x18] sm:$0xff]
  %v25 = vld [vmem:[%s0 + $0x20] sm:$0xff]
  %v26 = vld [vmem:[%s0 + $0x28] sm:$0xff]
  %v27 = vld [vmem:[%s0 + $0x30] sm:$0xff]
  %v28 = vld [vmem:[%s0 + $0x38] sm:$0xff]
  %v29 = vpack.c.bf16 %v22, %v21
  %v30 = vpack.c.bf16 %v24, %v23
  %v31 = vpack.c.bf16 %v26, %v25
  %v32 = vpack.c.bf16 %v28, %v27
  %v33 = vld [vmem:[%s1] sm:$0xf]
  %v34 = vld [vmem:[%s1 + $0x4] sm:$0xf]
  %v35 = vld [vmem:[%s2] sm:$0x1]
  %v37 = vperm.slane %v35, 0
  %v41 = vunpack.c.l.b16 %v33
  %v42 = vunpack.c.l.b16 %v34
  %v43 = vpack.c.b16 %v42, %v41
  %vm45 = vcmask 130048
  %v47 = vsel %vm45, %v29, 0
  %v50 = vsel %vm45, %v30, 0
  %v53 = vsel %vm45, %v31, 0
  %v56 = vsel %vm45, %v32, 0
  %58 = vmatpush.bf16.msra.mxu0 0
  %59 = vmatpush.bf16.msra.mxu0 0
  %60 = vmatpush.bf16.msra.mxu0 0
  %61 = vmatpush.bf16.msra.mxu0 0
  %62 = vmatpush.bf16.msra.mxu0 0
  %63 = vmatpush.bf16.msra.mxu0 0
  %64 = vmatpush.bf16.msra.mxu0 0
  %65 = vmatpush.bf16.msra.mxu0 %v43
  %66 = vmatmul.bf16.gmra.mxu0 %v47
  %v67 = vpop.f32.mrf.mxu0
  %v68 = vadd.f32 %v37, %v67
  %v69 = vpop.f32.mrf.mxu0
  %v70 = vadd.f32 %v37, %v69
  %71 = vmatmul.bf16.gmra.mxu0 %v50
  %v72 = vpop.f32.mrf.mxu0
  %v73 = vadd.f32 %v37, %v72
  %v74 = vpop.f32.mrf.mxu0
  %v75 = vadd.f32 %v37, %v74
  %76 = vmatmul.bf16.gmra.mxu0 %v53
  %v77 = vpop.f32.mrf.mxu0
  %v78 = vadd.f32 %v37, %v77
  %v79 = vpop.f32.mrf.mxu0
  %v80 = vadd.f32 %v37, %v79
  %81 = vmatmul.bf16.gmra.mxu0 %v56
  %v82 = vpop.f32.mrf.mxu0
  %v83 = vadd.f32 %v37, %v82
  %v84 = vpop.f32.mrf.mxu0
  %v85 = vadd.f32 %v37, %v84
  %86 = vdwg.mxu0
  %vm87 = vcmp.ge.f32.partialorder %v68, 0.0
  %vm88 = vcmp.ge.f32.partialorder %v70, 0.0
  %vm89 = vcmp.ge.f32.partialorder %v73, 0.0
  %vm90 = vcmp.ge.f32.partialorder %v75, 0.0
  %vm91 = vcmp.ge.f32.partialorder %v78, 0.0
  %vm92 = vcmp.ge.f32.partialorder %v80, 0.0
  %vm93 = vcmp.ge.f32.partialorder %v83, 0.0
  %vm94 = vcmp.ge.f32.partialorder %v85, 0.0
  %v95 = vmul.f32 %v68, 0.01
  %v96 = vmul.f32 %v70, 0.01
  %v97 = vmul.f32 %v73, 0.01
  %v98 = vmul.f32 %v75, 0.01
  %v99 = vmul.f32 %v78, 0.01
  %v100 = vmul.f32 %v80, 0.01
  %v101 = vmul.f32 %v83, 0.01
  %v102 = vmul.f32 %v85, 0.01
  %v103 = vsel %vm87, %v68, %v95
  %v104 = vsel %vm88, %v70, %v96
  %v105 = vsel %vm89, %v73, %v97
  %v106 = vsel %vm90, %v75, %v98
  %v107 = vsel %vm91, %v78, %v99
  %v108 = vsel %vm92, %v80, %v100
  %v109 = vsel %vm93, %v83, %v101
  %v110 = vsel %vm94, %v85, %v102
  %v111 = vpack.c.bf16 %v104, %v103
  %v112 = vpack.c.bf16 %v106, %v105
  %v113 = vpack.c.bf16 %v108, %v107
  %v114 = vpack.c.bf16 %v110, %v109
  %v115 = vld [vmem:[%s3] sm:$0xf]
  %v116 = vld [vmem:[%s3 + $0x4] sm:$0xf]
  %v117 = vld [vmem:[%s3 + $0x8] sm:$0xf]
  %v118 = vld [vmem:[%s3 + $0xc] sm:$0xf]
  %v119 = vld [vmem:[%s3 + $0x10] sm:$0xf]
  %v120 = vld [vmem:[%s3 + $0x14] sm:$0xf]
  %v121 = vld [vmem:[%s3 + $0x18] sm:$0xf]
  %v122 = vld [vmem:[%s3 + $0x1c] sm:$0xf]
  %v123 = vld [vmem:[%s3 + $0x20] sm:$0xf]
  %v124 = vld [vmem:[%s3 + $0x24] sm:$0xf]
  %v125 = vld [vmem:[%s3 + $0x28] sm:$0xf]
  %v126 = vld [vmem:[%s3 + $0x2c] sm:$0xf]
  %v127 = vld [vmem:[%s3 + $0x30] sm:$0xf]
  %v128 = vld [vmem:[%s3 + $0x34] sm:$0xf]
  %v129 = vld [vmem:[%s3 + $0x38] sm:$0xf]
  %v130 = vld [vmem:[%s3 + $0x3c] sm:$0xf]
  %v131 = vld [vmem:[%s4] sm:$0x1]
  %v133 = vperm.slane %v131, 0
  %v151 = vunpack.c.l.b16 %v115
  %v152 = vunpack.c.l.b16 %v116
  %v153 = vunpack.c.l.b16 %v117
  %v154 = vunpack.c.l.b16 %v118
  %v155 = vunpack.c.l.b16 %v119
  %v156 = vunpack.c.l.b16 %v120
  %v157 = vunpack.c.l.b16 %v121
  %v158 = vunpack.c.l.b16 %v122
  %v159 = vunpack.c.l.b16 %v123
  %v160 = vunpack.c.l.b16 %v124
  %v161 = vunpack.c.l.b16 %v125
  %v162 = vunpack.c.l.b16 %v126
  %v163 = vunpack.c.l.b16 %v127
  %v164 = vunpack.c.l.b16 %v128
  %v165 = vunpack.c.l.b16 %v129
  %v166 = vunpack.c.l.b16 %v130
  %v167 = vpack.c.b16 %v152, %v151
  %v168 = vpack.c.b16 %v154, %v153
  %v169 = vpack.c.b16 %v156, %v155
  %v170 = vpack.c.b16 %v158, %v157
  %v171 = vpack.c.b16 %v160, %v159
  %v172 = vpack.c.b16 %v162, %v161
  %v173 = vpack.c.b16 %v164, %v163
  %v174 = vpack.c.b16 %v166, %v165
  %183 = vmatpush.bf16.msra.mxu0 %v174
  %184 = vmatpush.bf16.msra.mxu0 %v173
  %185 = vmatpush.bf16.msra.mxu0 %v172
  %186 = vmatpush.bf16.msra.mxu0 %v171
  %187 = vmatpush.bf16.msra.mxu0 %v170
  %188 = vmatpush.bf16.msra.mxu0 %v169
  %189 = vmatpush.bf16.msra.mxu0 %v168
  %190 = vmatpush.bf16.msra.mxu0 %v167
  %191 = vmatmul.bf16.gmra.mxu0 %v111
  %v192 = vpop.f32.mrf.mxu0
  %v193 = vadd.f32 %v133, %v192
  %v194 = vpop.f32.mrf.mxu0
  %v195 = vadd.f32 %v133, %v194
  %196 = vmatmul.bf16.gmra.mxu0 %v112
  %v197 = vpop.f32.mrf.mxu0
  %v198 = vadd.f32 %v133, %v197
  %v199 = vpop.f32.mrf.mxu0
  %v200 = vadd.f32 %v133, %v199
  %201 = vmatmul.bf16.gmra.mxu0 %v113
  %v202 = vpop.f32.mrf.mxu0
  %v203 = vadd.f32 %v133, %v202
  %v204 = vpop.f32.mrf.mxu0
  %v205 = vadd.f32 %v133, %v204
  %206 = vmatmul.bf16.gmra.mxu0 %v114
  %v207 = vpop.f32.mrf.mxu0
  %v208 = vadd.f32 %v133, %v207
  %v209 = vpop.f32.mrf.mxu0
  %v210 = vadd.f32 %v133, %v209
  %211 = vdwg.mxu0
  %vm212 = vcmp.ge.f32.partialorder %v193, 0.0
  %vm213 = vcmp.ge.f32.partialorder %v195, 0.0
  %vm214 = vcmp.ge.f32.partialorder %v198, 0.0
  %vm215 = vcmp.ge.f32.partialorder %v200, 0.0
  %vm216 = vcmp.ge.f32.partialorder %v203, 0.0
  %vm217 = vcmp.ge.f32.partialorder %v205, 0.0
  %vm218 = vcmp.ge.f32.partialorder %v208, 0.0
  %vm219 = vcmp.ge.f32.partialorder %v210, 0.0
  %v220 = vmul.f32 %v193, 0.01
  %v221 = vmul.f32 %v195, 0.01
  %v222 = vmul.f32 %v198, 0.01
  %v223 = vmul.f32 %v200, 0.01
  %v224 = vmul.f32 %v203, 0.01
  %v225 = vmul.f32 %v205, 0.01
  %v226 = vmul.f32 %v208, 0.01
  %v227 = vmul.f32 %v210, 0.01
  %v228 = vsel %vm212, %v193, %v220
  %v229 = vsel %vm213, %v195, %v221
  %v230 = vsel %vm214, %v198, %v222
  %v231 = vsel %vm215, %v200, %v223
  %v232 = vsel %vm216, %v203, %v224
  %v233 = vsel %vm217, %v205, %v225
  %v234 = vsel %vm218, %v208, %v226
  %v235 = vsel %vm219, %v210, %v227
  %236 = vst [vmem:[%s5] sm:$0xff] %v228
  %237 = vst [vmem:[%s5 + $0x8] sm:$0xff] %v229
  %238 = vst [vmem:[%s5 + $0x10] sm:$0xff] %v230
  %239 = vst [vmem:[%s5 + $0x18] sm:$0xff] %v231
  %240 = vst [vmem:[%s5 + $0x20] sm:$0xff] %v232
  %241 = vst [vmem:[%s5 + $0x28] sm:$0xff] %v233
  %242 = vst [vmem:[%s5 + $0x30] sm:$0xff] %v234
  %243 = vst [vmem:[%s5 + $0x38] sm:$0xff] %v235
  // Predicated region
  $region22: #{mpnncnn_forward.3} parent=0 // pred_check
    _
  $region23: #{mpnncnn_forward.3} parent=0 // pred_check_branch
    %245 = sbr.rel (0) target = $region25
  $region24: #{mpnncnn_forward.3} parent=0 // pred_region
    _
  $region25: #{mpnncnn_forward.3} parent=0 // pred_fallthru
    _
  // Predicated region
  $region26: #{mpnncnn_forward.3} parent=0 // pred_check
    _
  $region27: #{mpnncnn_forward.3} parent=0 // pred_check_branch
    %247 = sbr.rel (0) target = $region29
  $region28: #{mpnncnn_forward.3} parent=0 // pred_region
    _
  $region29: #{mpnncnn_forward.3} parent=0 // pred_fallthru
    _

// kernel: mpnncnn_forward.5
$region0: #{mpnncnn_forward.5}
  #allocation0 [shape = 'u32[]', space=smem, size = 0x4, offset = 0x4, fixed_abs, tag = 'smem constant byte address 0x4 - core index']
  #allocation1 [shape = 'u32[72,128]{1,0:T(1,128)}', space=vmem, size = 0x9000, scoped, tag = 'internal scratch']
  %s0 = inlined_call_operand.vmem [shape: f32[64,128], index: 0, kind: input, shape index: {}]
  %s1 = inlined_call_operand.vmem [shape: bf16[64,64], index: 1, kind: input, shape index: {}]
  %s2 = inlined_call_operand.vmem [shape: bf16[64,64], index: 2, kind: input, shape index: {}]
  %s3 = inlined_call_operand.vmem [shape: bf16[128,128], index: 3, kind: input, shape index: {}]
  %s4 = inlined_call_operand.vmem [shape: f32[1,128], index: 4, kind: input, shape index: {}]
  %s5 = inlined_call_operand.vmem [shape: f32[1,128], index: 5, kind: input, shape index: {}]
  %s6 = inlined_call_operand.vmem [shape: bf16[128,128], index: 6, kind: input, shape index: {}]
  %s7 = inlined_call_operand.vmem [shape: f32[1,128], index: 7, kind: input, shape index: {}]
  %s8 = inlined_call_operand.vmem [shape: f32[1,128], index: 8, kind: input, shape index: {}]
  %s9 = inlined_call_operand.vmem [shape: bf16[128,64], index: 9, kind: input, shape index: {}]
  %s10 = inlined_call_operand.vmem [shape: f32[1,64], index: 10, kind: input, shape index: {}]
  %s11 = inlined_call_operand.vmem [shape: f32[1,64], index: 11, kind: input, shape index: {}]
  %s12 = inlined_call_operand.vmem [shape: bf16[64,6], index: 12, kind: input, shape index: {}]
  %s13 = inlined_call_operand.vmem [shape: bf16[64,6], index: 13, kind: input, shape index: {}]
  %s14 = inlined_call_operand.vmem [shape: f32[1,6], index: 14, kind: input, shape index: {}]
  %s15 = inlined_call_operand.vmem [shape: f32[64,6], index: 15, kind: output, shape index: {}]
  %s16 = sld [smem:[#allocation0]]
  $region70: #{mpnncnn_forward.5} parent=0
    _
  %s18 = ssub.s32 1, %s16
  %s19 = scalar_select 0, %s18, %s16
  // Predicated region
  $region2: #{mpnncnn_forward.5} parent=0 // pred_check
    _
  $region3: #{mpnncnn_forward.5} parent=0 // pred_check_branch
    %21 = sbr.rel (0) target = $region5
  $region4: #{mpnncnn_forward.5} parent=0 // pred_region
    _
  $region5: #{mpnncnn_forward.5} parent=0 // pred_fallthru
    _
  // Predicated region
  $region6: #{mpnncnn_forward.5} parent=0 // pred_check
    _
  $region7: #{mpnncnn_forward.5} parent=0 // pred_check_branch
    %23 = sbr.rel (0) target = $region9
  $region8: #{mpnncnn_forward.5} parent=0 // pred_region
    _
  $region9: #{mpnncnn_forward.5} parent=0 // pred_fallthru
    _
  // Predicated region
  $region10: #{mpnncnn_forward.5} parent=0 // pred_check
    _
  $region11: #{mpnncnn_forward.5} parent=0 // pred_check_branch
    %25 = sbr.rel (0) target = $region13
  $region12: #{mpnncnn_forward.5} parent=0 // pred_region
    _
  $region13: #{mpnncnn_forward.5} parent=0 // pred_fallthru
    _
  // Predicated region
  $region14: #{mpnncnn_forward.5} parent=0 // pred_check
    _
  $region15: #{mpnncnn_forward.5} parent=0 // pred_check_branch
    %27 = sbr.rel (0) target = $region17
  $region16: #{mpnncnn_forward.5} parent=0 // pred_region
    _
  $region17: #{mpnncnn_forward.5} parent=0 // pred_fallthru
    _
  // Predicated region
  $region18: #{mpnncnn_forward.5} parent=0 // pred_check
    _
  $region19: #{mpnncnn_forward.5} parent=0 // pred_check_branch
    %29 = sbr.rel (0) target = $region21
  $region20: #{mpnncnn_forward.5} parent=0 // pred_region
    _
  $region21: #{mpnncnn_forward.5} parent=0 // pred_fallthru
    _
  // Predicated region
  $region22: #{mpnncnn_forward.5} parent=0 // pred_check
    _
  $region23: #{mpnncnn_forward.5} parent=0 // pred_check_branch
    %31 = sbr.rel (0) target = $region25
  $region24: #{mpnncnn_forward.5} parent=0 // pred_region
    _
  $region25: #{mpnncnn_forward.5} parent=0 // pred_fallthru
    _
  // Predicated region
  $region26: #{mpnncnn_forward.5} parent=0 // pred_check
    _
  $region27: #{mpnncnn_forward.5} parent=0 // pred_check_branch
    %33 = sbr.rel (0) target = $region29
  $region28: #{mpnncnn_forward.5} parent=0 // pred_region
    _
  $region29: #{mpnncnn_forward.5} parent=0 // pred_fallthru
    _
  // Predicated region
  $region30: #{mpnncnn_forward.5} parent=0 // pred_check
    _
  $region31: #{mpnncnn_forward.5} parent=0 // pred_check_branch
    %35 = sbr.rel (0) target = $region33
  $region32: #{mpnncnn_forward.5} parent=0 // pred_region
    _
  $region33: #{mpnncnn_forward.5} parent=0 // pred_fallthru
    _
  // Predicated region
  $region34: #{mpnncnn_forward.5} parent=0 // pred_check
    _
  $region35: #{mpnncnn_forward.5} parent=0 // pred_check_branch
    %37 = sbr.rel (0) target = $region37
  $region36: #{mpnncnn_forward.5} parent=0 // pred_region
    _
  $region37: #{mpnncnn_forward.5} parent=0 // pred_fallthru
    _
  // Predicated region
  $region38: #{mpnncnn_forward.5} parent=0 // pred_check
    _
  $region39: #{mpnncnn_forward.5} parent=0 // pred_check_branch
    %39 = sbr.rel (0) target = $region41
  $region40: #{mpnncnn_forward.5} parent=0 // pred_region
    _
  $region41: #{mpnncnn_forward.5} parent=0 // pred_fallthru
    _
  // Predicated region
  $region42: #{mpnncnn_forward.5} parent=0 // pred_check
    _
  $region43: #{mpnncnn_forward.5} parent=0 // pred_check_branch
    %41 = sbr.rel (0) target = $region45
  $region44: #{mpnncnn_forward.5} parent=0 // pred_region
    _
  $region45: #{mpnncnn_forward.5} parent=0 // pred_fallthru
    _
  // Predicated region
  $region46: #{mpnncnn_forward.5} parent=0 // pred_check
    _
  $region47: #{mpnncnn_forward.5} parent=0 // pred_check_branch
    %43 = sbr.rel (0) target = $region49
  $region48: #{mpnncnn_forward.5} parent=0 // pred_region
    _
  $region49: #{mpnncnn_forward.5} parent=0 // pred_fallthru
    _
  // Predicated region
  $region50: #{mpnncnn_forward.5} parent=0 // pred_check
    _
  $region51: #{mpnncnn_forward.5} parent=0 // pred_check_branch
    %45 = sbr.rel (0) target = $region53
  $region52: #{mpnncnn_forward.5} parent=0 // pred_region
    _
  $region53: #{mpnncnn_forward.5} parent=0 // pred_fallthru
    _
  // Predicated region
  $region54: #{mpnncnn_forward.5} parent=0 // pred_check
    _
  $region55: #{mpnncnn_forward.5} parent=0 // pred_check_branch
    %47 = sbr.rel (0) target = $region57
  $region56: #{mpnncnn_forward.5} parent=0 // pred_region
    _
  $region57: #{mpnncnn_forward.5} parent=0 // pred_fallthru
    _
  // Predicated region
  $region58: #{mpnncnn_forward.5} parent=0 // pred_check
    _
  $region59: #{mpnncnn_forward.5} parent=0 // pred_check_branch
    %49 = sbr.rel (0) target = $region61
  $region60: #{mpnncnn_forward.5} parent=0 // pred_region
    _
  $region61: #{mpnncnn_forward.5} parent=0 // pred_fallthru
    _
  %v51 = vld [vmem:[%s1] sm:$0xf]
  %v52 = vld [vmem:[%s1 + $0x4] sm:$0xf]
  %v53 = vld [vmem:[%s1 + $0x8] sm:$0xf]
  %v54 = vld [vmem:[%s1 + $0xc] sm:$0xf]
  %v55 = vld [vmem:[%s1 + $0x10] sm:$0xf]
  %v56 = vld [vmem:[%s1 + $0x14] sm:$0xf]
  %v57 = vld [vmem:[%s1 + $0x18] sm:$0xf]
  %v58 = vld [vmem:[%s1 + $0x1c] sm:$0xf]
  %v59 = vld [vmem:[%s0] sm:$0xff]
  %v60 = vld [vmem:[%s0 + $0x8] sm:$0xff]
  %v61 = vld [vmem:[%s0 + $0x10] sm:$0xff]
  %v62 = vld [vmem:[%s0 + $0x18] sm:$0xff]
  %v63 = vld [vmem:[%s0 + $0x20] sm:$0xff]
  %v64 = vld [vmem:[%s0 + $0x28] sm:$0xff]
  %v65 = vld [vmem:[%s0 + $0x30] sm:$0xff]
  %v66 = vld [vmem:[%s0 + $0x38] sm:$0xff]
  %v67 = vmul.f32 %v59, %v59
  %v68 = vmul.f32 %v60, %v60
  %v69 = vmul.f32 %v61, %v61
  %v70 = vmul.f32 %v62, %v62
  %v71 = vmul.f32 %v63, %v63
  %v72 = vmul.f32 %v64, %v64
  %v73 = vmul.f32 %v65, %v65
  %v74 = vmul.f32 %v66, %v66
  %75 = vadd.xlane.f32.xlu0 %v67
  %v76 = vpop.xlane.xlu0 %75
  %77 = vadd.xlane.f32.xlu0 %v68
  %v78 = vpop.xlane.xlu0 %77
  %79 = vadd.xlane.f32.xlu0 %v69
  %v80 = vpop.xlane.xlu0 %79
  %81 = vadd.xlane.f32.xlu0 %v70
  %v82 = vpop.xlane.xlu0 %81
  %83 = vadd.xlane.f32.xlu0 %v71
  %v84 = vpop.xlane.xlu0 %83
  %85 = vadd.xlane.f32.xlu0 %v72
  %v86 = vpop.xlane.xlu0 %85
  %87 = vadd.xlane.f32.xlu0 %v73
  %v88 = vpop.xlane.xlu0 %87
  %89 = vadd.xlane.f32.xlu0 %v74
  %v90 = vpop.xlane.xlu0 %89
  %v91 = vmax.f32 %v76, 1e-24
  %v92 = vmax.f32 %v78, 1e-24
  %v93 = vmax.f32 %v80, 1e-24
  %v94 = vmax.f32 %v82, 1e-24
  %v95 = vmax.f32 %v84, 1e-24
  %v96 = vmax.f32 %v86, 1e-24
  %v97 = vmax.f32 %v88, 1e-24
  %v98 = vmax.f32 %v90, 1e-24
  %v99 = vrsqrt.pop %v91
  %v100 = vmul.f32 %v99, %v91
  %v101 = vmul.f32 %v100, %v99
  %v102 = vmul.f32 0.5, %v101
  %v103 = vsub.f32 1.5, %v102
  %v104 = vmul.f32 %v99, %v103
  %vm105 = vweird.f32 %v91
  %vm106 = vweird.f32 %v99
  %vm107 = vmor %vm105, %vm106
  %v108 = vsel %vm107, %v99, %v104
  %v109 = vrsqrt.pop %v92
  %v110 = vmul.f32 %v109, %v92
  %v111 = vmul.f32 %v110, %v109
  %v112 = vmul.f32 0.5, %v111
  %v113 = vsub.f32 1.5, %v112
  %v114 = vmul.f32 %v109, %v113
  %vm115 = vweird.f32 %v92
  %vm116 = vweird.f32 %v109
  %vm117 = vmor %vm115, %vm116
  %v118 = vsel %vm117, %v109, %v114
  %v119 = vrsqrt.pop %v93
  %v120 = vmul.f32 %v119, %v93
  %v121 = vmul.f32 %v120, %v119
  %v122 = vmul.f32 0.5, %v121
  %v123 = vsub.f32 1.5, %v122
  %v124 = vmul.f32 %v119, %v123
  %vm125 = vweird.f32 %v93
  %vm126 = vweird.f32 %v119
  %vm127 = vmor %vm125, %vm126
  %v128 = vsel %vm127, %v119, %v124
  %v129 = vrsqrt.pop %v94
  %v130 = vmul.f32 %v129, %v94
  %v131 = vmul.f32 %v130, %v129
  %v132 = vmul.f32 0.5, %v131
  %v133 = vsub.f32 1.5, %v132
  %v134 = vmul.f32 %v129, %v133
  %vm135 = vweird.f32 %v94
  %vm136 = vweird.f32 %v129
  %vm137 = vmor %vm135, %vm136
  %v138 = vsel %vm137, %v129, %v134
  %v139 = vrsqrt.pop %v95
  %v140 = vmul.f32 %v139, %v95
  %v141 = vmul.f32 %v140, %v139
  %v142 = vmul.f32 0.5, %v141
  %v143 = vsub.f32 1.5, %v142
  %v144 = vmul.f32 %v139, %v143
  %vm145 = vweird.f32 %v95
  %vm146 = vweird.f32 %v139
  %vm147 = vmor %vm145, %vm146
  %v148 = vsel %vm147, %v139, %v144
  %v149 = vrsqrt.pop %v96
  %v150 = vmul.f32 %v149, %v96
  %v151 = vmul.f32 %v150, %v149
  %v152 = vmul.f32 0.5, %v151
  %v153 = vsub.f32 1.5, %v152
  %v154 = vmul.f32 %v149, %v153
  %vm155 = vweird.f32 %v96
  %vm156 = vweird.f32 %v149
  %vm157 = vmor %vm155, %vm156
  %v158 = vsel %vm157, %v149, %v154
  %v159 = vrsqrt.pop %v97
  %v160 = vmul.f32 %v159, %v97
  %v161 = vmul.f32 %v160, %v159
  %v162 = vmul.f32 0.5, %v161
  %v163 = vsub.f32 1.5, %v162
  %v164 = vmul.f32 %v159, %v163
  %vm165 = vweird.f32 %v97
  %vm166 = vweird.f32 %v159
  %vm167 = vmor %vm165, %vm166
  %v168 = vsel %vm167, %v159, %v164
  %v169 = vrsqrt.pop %v98
  %v170 = vmul.f32 %v169, %v98
  %v171 = vmul.f32 %v170, %v169
  %v172 = vmul.f32 0.5, %v171
  %v173 = vsub.f32 1.5, %v172
  %v174 = vmul.f32 %v169, %v173
  %vm175 = vweird.f32 %v98
  %vm176 = vweird.f32 %v169
  %vm177 = vmor %vm175, %vm176
  %v178 = vsel %vm177, %v169, %v174
  %v179 = vmul.f32 %v59, %v108
  %v180 = vmul.f32 %v60, %v118
  %v181 = vmul.f32 %v61, %v128
  %v182 = vmul.f32 %v62, %v138
  %v183 = vmul.f32 %v63, %v148
  %v184 = vmul.f32 %v64, %v158
  %v185 = vmul.f32 %v65, %v168
  %v186 = vmul.f32 %v66, %v178
  %v187 = vpack.c.bf16 %v180, %v179
  %v188 = vpack.c.bf16 %v182, %v181
  %v189 = vpack.c.bf16 %v184, %v183
  %v190 = vpack.c.bf16 %v186, %v185
  %v191 = vld [vmem:[%s3] sm:$0xf]
  %v192 = vld [vmem:[%s3 + $0x4] sm:$0xf]
  %v193 = vld [vmem:[%s3 + $0x8] sm:$0xf]
  %v194 = vld [vmem:[%s3 + $0xc] sm:$0xf]
  %v195 = vld [vmem:[%s3 + $0x10] sm:$0xf]
  %v196 = vld [vmem:[%s3 + $0x14] sm:$0xf]
  %v197 = vld [vmem:[%s3 + $0x18] sm:$0xf]
  %v198 = vld [vmem:[%s3 + $0x1c] sm:$0xf]
  %v199 = vld [vmem:[%s3 + $0x20] sm:$0xf]
  %v200 = vld [vmem:[%s3 + $0x24] sm:$0xf]
  %v201 = vld [vmem:[%s3 + $0x28] sm:$0xf]
  %v202 = vld [vmem:[%s3 + $0x2c] sm:$0xf]
  %v203 = vld [vmem:[%s3 + $0x30] sm:$0xf]
  %v204 = vld [vmem:[%s3 + $0x34] sm:$0xf]
  %v205 = vld [vmem:[%s3 + $0x38] sm:$0xf]
  %v206 = vld [vmem:[%s3 + $0x3c] sm:$0xf]
  %v207 = vld [vmem:[%s4] sm:$0x1]
  %v209 = vperm.slane %v207, 0
  %v227 = vunpack.c.l.b16 %v191
  %v228 = vunpack.c.l.b16 %v192
  %v229 = vunpack.c.l.b16 %v193
  %v230 = vunpack.c.l.b16 %v194
  %v231 = vunpack.c.l.b16 %v195
  %v232 = vunpack.c.l.b16 %v196
  %v233 = vunpack.c.l.b16 %v197
  %v234 = vunpack.c.l.b16 %v198
  %v235 = vunpack.c.l.b16 %v199
  %v236 = vunpack.c.l.b16 %v200
  %v237 = vunpack.c.l.b16 %v201
  %v238 = vunpack.c.l.b16 %v202
  %v239 = vunpack.c.l.b16 %v203
  %v240 = vunpack.c.l.b16 %v204
  %v241 = vunpack.c.l.b16 %v205
  %v242 = vunpack.c.l.b16 %v206
  %v243 = vpack.c.b16 %v228, %v227
  %v244 = vpack.c.b16 %v230, %v229
  %v245 = vpack.c.b16 %v232, %v231
  %v246 = vpack.c.b16 %v234, %v233
  %v247 = vpack.c.b16 %v236, %v235
  %v248 = vpack.c.b16 %v238, %v237
  %v249 = vpack.c.b16 %v240, %v239
  %v250 = vpack.c.b16 %v242, %v241
  %259 = vmatpush.bf16.msra.mxu0 %v250
  %260 = vmatpush.bf16.msra.mxu0 %v249
  %261 = vmatpush.bf16.msra.mxu0 %v248
  %262 = vmatpush.bf16.msra.mxu0 %v247
  %263 = vmatpush.bf16.msra.mxu0 %v246
  %264 = vmatpush.bf16.msra.mxu0 %v245
  %265 = vmatpush.bf16.msra.mxu0 %v244
  %266 = vmatpush.bf16.msra.mxu0 %v243
  %267 = vmatmul.bf16.gmra.mxu0 %v187
  %v268 = vpop.f32.mrf.mxu0
  %v269 = vadd.f32 %v209, %v268
  %v270 = vpop.f32.mrf.mxu0
  %v271 = vadd.f32 %v209, %v270
  %272 = vmatmul.bf16.gmra.mxu0 %v188
  %v273 = vpop.f32.mrf.mxu0
  %v274 = vadd.f32 %v209, %v273
  %v275 = vpop.f32.mrf.mxu0
  %v276 = vadd.f32 %v209, %v275
  %277 = vmatmul.bf16.gmra.mxu0 %v189
  %v278 = vpop.f32.mrf.mxu0
  %v279 = vadd.f32 %v209, %v278
  %v280 = vpop.f32.mrf.mxu0
  %v281 = vadd.f32 %v209, %v280
  %282 = vmatmul.bf16.gmra.mxu0 %v190
  %v283 = vpop.f32.mrf.mxu0
  %v284 = vadd.f32 %v209, %v283
  %v285 = vpop.f32.mrf.mxu0
  %v286 = vadd.f32 %v209, %v285
  %287 = vdwg.mxu0
  %v288 = vpack.c.bf16 %v271, %v269
  %v289 = vpack.c.bf16 %v276, %v274
  %v290 = vpack.c.bf16 %v281, %v279
  %v291 = vpack.c.bf16 %v286, %v284
  %v292 = vld [vmem:[%s5] sm:$0x1]
  %v294 = vperm.slane %v292, 0
  %v304 = vunpack.c.l.b16 %v51
  %v305 = vunpack.c.l.b16 %v52
  %v306 = vunpack.c.l.b16 %v53
  %v307 = vunpack.c.l.b16 %v54
  %v308 = vunpack.c.l.b16 %v55
  %v309 = vunpack.c.l.b16 %v56
  %v310 = vunpack.c.l.b16 %v57
  %v311 = vunpack.c.l.b16 %v58
  %v312 = vpack.c.b16 %v305, %v304
  %v313 = vpack.c.b16 %v307, %v306
  %v314 = vpack.c.b16 %v309, %v308
  %v315 = vpack.c.b16 %v311, %v310
  %vm316 = vcmask 523264
  %v318 = vsel %vm316, %v312, 0
  %v321 = vsel %vm316, %v313, 0
  %v324 = vsel %vm316, %v314, 0
  %v327 = vsel %vm316, %v315, 0
  %329 = vmatpush.bf16.msra.mxu0 0
  %330 = vmatpush.bf16.msra.mxu0 0
  %331 = vmatpush.bf16.msra.mxu0 0
  %332 = vmatpush.bf16.msra.mxu0 0
  %333 = vmatpush.bf16.msra.mxu0 %v291
  %334 = vmatpush.bf16.msra.mxu0 %v290
  %335 = vmatpush.bf16.msra.mxu0 %v289
  %336 = vmatpush.bf16.msra.mxu0 %v288
  %337 = vmatmul.bf16.gmra.mxu0 %v318
  %v338 = vpop.f32.mrf.mxu0
  %v339 = vadd.f32 %v294, %v338
  %v340 = vpop.f32.mrf.mxu0
  %v341 = vadd.f32 %v294, %v340
  %342 = vmatmul.bf16.gmra.mxu0 %v321
  %v343 = vpop.f32.mrf.mxu0
  %v344 = vadd.f32 %v294, %v343
  %v345 = vpop.f32.mrf.mxu0
  %v346 = vadd.f32 %v294, %v345
  %347 = vmatmul.bf16.gmra.mxu0 %v324
  %v348 = vpop.f32.mrf.mxu0
  %v349 = vadd.f32 %v294, %v348
  %v350 = vpop.f32.mrf.mxu0
  %v351 = vadd.f32 %v294, %v350
  %352 = vmatmul.bf16.gmra.mxu0 %v327
  %v353 = vpop.f32.mrf.mxu0
  %v354 = vadd.f32 %v294, %v353
  %v355 = vpop.f32.mrf.mxu0
  %v356 = vadd.f32 %v294, %v355
  %357 = vdwg.mxu0
  %vm358 = vcmp.ge.f32.partialorder %v339, 0.0
  %vm359 = vcmp.ge.f32.partialorder %v341, 0.0
  %vm360 = vcmp.ge.f32.partialorder %v344, 0.0
  %vm361 = vcmp.ge.f32.partialorder %v346, 0.0
  %vm362 = vcmp.ge.f32.partialorder %v349, 0.0
  %vm363 = vcmp.ge.f32.partialorder %v351, 0.0
  %vm364 = vcmp.ge.f32.partialorder %v354, 0.0
  %vm365 = vcmp.ge.f32.partialorder %v356, 0.0
  %v366 = vmul.f32 %v339, 0.01
  %v367 = vmul.f32 %v341, 0.01
  %v368 = vmul.f32 %v344, 0.01
  %v369 = vmul.f32 %v346, 0.01
  %v370 = vmul.f32 %v349, 0.01
  %v371 = vmul.f32 %v351, 0.01
  %v372 = vmul.f32 %v354, 0.01
  %v373 = vmul.f32 %v356, 0.01
  %v374 = vsel %vm358, %v339, %v366
  %v375 = vsel %vm359, %v341, %v367
  %v376 = vsel %vm360, %v344, %v368
  %v377 = vsel %vm361, %v346, %v369
  %v378 = vsel %vm362, %v349, %v370
  %v379 = vsel %vm363, %v351, %v371
  %v380 = vsel %vm364, %v354, %v372
  %v381 = vsel %vm365, %v356, %v373
  %v382 = vmul.f32 %v374, %v374
  %v383 = vmul.f32 %v375, %v375
  %v384 = vmul.f32 %v376, %v376
  %v385 = vmul.f32 %v377, %v377
  %v386 = vmul.f32 %v378, %v378
  %v387 = vmul.f32 %v379, %v379
  %v388 = vmul.f32 %v380, %v380
  %v389 = vmul.f32 %v381, %v381
  %390 = vadd.xlane.f32.xlu0 %v382
  %v391 = vpop.xlane.xlu0 %390
  %392 = vadd.xlane.f32.xlu0 %v383
  %v393 = vpop.xlane.xlu0 %392
  %394 = vadd.xlane.f32.xlu0 %v384
  %v395 = vpop.xlane.xlu0 %394
  %396 = vadd.xlane.f32.xlu0 %v385
  %v397 = vpop.xlane.xlu0 %396
  %398 = vadd.xlane.f32.xlu0 %v386
  %v399 = vpop.xlane.xlu0 %398
  %400 = vadd.xlane.f32.xlu0 %v387
  %v401 = vpop.xlane.xlu0 %400
  %402 = vadd.xlane.f32.xlu0 %v388
  %v403 = vpop.xlane.xlu0 %402
  %404 = vadd.xlane.f32.xlu0 %v389
  %v405 = vpop.xlane.xlu0 %404
  %v406 = vmax.f32 %v391, 1e-24
  %v407 = vmax.f32 %v393, 1e-24
  %v408 = vmax.f32 %v395, 1e-24
  %v409 = vmax.f32 %v397, 1e-24
  %v410 = vmax.f32 %v399, 1e-24
  %v411 = vmax.f32 %v401, 1e-24
  %v412 = vmax.f32 %v403, 1e-24
  %v413 = vmax.f32 %v405, 1e-24
  %v414 = vrsqrt.pop %v406
  %v415 = vmul.f32 %v414, %v406
  %v416 = vmul.f32 %v415, %v414
  %v417 = vmul.f32 0.5, %v416
  %v418 = vsub.f32 1.5, %v417
  %v419 = vmul.f32 %v414, %v418
  %vm420 = vweird.f32 %v406
  %vm421 = vweird.f32 %v414
  %vm422 = vmor %vm420, %vm421
  %v423 = vsel %vm422, %v414, %v419
  %v424 = vrsqrt.pop %v407
  %v425 = vmul.f32 %v424, %v407
  %v426 = vmul.f32 %v425, %v424
  %v427 = vmul.f32 0.5, %v426
  %v428 = vsub.f32 1.5, %v427
  %v429 = vmul.f32 %v424, %v428
  %vm430 = vweird.f32 %v407
  %vm431 = vweird.f32 %v424
  %vm432 = vmor %vm430, %vm431
  %v433 = vsel %vm432, %v424, %v429
  %v434 = vrsqrt.pop %v408
  %v435 = vmul.f32 %v434, %v408
  %v436 = vmul.f32 %v435, %v434
  %v437 = vmul.f32 0.5, %v436
  %v438 = vsub.f32 1.5, %v437
  %v439 = vmul.f32 %v434, %v438
  %vm440 = vweird.f32 %v408
  %vm441 = vweird.f32 %v434
  %vm442 = vmor %vm440, %vm441
  %v443 = vsel %vm442, %v434, %v439
  %v444 = vrsqrt.pop %v409
  %v445 = vmul.f32 %v444, %v409
  %v446 = vmul.f32 %v445, %v444
  %v447 = vmul.f32 0.5, %v446
  %v448 = vsub.f32 1.5, %v447
  %v449 = vmul.f32 %v444, %v448
  %vm450 = vweird.f32 %v409
  %vm451 = vweird.f32 %v444
  %vm452 = vmor %vm450, %vm451
  %v453 = vsel %vm452, %v444, %v449
  %v454 = vrsqrt.pop %v410
  %v455 = vmul.f32 %v454, %v410
  %v456 = vmul.f32 %v455, %v454
  %v457 = vmul.f32 0.5, %v456
  %v458 = vsub.f32 1.5, %v457
  %v459 = vmul.f32 %v454, %v458
  %vm460 = vweird.f32 %v410
  %vm461 = vweird.f32 %v454
  %vm462 = vmor %vm460, %vm461
  %v463 = vsel %vm462, %v454, %v459
  %v464 = vrsqrt.pop %v411
  %v465 = vmul.f32 %v464, %v411
  %v466 = vmul.f32 %v465, %v464
  %v467 = vmul.f32 0.5, %v466
  %v468 = vsub.f32 1.5, %v467
  %v469 = vmul.f32 %v464, %v468
  %vm470 = vweird.f32 %v411
  %vm471 = vweird.f32 %v464
  %vm472 = vmor %vm470, %vm471
  %v473 = vsel %vm472, %v464, %v469
  %v474 = vrsqrt.pop %v412
  %v475 = vmul.f32 %v474, %v412
  %v476 = vmul.f32 %v475, %v474
  %v477 = vmul.f32 0.5, %v476
  %v478 = vsub.f32 1.5, %v477
  %v479 = vmul.f32 %v474, %v478
  %vm480 = vweird.f32 %v412
  %vm481 = vweird.f32 %v474
  %vm482 = vmor %vm480, %vm481
  %v483 = vsel %vm482, %v474, %v479
  %v484 = vrsqrt.pop %v413
  %v485 = vmul.f32 %v484, %v413
  %v486 = vmul.f32 %v485, %v484
  %v487 = vmul.f32 0.5, %v486
  %v488 = vsub.f32 1.5, %v487
  %v489 = vmul.f32 %v484, %v488
  %vm490 = vweird.f32 %v413
  %vm491 = vweird.f32 %v484
  %vm492 = vmor %vm490, %vm491
  %v493 = vsel %vm492, %v484, %v489
  %v494 = vmul.f32 %v374, %v423
  %v495 = vmul.f32 %v375, %v433
  %v496 = vmul.f32 %v376, %v443
  %v497 = vmul.f32 %v377, %v453
  %v498 = vmul.f32 %v378, %v463
  %v499 = vmul.f32 %v379, %v473
  %v500 = vmul.f32 %v380, %v483
  %v501 = vmul.f32 %v381, %v493
  %v502 = vpack.c.bf16 %v495, %v494
  %v503 = vpack.c.bf16 %v497, %v496
  %v504 = vpack.c.bf16 %v499, %v498
  %v505 = vpack.c.bf16 %v501, %v500
  %v506 = vld [vmem:[%s6] sm:$0xf]
  %v507 = vld [vmem:[%s6 + $0x4] sm:$0xf]
  %v508 = vld [vmem:[%s6 + $0x8] sm:$0xf]
  %v509 = vld [vmem:[%s6 + $0xc] sm:$0xf]
  %v510 = vld [vmem:[%s6 + $0x10] sm:$0xf]
  %v511 = vld [vmem:[%s6 + $0x14] sm:$0xf]
  %v512 = vld [vmem:[%s6 + $0x18] sm:$0xf]
  %v513 = vld [vmem:[%s6 + $0x1c] sm:$0xf]
  %v514 = vld [vmem:[%s6 + $0x20] sm:$0xf]
  %v515 = vld [vmem:[%s6 + $0x24] sm:$0xf]
  %v516 = vld [vmem:[%s6 + $0x28] sm:$0xf]
  %v517 = vld [vmem:[%s6 + $0x2c] sm:$0xf]
  %v518 = vld [vmem:[%s6 + $0x30] sm:$0xf]
  %v519 = vld [vmem:[%s6 + $0x34] sm:$0xf]
  %v520 = vld [vmem:[%s6 + $0x38] sm:$0xf]
  %v521 = vld [vmem:[%s6 + $0x3c] sm:$0xf]
  %v522 = vld [vmem:[%s7] sm:$0x1]
  %v524 = vperm.slane %v522, 0
  %v542 = vunpack.c.l.b16 %v506
  %v543 = vunpack.c.l.b16 %v507
  %v544 = vunpack.c.l.b16 %v508
  %v545 = vunpack.c.l.b16 %v509
  %v546 = vunpack.c.l.b16 %v510
  %v547 = vunpack.c.l.b16 %v511
  %v548 = vunpack.c.l.b16 %v512
  %v549 = vunpack.c.l.b16 %v513
  %v550 = vunpack.c.l.b16 %v514
  %v551 = vunpack.c.l.b16 %v515
  %v552 = vunpack.c.l.b16 %v516
  %v553 = vunpack.c.l.b16 %v517
  %v554 = vunpack.c.l.b16 %v518
  %v555 = vunpack.c.l.b16 %v519
  %v556 = vunpack.c.l.b16 %v520
  %v557 = vunpack.c.l.b16 %v521
  %v558 = vpack.c.b16 %v543, %v542
  %v559 = vpack.c.b16 %v545, %v544
  %v560 = vpack.c.b16 %v547, %v546
  %v561 = vpack.c.b16 %v549, %v548
  %v562 = vpack.c.b16 %v551, %v550
  %v563 = vpack.c.b16 %v553, %v552
  %v564 = vpack.c.b16 %v555, %v554
  %v565 = vpack.c.b16 %v557, %v556
  %574 = vmatpush.bf16.msra.mxu0 %v565
  %575 = vmatpush.bf16.msra.mxu0 %v564
  %576 = vmatpush.bf16.msra.mxu0 %v563
  %577 = vmatpush.bf16.msra.mxu0 %v562
  %578 = vmatpush.bf16.msra.mxu0 %v561
  %579 = vmatpush.bf16.msra.mxu0 %v560
  %580 = vmatpush.bf16.msra.mxu0 %v559
  %581 = vmatpush.bf16.msra.mxu0 %v558
  %582 = vmatmul.bf16.gmra.mxu0 %v502
  %v583 = vpop.f32.mrf.mxu0
  %v584 = vadd.f32 %v524, %v583
  %v585 = vpop.f32.mrf.mxu0
  %v586 = vadd.f32 %v524, %v585
  %587 = vmatmul.bf16.gmra.mxu0 %v503
  %v588 = vpop.f32.mrf.mxu0
  %v589 = vadd.f32 %v524, %v588
  %v590 = vpop.f32.mrf.mxu0
  %v591 = vadd.f32 %v524, %v590
  %592 = vmatmul.bf16.gmra.mxu0 %v504
  %v593 = vpop.f32.mrf.mxu0
  %v594 = vadd.f32 %v524, %v593
  %v595 = vpop.f32.mrf.mxu0
  %v596 = vadd.f32 %v524, %v595
  %597 = vmatmul.bf16.gmra.mxu0 %v505
  %v598 = vpop.f32.mrf.mxu0
  %v599 = vadd.f32 %v524, %v598
  %v600 = vpop.f32.mrf.mxu0
  %v601 = vadd.f32 %v524, %v600
  %602 = vdwg.mxu0
  %v603 = vpack.c.bf16 %v586, %v584
  %v604 = vpack.c.bf16 %v591, %v589
  %v605 = vpack.c.bf16 %v596, %v594
  %v606 = vpack.c.bf16 %v601, %v599
  %v607 = vld [vmem:[%s8] sm:$0x1]
  %v609 = vperm.slane %v607, 0
  %611 = vmatpush.bf16.msra.mxu0 0
  %612 = vmatpush.bf16.msra.mxu0 0
  %613 = vmatpush.bf16.msra.mxu0 0
  %614 = vmatpush.bf16.msra.mxu0 0
  %615 = vmatpush.bf16.msra.mxu0 %v606
  %616 = vmatpush.bf16.msra.mxu0 %v605
  %617 = vmatpush.bf16.msra.mxu0 %v604
  %618 = vmatpush.bf16.msra.mxu0 %v603
  %619 = vmatmul.bf16.gmra.mxu0 %v318
  %v620 = vpop.f32.mrf.mxu0
  %v621 = vadd.f32 %v609, %v620
  %v622 = vpop.f32.mrf.mxu0
  %v623 = vadd.f32 %v609, %v622
  %624 = vmatmul.bf16.gmra.mxu0 %v321
  %v625 = vpop.f32.mrf.mxu0
  %v626 = vadd.f32 %v609, %v625
  %v627 = vpop.f32.mrf.mxu0
  %v628 = vadd.f32 %v609, %v627
  %629 = vmatmul.bf16.gmra.mxu0 %v324
  %v630 = vpop.f32.mrf.mxu0
  %v631 = vadd.f32 %v609, %v630
  %v632 = vpop.f32.mrf.mxu0
  %v633 = vadd.f32 %v609, %v632
  %634 = vmatmul.bf16.gmra.mxu0 %v327
  %v635 = vpop.f32.mrf.mxu0
  %v636 = vadd.f32 %v609, %v635
  %v637 = vpop.f32.mrf.mxu0
  %v638 = vadd.f32 %v609, %v637
  %639 = vdwg.mxu0
  %vm640 = vcmp.ge.f32.partialorder %v621, 0.0
  %vm641 = vcmp.ge.f32.partialorder %v623, 0.0
  %vm642 = vcmp.ge.f32.partialorder %v626, 0.0
  %vm643 = vcmp.ge.f32.partialorder %v628, 0.0
  %vm644 = vcmp.ge.f32.partialorder %v631, 0.0
  %vm645 = vcmp.ge.f32.partialorder %v633, 0.0
  %vm646 = vcmp.ge.f32.partialorder %v636, 0.0
  %vm647 = vcmp.ge.f32.partialorder %v638, 0.0
  %v648 = vmul.f32 %v621, 0.01
  %v649 = vmul.f32 %v623, 0.01
  %v650 = vmul.f32 %v626, 0.01
  %v651 = vmul.f32 %v628, 0.01
  %v652 = vmul.f32 %v631, 0.01
  %v653 = vmul.f32 %v633, 0.01
  %v654 = vmul.f32 %v636, 0.01
  %v655 = vmul.f32 %v638, 0.01
  %v656 = vsel %vm640, %v621, %v648
  %v657 = vsel %vm641, %v623, %v649
  %v658 = vsel %vm642, %v626, %v650
  %v659 = vsel %vm643, %v628, %v651
  %v660 = vsel %vm644, %v631, %v652
  %v661 = vsel %vm645, %v633, %v653
  %v662 = vsel %vm646, %v636, %v654
  %v663 = vsel %vm647, %v638, %v655
  %v664 = vmul.f32 %v656, %v656
  %v665 = vmul.f32 %v657, %v657
  %v666 = vmul.f32 %v658, %v658
  %v667 = vmul.f32 %v659, %v659
  %v668 = vmul.f32 %v660, %v660
  %v669 = vmul.f32 %v661, %v661
  %v670 = vmul.f32 %v662, %v662
  %v671 = vmul.f32 %v663, %v663
  %672 = vadd.xlane.f32.xlu0 %v664
  %v673 = vpop.xlane.xlu0 %672
  %674 = vadd.xlane.f32.xlu0 %v665
  %v675 = vpop.xlane.xlu0 %674
  %676 = vadd.xlane.f32.xlu0 %v666
  %v677 = vpop.xlane.xlu0 %676
  %678 = vadd.xlane.f32.xlu0 %v667
  %v679 = vpop.xlane.xlu0 %678
  %680 = vadd.xlane.f32.xlu0 %v668
  %v681 = vpop.xlane.xlu0 %680
  %682 = vadd.xlane.f32.xlu0 %v669
  %v683 = vpop.xlane.xlu0 %682
  %684 = vadd.xlane.f32.xlu0 %v670
  %v685 = vpop.xlane.xlu0 %684
  %686 = vadd.xlane.f32.xlu0 %v671
  %v687 = vpop.xlane.xlu0 %686
  %v688 = vmax.f32 %v673, 1e-24
  %v689 = vmax.f32 %v675, 1e-24
  %v690 = vmax.f32 %v677, 1e-24
  %v691 = vmax.f32 %v679, 1e-24
  %v692 = vmax.f32 %v681, 1e-24
  %v693 = vmax.f32 %v683, 1e-24
  %v694 = vmax.f32 %v685, 1e-24
  %v695 = vmax.f32 %v687, 1e-24
  %v696 = vrsqrt.pop %v688
  %v697 = vmul.f32 %v696, %v688
  %v698 = vmul.f32 %v697, %v696
  %v699 = vmul.f32 0.5, %v698
  %v700 = vsub.f32 1.5, %v699
  %v701 = vmul.f32 %v696, %v700
  %vm702 = vweird.f32 %v688
  %vm703 = vweird.f32 %v696
  %vm704 = vmor %vm702, %vm703
  %v705 = vsel %vm704, %v696, %v701
  %v706 = vrsqrt.pop %v689
  %v707 = vmul.f32 %v706, %v689
  %v708 = vmul.f32 %v707, %v706
  %v709 = vmul.f32 0.5, %v708
  %v710 = vsub.f32 1.5, %v709
  %v711 = vmul.f32 %v706, %v710
  %vm712 = vweird.f32 %v689
  %vm713 = vweird.f32 %v706
  %vm714 = vmor %vm712, %vm713
  %v715 = vsel %vm714, %v706, %v711
  %v716 = vrsqrt.pop %v690
  %v717 = vmul.f32 %v716, %v690
  %v718 = vmul.f32 %v717, %v716
  %v719 = vmul.f32 0.5, %v718
  %v720 = vsub.f32 1.5, %v719
  %v721 = vmul.f32 %v716, %v720
  %vm722 = vweird.f32 %v690
  %vm723 = vweird.f32 %v716
  %vm724 = vmor %vm722, %vm723
  %v725 = vsel %vm724, %v716, %v721
  %v726 = vrsqrt.pop %v691
  %v727 = vmul.f32 %v726, %v691
  %v728 = vmul.f32 %v727, %v726
  %v729 = vmul.f32 0.5, %v728
  %v730 = vsub.f32 1.5, %v729
  %v731 = vmul.f32 %v726, %v730
  %vm732 = vweird.f32 %v691
  %vm733 = vweird.f32 %v726
  %vm734 = vmor %vm732, %vm733
  %v735 = vsel %vm734, %v726, %v731
  %v736 = vrsqrt.pop %v692
  %v737 = vmul.f32 %v736, %v692
  %v738 = vmul.f32 %v737, %v736
  %v739 = vmul.f32 0.5, %v738
  %v740 = vsub.f32 1.5, %v739
  %v741 = vmul.f32 %v736, %v740
  %vm742 = vweird.f32 %v692
  %vm743 = vweird.f32 %v736
  %vm744 = vmor %vm742, %vm743
  %v745 = vsel %vm744, %v736, %v741
  %v746 = vrsqrt.pop %v693
  %v747 = vmul.f32 %v746, %v693
  %v748 = vmul.f32 %v747, %v746
  %v749 = vmul.f32 0.5, %v748
  %v750 = vsub.f32 1.5, %v749
  %v751 = vmul.f32 %v746, %v750
  %vm752 = vweird.f32 %v693
  %vm753 = vweird.f32 %v746
  %vm754 = vmor %vm752, %vm753
  %v755 = vsel %vm754, %v746, %v751
  %v756 = vrsqrt.pop %v694
  %v757 = vmul.f32 %v756, %v694
  %v758 = vmul.f32 %v757, %v756
  %v759 = vmul.f32 0.5, %v758
  %v760 = vsub.f32 1.5, %v759
  %v761 = vmul.f32 %v756, %v760
  %vm762 = vweird.f32 %v694
  %vm763 = vweird.f32 %v756
  %vm764 = vmor %vm762, %vm763
  %v765 = vsel %vm764, %v756, %v761
  %v766 = vrsqrt.pop %v695
  %v767 = vmul.f32 %v766, %v695
  %v768 = vmul.f32 %v767, %v766
  %v769 = vmul.f32 0.5, %v768
  %v770 = vsub.f32 1.5, %v769
  %v771 = vmul.f32 %v766, %v770
  %vm772 = vweird.f32 %v695
  %vm773 = vweird.f32 %v766
  %vm774 = vmor %vm772, %vm773
  %v775 = vsel %vm774, %v766, %v771
  %v776 = vmul.f32 %v656, %v705
  %v777 = vmul.f32 %v657, %v715
  %v778 = vmul.f32 %v658, %v725
  %v779 = vmul.f32 %v659, %v735
  %v780 = vmul.f32 %v660, %v745
  %v781 = vmul.f32 %v661, %v755
  %v782 = vmul.f32 %v662, %v765
  %v783 = vmul.f32 %v663, %v775
  %v784 = vpack.c.bf16 %v777, %v776
  %v785 = vpack.c.bf16 %v779, %v778
  %v786 = vpack.c.bf16 %v781, %v780
  %v787 = vpack.c.bf16 %v783, %v782
  %v788 = vld [vmem:[%s9] sm:$0xf]
  %v789 = vld [vmem:[%s9 + $0x4] sm:$0xf]
  %v790 = vld [vmem:[%s9 + $0x8] sm:$0xf]
  %v791 = vld [vmem:[%s9 + $0xc] sm:$0xf]
  %v792 = vld [vmem:[%s9 + $0x10] sm:$0xf]
  %v793 = vld [vmem:[%s9 + $0x14] sm:$0xf]
  %v794 = vld [vmem:[%s9 + $0x18] sm:$0xf]
  %v795 = vld [vmem:[%s9 + $0x1c] sm:$0xf]
  %v796 = vld [vmem:[%s9 + $0x20] sm:$0xf]
  %v797 = vld [vmem:[%s9 + $0x24] sm:$0xf]
  %v798 = vld [vmem:[%s9 + $0x28] sm:$0xf]
  %v799 = vld [vmem:[%s9 + $0x2c] sm:$0xf]
  %v800 = vld [vmem:[%s9 + $0x30] sm:$0xf]
  %v801 = vld [vmem:[%s9 + $0x34] sm:$0xf]
  %v802 = vld [vmem:[%s9 + $0x38] sm:$0xf]
  %v803 = vld [vmem:[%s9 + $0x3c] sm:$0xf]
  %v804 = vld [vmem:[%s10] sm:$0x1]
  %v806 = vperm.slane %v804, 0
  %v824 = vunpack.c.l.b16 %v788
  %v825 = vunpack.c.l.b16 %v789
  %v826 = vunpack.c.l.b16 %v790
  %v827 = vunpack.c.l.b16 %v791
  %v828 = vunpack.c.l.b16 %v792
  %v829 = vunpack.c.l.b16 %v793
  %v830 = vunpack.c.l.b16 %v794
  %v831 = vunpack.c.l.b16 %v795
  %v832 = vunpack.c.l.b16 %v796
  %v833 = vunpack.c.l.b16 %v797
  %v834 = vunpack.c.l.b16 %v798
  %v835 = vunpack.c.l.b16 %v799
  %v836 = vunpack.c.l.b16 %v800
  %v837 = vunpack.c.l.b16 %v801
  %v838 = vunpack.c.l.b16 %v802
  %v839 = vunpack.c.l.b16 %v803
  %v840 = vpack.c.b16 %v825, %v824
  %v841 = vpack.c.b16 %v827, %v826
  %v842 = vpack.c.b16 %v829, %v828
  %v843 = vpack.c.b16 %v831, %v830
  %v844 = vpack.c.b16 %v833, %v832
  %v845 = vpack.c.b16 %v835, %v834
  %v846 = vpack.c.b16 %v837, %v836
  %v847 = vpack.c.b16 %v839, %v838
  %856 = vmatpush.bf16.msra.mxu0 %v847
  %857 = vmatpush.bf16.msra.mxu0 %v846
  %858 = vmatpush.bf16.msra.mxu0 %v845
  %859 = vmatpush.bf16.msra.mxu0 %v844
  %860 = vmatpush.bf16.msra.mxu0 %v843
  %861 = vmatpush.bf16.msra.mxu0 %v842
  %862 = vmatpush.bf16.msra.mxu0 %v841
  %863 = vmatpush.bf16.msra.mxu0 %v840
  %864 = vmatmul.bf16.gmra.mxu0 %v784
  %v865 = vpop.f32.mrf.mxu0
  %v866 = vadd.f32 %v806, %v865
  %v867 = vpop.f32.mrf.mxu0
  %v868 = vadd.f32 %v806, %v867
  %869 = vmatmul.bf16.gmra.mxu0 %v785
  %v870 = vpop.f32.mrf.mxu0
  %v871 = vadd.f32 %v806, %v870
  %v872 = vpop.f32.mrf.mxu0
  %v873 = vadd.f32 %v806, %v872
  %874 = vmatmul.bf16.gmra.mxu0 %v786
  %v875 = vpop.f32.mrf.mxu0
  %v876 = vadd.f32 %v806, %v875
  %v877 = vpop.f32.mrf.mxu0
  %v878 = vadd.f32 %v806, %v877
  %879 = vmatmul.bf16.gmra.mxu0 %v787
  %v880 = vpop.f32.mrf.mxu0
  %v881 = vadd.f32 %v806, %v880
  %v882 = vpop.f32.mrf.mxu0
  %v883 = vadd.f32 %v806, %v882
  %884 = vdwg.mxu0
  %v885 = vpack.c.bf16 %v868, %v866
  %v886 = vpack.c.bf16 %v873, %v871
  %v887 = vpack.c.bf16 %v878, %v876
  %v888 = vpack.c.bf16 %v883, %v881
  %v889 = vld [vmem:[%s11] sm:$0x1]
  %v891 = vperm.slane %v889, 0
  %893 = vmatpush.bf16.msra.mxu0 0
  %894 = vmatpush.bf16.msra.mxu0 0
  %895 = vmatpush.bf16.msra.mxu0 0
  %896 = vmatpush.bf16.msra.mxu0 0
  %897 = vmatpush.bf16.msra.mxu0 %v888
  %898 = vmatpush.bf16.msra.mxu0 %v887
  %899 = vmatpush.bf16.msra.mxu0 %v886
  %900 = vmatpush.bf16.msra.mxu0 %v885
  %901 = vmatmul.bf16.gmra.mxu0 %v318
  %v902 = vpop.f32.mrf.mxu0
  %v903 = vadd.f32 %v891, %v902
  %v904 = vpop.f32.mrf.mxu0
  %v905 = vadd.f32 %v891, %v904
  %906 = vmatmul.bf16.gmra.mxu0 %v321
  %v907 = vpop.f32.mrf.mxu0
  %v908 = vadd.f32 %v891, %v907
  %v909 = vpop.f32.mrf.mxu0
  %v910 = vadd.f32 %v891, %v909
  %911 = vmatmul.bf16.gmra.mxu0 %v324
  %v912 = vpop.f32.mrf.mxu0
  %v913 = vadd.f32 %v891, %v912
  %v914 = vpop.f32.mrf.mxu0
  %v915 = vadd.f32 %v891, %v914
  %916 = vmatmul.bf16.gmra.mxu0 %v327
  %v917 = vpop.f32.mrf.mxu0
  %v918 = vadd.f32 %v891, %v917
  %v919 = vpop.f32.mrf.mxu0
  %v920 = vadd.f32 %v891, %v919
  %921 = vdwg.mxu0
  %vm922 = vcmp.ge.f32.partialorder %v903, 0.0
  %vm923 = vcmp.ge.f32.partialorder %v905, 0.0
  %vm924 = vcmp.ge.f32.partialorder %v908, 0.0
  %vm925 = vcmp.ge.f32.partialorder %v910, 0.0
  %vm926 = vcmp.ge.f32.partialorder %v913, 0.0
  %vm927 = vcmp.ge.f32.partialorder %v915, 0.0
  %vm928 = vcmp.ge.f32.partialorder %v918, 0.0
  %vm929 = vcmp.ge.f32.partialorder %v920, 0.0
  %v930 = vmul.f32 %v903, 0.01
  %v931 = vmul.f32 %v905, 0.01
  %v932 = vmul.f32 %v908, 0.01
  %v933 = vmul.f32 %v910, 0.01
  %v934 = vmul.f32 %v913, 0.01
  %v935 = vmul.f32 %v915, 0.01
  %v936 = vmul.f32 %v918, 0.01
  %v937 = vmul.f32 %v920, 0.01
  %v938 = vsel %vm922, %v903, %v930
  %v939 = vsel %vm923, %v905, %v931
  %v940 = vsel %vm924, %v908, %v932
  %v941 = vsel %vm925, %v910, %v933
  %v942 = vsel %vm926, %v913, %v934
  %v943 = vsel %vm927, %v915, %v935
  %v944 = vsel %vm928, %v918, %v936
  %v945 = vsel %vm929, %v920, %v937
  %v946 = vpack.c.bf16 %v939, %v938
  %v947 = vpack.c.bf16 %v941, %v940
  %v948 = vpack.c.bf16 %v943, %v942
  %v949 = vpack.c.bf16 %v945, %v944
  %v950 = vld [vmem:[%s12] sm:$0xf]
  %v951 = vld [vmem:[%s12 + $0x4] sm:$0xf]
  %v952 = vld [vmem:[%s12 + $0x8] sm:$0xf]
  %v953 = vld [vmem:[%s12 + $0xc] sm:$0xf]
  %v954 = vld [vmem:[%s12 + $0x10] sm:$0xf]
  %v955 = vld [vmem:[%s12 + $0x14] sm:$0xf]
  %v956 = vld [vmem:[%s12 + $0x18] sm:$0xf]
  %v957 = vld [vmem:[%s12 + $0x1c] sm:$0xf]
  %v958 = vld [vmem:[%s2] sm:$0xf]
  %v959 = vld [vmem:[%s2 + $0x4] sm:$0xf]
  %v960 = vld [vmem:[%s2 + $0x8] sm:$0xf]
  %v961 = vld [vmem:[%s2 + $0xc] sm:$0xf]
  %v962 = vld [vmem:[%s2 + $0x10] sm:$0xf]
  %v963 = vld [vmem:[%s2 + $0x14] sm:$0xf]
  %v964 = vld [vmem:[%s2 + $0x18] sm:$0xf]
  %v965 = vld [vmem:[%s2 + $0x1c] sm:$0xf]
  %v966 = vld [vmem:[%s13] sm:$0xf]
  %v967 = vld [vmem:[%s13 + $0x4] sm:$0xf]
  %v968 = vld [vmem:[%s13 + $0x8] sm:$0xf]
  %v969 = vld [vmem:[%s13 + $0xc] sm:$0xf]
  %v970 = vld [vmem:[%s13 + $0x10] sm:$0xf]
  %v971 = vld [vmem:[%s13 + $0x14] sm:$0xf]
  %v972 = vld [vmem:[%s13 + $0x18] sm:$0xf]
  %v973 = vld [vmem:[%s13 + $0x1c] sm:$0xf]
  %v982 = vunpack.c.l.b16 %v958
  %v983 = vunpack.c.l.b16 %v959
  %v984 = vunpack.c.l.b16 %v960
  %v985 = vunpack.c.l.b16 %v961
  %v986 = vunpack.c.l.b16 %v962
  %v987 = vunpack.c.l.b16 %v963
  %v988 = vunpack.c.l.b16 %v964
  %v989 = vunpack.c.l.b16 %v965
  %v990 = vpack.c.b16 %v983, %v982
  %v991 = vpack.c.b16 %v985, %v984
  %v992 = vpack.c.b16 %v987, %v986
  %v993 = vpack.c.b16 %v989, %v988
  %v1002 = vunpack.c.l.b16 %v966
  %v1003 = vunpack.c.l.b16 %v967
  %v1004 = vunpack.c.l.b16 %v968
  %v1005 = vunpack.c.l.b16 %v969
  %v1006 = vunpack.c.l.b16 %v970
  %v1007 = vunpack.c.l.b16 %v971
  %v1008 = vunpack.c.l.b16 %v972
  %v1009 = vunpack.c.l.b16 %v973
  %v1010 = vpack.c.b16 %v1003, %v1002
  %v1011 = vpack.c.b16 %v1005, %v1004
  %v1012 = vpack.c.b16 %v1007, %v1006
  %v1013 = vpack.c.b16 %v1009, %v1008
  %v1019 = vsel %vm316, %v990, 0
  %v1022 = vsel %vm316, %v991, 0
  %v1025 = vsel %vm316, %v992, 0
  %v1028 = vsel %vm316, %v993, 0
  %1030 = vmatpush.bf16.msra.mxu0 0
  %1031 = vmatpush.bf16.msra.mxu0 0
  %1032 = vmatpush.bf16.msra.mxu0 0
  %1033 = vmatpush.bf16.msra.mxu0 0
  %1034 = vmatpush.bf16.msra.mxu0 %v1013
  %1035 = vmatpush.bf16.msra.mxu0 %v1012
  %1036 = vmatpush.bf16.msra.mxu0 %v1011
  %1037 = vmatpush.bf16.msra.mxu0 %v1010
  %1038 = vmatmul.bf16.gmra.mxu0 %v1019
  %v1039 = vpop.f32.mrf.mxu0
  %v1040 = vadd.f32 0.0, %v1039
  %v1041 = vpop.f32.mrf.mxu0
  %v1042 = vadd.f32 0.0, %v1041
  %1043 = vmatmul.bf16.gmra.mxu0 %v1022
  %v1044 = vpop.f32.mrf.mxu0
  %v1045 = vadd.f32 0.0, %v1044
  %v1046 = vpop.f32.mrf.mxu0
  %v1047 = vadd.f32 0.0, %v1046
  %1048 = vmatmul.bf16.gmra.mxu0 %v1025
  %v1049 = vpop.f32.mrf.mxu0
  %v1050 = vadd.f32 0.0, %v1049
  %v1051 = vpop.f32.mrf.mxu0
  %v1052 = vadd.f32 0.0, %v1051
  %1053 = vmatmul.bf16.gmra.mxu0 %v1028
  %v1054 = vpop.f32.mrf.mxu0
  %v1055 = vadd.f32 0.0, %v1054
  %v1056 = vpop.f32.mrf.mxu0
  %v1057 = vadd.f32 0.0, %v1056
  %1058 = vdwg.mxu0
  %v1067 = vunpack.c.l.b16 %v950
  %v1068 = vunpack.c.l.b16 %v951
  %v1069 = vunpack.c.l.b16 %v952
  %v1070 = vunpack.c.l.b16 %v953
  %v1071 = vunpack.c.l.b16 %v954
  %v1072 = vunpack.c.l.b16 %v955
  %v1073 = vunpack.c.l.b16 %v956
  %v1074 = vunpack.c.l.b16 %v957
  %v1075 = vpack.c.b16 %v1068, %v1067
  %v1076 = vpack.c.b16 %v1070, %v1069
  %v1077 = vpack.c.b16 %v1072, %v1071
  %v1078 = vpack.c.b16 %v1074, %v1073
  %v1084 = vsel %vm316, %v946, 0
  %v1087 = vsel %vm316, %v947, 0
  %v1090 = vsel %vm316, %v948, 0
  %v1093 = vsel %vm316, %v949, 0
  %1095 = vmatpush.bf16.msra.mxu0 0
  %1096 = vmatpush.bf16.msra.mxu0 0
  %1097 = vmatpush.bf16.msra.mxu0 0
  %1098 = vmatpush.bf16.msra.mxu0 0
  %1099 = vmatpush.bf16.msra.mxu0 %v1078
  %1100 = vmatpush.bf16.msra.mxu0 %v1077
  %1101 = vmatpush.bf16.msra.mxu0 %v1076
  %1102 = vmatpush.bf16.msra.mxu0 %v1075
  %1103 = vmatmul.bf16.gmra.mxu0 %v1084
  %v1104 = vpop.f32.mrf.mxu0
  %v1105 = vadd.f32 %v1040, %v1104
  %v1106 = vpop.f32.mrf.mxu0
  %v1107 = vadd.f32 %v1042, %v1106
  %1108 = vmatmul.bf16.gmra.mxu0 %v1087
  %v1109 = vpop.f32.mrf.mxu0
  %v1110 = vadd.f32 %v1045, %v1109
  %v1111 = vpop.f32.mrf.mxu0
  %v1112 = vadd.f32 %v1047, %v1111
  %1113 = vmatmul.bf16.gmra.mxu0 %v1090
  %v1114 = vpop.f32.mrf.mxu0
  %v1115 = vadd.f32 %v1050, %v1114
  %v1116 = vpop.f32.mrf.mxu0
  %v1117 = vadd.f32 %v1052, %v1116
  %1118 = vmatmul.bf16.gmra.mxu0 %v1093
  %v1119 = vpop.f32.mrf.mxu0
  %v1120 = vadd.f32 %v1055, %v1119
  %v1121 = vpop.f32.mrf.mxu0
  %v1122 = vadd.f32 %v1057, %v1121
  %1123 = vdwg.mxu0
  %v1124 = vld [vmem:[%s14] sm:$0x1]
  %v1126 = vperm.slane %v1124, 0
  %v1128 = vadd.f32 %v1105, %v1126
  %v1129 = vadd.f32 %v1107, %v1126
  %v1130 = vadd.f32 %v1110, %v1126
  %v1131 = vadd.f32 %v1112, %v1126
  %v1132 = vadd.f32 %v1115, %v1126
  %v1133 = vadd.f32 %v1117, %v1126
  %v1134 = vadd.f32 %v1120, %v1126
  %v1135 = vadd.f32 %v1122, %v1126
  %vm1136 = vcmask 48128
  %v1137 = vsel %vm1136, %v1128, -inf
  %1138 = vmax.xlane.f32.xlu0 %v1137
  %v1139 = vpop.xlane.xlu0 %1138
  %v1140 = vsel %vm1136, %v1129, -inf
  %1141 = vmax.xlane.f32.xlu0 %v1140
  %v1142 = vpop.xlane.xlu0 %1141
  %v1143 = vsel %vm1136, %v1130, -inf
  %1144 = vmax.xlane.f32.xlu0 %v1143
  %v1145 = vpop.xlane.xlu0 %1144
  %v1146 = vsel %vm1136, %v1131, -inf
  %1147 = vmax.xlane.f32.xlu0 %v1146
  %v1148 = vpop.xlane.xlu0 %1147
  %v1149 = vsel %vm1136, %v1132, -inf
  %1150 = vmax.xlane.f32.xlu0 %v1149
  %v1151 = vpop.xlane.xlu0 %1150
  %v1152 = vsel %vm1136, %v1133, -inf
  %1153 = vmax.xlane.f32.xlu0 %v1152
  %v1154 = vpop.xlane.xlu0 %1153
  %v1155 = vsel %vm1136, %v1134, -inf
  %1156 = vmax.xlane.f32.xlu0 %v1155
  %v1157 = vpop.xlane.xlu0 %1156
  %v1158 = vsel %vm1136, %v1135, -inf
  %1159 = vmax.xlane.f32.xlu0 %v1158
  %v1160 = vpop.xlane.xlu0 %1159
  %v1161 = vsub.f32 %v1128, %v1139
  %v1162 = vsub.f32 %v1129, %v1142
  %v1163 = vsub.f32 %v1130, %v1145
  %v1164 = vsub.f32 %v1131, %v1148
  %v1165 = vsub.f32 %v1132, %v1151
  %v1166 = vsub.f32 %v1133, %v1154
  %v1167 = vsub.f32 %v1134, %v1157
  %v1168 = vsub.f32 %v1135, %v1160
  %v1169 = vmul.f32 %v1161, 1.442695
  %v1170 = vpow.pop %v1169
  %v1171 = vmul.f32 %v1162, 1.442695
  %v1172 = vpow.pop %v1171
  %v1173 = vmul.f32 %v1163, 1.442695
  %v1174 = vpow.pop %v1173
  %v1175 = vmul.f32 %v1164, 1.442695
  %v1176 = vpow.pop %v1175
  %v1177 = vmul.f32 %v1165, 1.442695
  %v1178 = vpow.pop %v1177
  %v1179 = vmul.f32 %v1166, 1.442695
  %v1180 = vpow.pop %v1179
  %v1181 = vmul.f32 %v1167, 1.442695
  %v1182 = vpow.pop %v1181
  %v1183 = vmul.f32 %v1168, 1.442695
  %v1184 = vpow.pop %v1183
  %v1185 = vsel %vm1136, %v1170, 0.0
  %1186 = vadd.xlane.f32.xlu0 %v1185
  %v1187 = vpop.xlane.xlu0 %1186
  %v1188 = vsel %vm1136, %v1172, 0.0
  %1189 = vadd.xlane.f32.xlu0 %v1188
  %v1190 = vpop.xlane.xlu0 %1189
  %v1191 = vsel %vm1136, %v1174, 0.0
  %1192 = vadd.xlane.f32.xlu0 %v1191
  %v1193 = vpop.xlane.xlu0 %1192
  %v1194 = vsel %vm1136, %v1176, 0.0
  %1195 = vadd.xlane.f32.xlu0 %v1194
  %v1196 = vpop.xlane.xlu0 %1195
  %v1197 = vsel %vm1136, %v1178, 0.0
  %1198 = vadd.xlane.f32.xlu0 %v1197
  %v1199 = vpop.xlane.xlu0 %1198
  %v1200 = vsel %vm1136, %v1180, 0.0
  %1201 = vadd.xlane.f32.xlu0 %v1200
  %v1202 = vpop.xlane.xlu0 %1201
  %v1203 = vsel %vm1136, %v1182, 0.0
  %1204 = vadd.xlane.f32.xlu0 %v1203
  %v1205 = vpop.xlane.xlu0 %1204
  %v1206 = vsel %vm1136, %v1184, 0.0
  %1207 = vadd.xlane.f32.xlu0 %v1206
  %v1208 = vpop.xlane.xlu0 %1207
  %v1209 = vrcp.pop %v1187
  %v1210 = vmul.f32 %v1187, %v1209
  %v1211 = vsub.f32 1.0, %v1210
  %v1212 = vmul.f32 %v1209, %v1211
  %v1213 = vadd.f32 %v1209, %v1212
  %vm1214 = vweird.f32 %v1187
  %vm1215 = vweird.f32 %v1209
  %vm1216 = vmor %vm1214, %vm1215
  %v1217 = vsel %vm1216, %v1209, %v1213
  %v1218 = vand.u32 2147483647, %v1187
  %vm1219 = vcmp.eq.f32.partialorder %v1218, 8.507059e+37
  %v1220 = vand.u32 %v1187, 2147483648
  %v1221 = vor.u32 1.1754944e-38, %v1220
  %v1222 = vsel %vm1219, %v1221, %v1217
  %v1223 = vmul.f32 %v1170, %v1222
  %v1224 = vrcp.pop %v1190
  %v1225 = vmul.f32 %v1190, %v1224
  %v1226 = vsub.f32 1.0, %v1225
  %v1227 = vmul.f32 %v1224, %v1226
  %v1228 = vadd.f32 %v1224, %v1227
  %vm1229 = vweird.f32 %v1190
  %vm1230 = vweird.f32 %v1224
  %vm1231 = vmor %vm1229, %vm1230
  %v1232 = vsel %vm1231, %v1224, %v1228
  %v1233 = vand.u32 2147483647, %v1190
  %vm1234 = vcmp.eq.f32.partialorder %v1233, 8.507059e+37
  %v1235 = vand.u32 %v1190, 2147483648
  %v1236 = vor.u32 1.1754944e-38, %v1235
  %v1237 = vsel %vm1234, %v1236, %v1232
  %v1238 = vmul.f32 %v1172, %v1237
  %v1239 = vrcp.pop %v1193
  %v1240 = vmul.f32 %v1193, %v1239
  %v1241 = vsub.f32 1.0, %v1240
  %v1242 = vmul.f32 %v1239, %v1241
  %v1243 = vadd.f32 %v1239, %v1242
  %vm1244 = vweird.f32 %v1193
  %vm1245 = vweird.f32 %v1239
  %vm1246 = vmor %vm1244, %vm1245
  %v1247 = vsel %vm1246, %v1239, %v1243
  %v1248 = vand.u32 2147483647, %v1193
  %vm1249 = vcmp.eq.f32.partialorder %v1248, 8.507059e+37
  %v1250 = vand.u32 %v1193, 2147483648
  %v1251 = vor.u32 1.1754944e-38, %v1250
  %v1252 = vsel %vm1249, %v1251, %v1247
  %v1253 = vmul.f32 %v1174, %v1252
  %v1254 = vrcp.pop %v1196
  %v1255 = vmul.f32 %v1196, %v1254
  %v1256 = vsub.f32 1.0, %v1255
  %v1257 = vmul.f32 %v1254, %v1256
  %v1258 = vadd.f32 %v1254, %v1257
  %vm1259 = vweird.f32 %v1196
  %vm1260 = vweird.f32 %v1254
  %vm1261 = vmor %vm1259, %vm1260
  %v1262 = vsel %vm1261, %v1254, %v1258
  %v1263 = vand.u32 2147483647, %v1196
  %vm1264 = vcmp.eq.f32.partialorder %v1263, 8.507059e+37
  %v1265 = vand.u32 %v1196, 2147483648
  %v1266 = vor.u32 1.1754944e-38, %v1265
  %v1267 = vsel %vm1264, %v1266, %v1262
  %v1268 = vmul.f32 %v1176, %v1267
  %v1269 = vrcp.pop %v1199
  %v1270 = vmul.f32 %v1199, %v1269
  %v1271 = vsub.f32 1.0, %v1270
  %v1272 = vmul.f32 %v1269, %v1271
  %v1273 = vadd.f32 %v1269, %v1272
  %vm1274 = vweird.f32 %v1199
  %vm1275 = vweird.f32 %v1269
  %vm1276 = vmor %vm1274, %vm1275
  %v1277 = vsel %vm1276, %v1269, %v1273
  %v1278 = vand.u32 2147483647, %v1199
  %vm1279 = vcmp.eq.f32.partialorder %v1278, 8.507059e+37
  %v1280 = vand.u32 %v1199, 2147483648
  %v1281 = vor.u32 1.1754944e-38, %v1280
  %v1282 = vsel %vm1279, %v1281, %v1277
  %v1283 = vmul.f32 %v1178, %v1282
  %v1284 = vrcp.pop %v1202
  %v1285 = vmul.f32 %v1202, %v1284
  %v1286 = vsub.f32 1.0, %v1285
  %v1287 = vmul.f32 %v1284, %v1286
  %v1288 = vadd.f32 %v1284, %v1287
  %vm1289 = vweird.f32 %v1202
  %vm1290 = vweird.f32 %v1284
  %vm1291 = vmor %vm1289, %vm1290
  %v1292 = vsel %vm1291, %v1284, %v1288
  %v1293 = vand.u32 2147483647, %v1202
  %vm1294 = vcmp.eq.f32.partialorder %v1293, 8.507059e+37
  %v1295 = vand.u32 %v1202, 2147483648
  %v1296 = vor.u32 1.1754944e-38, %v1295
  %v1297 = vsel %vm1294, %v1296, %v1292
  %v1298 = vmul.f32 %v1180, %v1297
  %v1299 = vrcp.pop %v1205
  %v1300 = vmul.f32 %v1205, %v1299
  %v1301 = vsub.f32 1.0, %v1300
  %v1302 = vmul.f32 %v1299, %v1301
  %v1303 = vadd.f32 %v1299, %v1302
  %vm1304 = vweird.f32 %v1205
  %vm1305 = vweird.f32 %v1299
  %vm1306 = vmor %vm1304, %vm1305
  %v1307 = vsel %vm1306, %v1299, %v1303
  %v1308 = vand.u32 2147483647, %v1205
  %vm1309 = vcmp.eq.f32.partialorder %v1308, 8.507059e+37
  %v1310 = vand.u32 %v1205, 2147483648
  %v1311 = vor.u32 1.1754944e-38, %v1310
  %v1312 = vsel %vm1309, %v1311, %v1307
  %v1313 = vmul.f32 %v1182, %v1312
  %v1314 = vrcp.pop %v1208
  %v1315 = vmul.f32 %v1208, %v1314
  %v1316 = vsub.f32 1.0, %v1315
  %v1317 = vmul.f32 %v1314, %v1316
  %v1318 = vadd.f32 %v1314, %v1317
  %vm1319 = vweird.f32 %v1208
  %vm1320 = vweird.f32 %v1314
  %vm1321 = vmor %vm1319, %vm1320
  %v1322 = vsel %vm1321, %v1314, %v1318
  %v1323 = vand.u32 2147483647, %v1208
  %vm1324 = vcmp.eq.f32.partialorder %v1323, 8.507059e+37
  %v1325 = vand.u32 %v1208, 2147483648
  %v1326 = vor.u32 1.1754944e-38, %v1325
  %v1327 = vsel %vm1324, %v1326, %v1322
  %v1328 = vmul.f32 %v1184, %v1327
  %1329 = vst.msk [vmem:[%s15] sm:$0xff] %vm1136, %v1223
  %1330 = vst.msk [vmem:[%s15 + $0x8] sm:$0xff] %vm1136, %v1238
  %1331 = vst.msk [vmem:[%s15 + $0x10] sm:$0xff] %vm1136, %v1253
  %1332 = vst.msk [vmem:[%s15 + $0x18] sm:$0xff] %vm1136, %v1268
  %1333 = vst.msk [vmem:[%s15 + $0x20] sm:$0xff] %vm1136, %v1283
  %1334 = vst.msk [vmem:[%s15 + $0x28] sm:$0xff] %vm1136, %v1298
  %1335 = vst.msk [vmem:[%s15 + $0x30] sm:$0xff] %vm1136, %v1313
  %1336 = vst.msk [vmem:[%s15 + $0x38] sm:$0xff] %vm1136, %v1328
  // Predicated region
  $region62: #{mpnncnn_forward.5} parent=0 // pred_check
    _
  $region63: #{mpnncnn_forward.5} parent=0 // pred_check_branch
    %1338 = sbr.rel (0) target = $region65
  $region64: #{mpnncnn_forward.5} parent=0 // pred_region
    _
  $region65: #{mpnncnn_forward.5} parent=0 // pred_fallthru
    _
  // Predicated region
  $region66: #{mpnncnn_forward.5} parent=0 // pred_check
    _
  $region67: #{mpnncnn_forward.5} parent=0 // pred_check_branch
    %1340 = sbr.rel (0) target = $region69
  $region68: #{mpnncnn_forward.5} parent=0 // pred_region
    _
  $region69: #{mpnncnn_forward.5} parent=0 // pred_fallthru
    _

// kernel: mpnncnn_forward.4
$region0: #{mpnncnn_forward.4}
  #allocation0 [shape = 'u32[]', space=smem, size = 0x4, offset = 0x4, fixed_abs, tag = 'smem constant byte address 0x4 - core index']
  #allocation1 [shape = 'u32[72,128]{1,0:T(1,128)}', space=vmem, size = 0x9000, scoped, tag = 'internal scratch']
  #allocation2 [shape = 'bf16[12,12,64]{2,1,0:T(8,128)(2,1)}', space=vmem, size = 0xc000, scoped, tag = 'scratch operand']
  %s0 = inlined_call_operand.vmem [shape: f32[8,8,128], index: 0, kind: input, shape index: {}]
  %s1 = inlined_call_operand.vmem [shape: bf16[128,64], index: 1, kind: input, shape index: {}]
  %s2 = inlined_call_operand.vmem [shape: f32[1,64], index: 2, kind: input, shape index: {}]
  %s3 = inlined_call_operand.vmem [shape: bf16[5,5,64], index: 3, kind: input, shape index: {}]
  %s4 = inlined_call_operand.vmem [shape: f32[1,1,64], index: 4, kind: input, shape index: {}]
  %s5 = inlined_call_operand.vmem [shape: bf16[8,8,64], index: 5, kind: output, shape index: {}]
  %s6 = sld [smem:[#allocation0]]
  $region30: #{mpnncnn_forward.4} parent=0
    _
  %s8 = ssub.s32 1, %s6
  %s9 = scalar_select 0, %s8, %s6
  // Predicated region
  $region2: #{mpnncnn_forward.4} parent=0 // pred_check
    _
  $region3: #{mpnncnn_forward.4} parent=0 // pred_check_branch
    %11 = sbr.rel (0) target = $region5
  $region4: #{mpnncnn_forward.4} parent=0 // pred_region
    _
  $region5: #{mpnncnn_forward.4} parent=0 // pred_fallthru
    _
  // Predicated region
  $region6: #{mpnncnn_forward.4} parent=0 // pred_check
    _
  $region7: #{mpnncnn_forward.4} parent=0 // pred_check_branch
    %13 = sbr.rel (0) target = $region9
  $region8: #{mpnncnn_forward.4} parent=0 // pred_region
    _
  $region9: #{mpnncnn_forward.4} parent=0 // pred_fallthru
    _
  // Predicated region
  $region10: #{mpnncnn_forward.4} parent=0 // pred_check
    _
  $region11: #{mpnncnn_forward.4} parent=0 // pred_check_branch
    %15 = sbr.rel (0) target = $region13
  $region12: #{mpnncnn_forward.4} parent=0 // pred_region
    _
  $region13: #{mpnncnn_forward.4} parent=0 // pred_fallthru
    _
  // Predicated region
  $region14: #{mpnncnn_forward.4} parent=0 // pred_check
    _
  $region15: #{mpnncnn_forward.4} parent=0 // pred_check_branch
    %17 = sbr.rel (0) target = $region17
  $region16: #{mpnncnn_forward.4} parent=0 // pred_region
    _
  $region17: #{mpnncnn_forward.4} parent=0 // pred_fallthru
    _
  // Predicated region
  $region18: #{mpnncnn_forward.4} parent=0 // pred_check
    _
  $region19: #{mpnncnn_forward.4} parent=0 // pred_check_branch
    %19 = sbr.rel (0) target = $region21
  $region20: #{mpnncnn_forward.4} parent=0 // pred_region
    _
  $region21: #{mpnncnn_forward.4} parent=0 // pred_fallthru
    _
  %v21 = vld [vmem:[%s0] sm:$0xff]
  %v22 = vld [vmem:[%s0 + $0x8] sm:$0xff]
  %v23 = vld [vmem:[%s0 + $0x10] sm:$0xff]
  %v24 = vld [vmem:[%s0 + $0x18] sm:$0xff]
  %v25 = vld [vmem:[%s0 + $0x20] sm:$0xff]
  %v26 = vld [vmem:[%s0 + $0x28] sm:$0xff]
  %v27 = vld [vmem:[%s0 + $0x30] sm:$0xff]
  %v28 = vld [vmem:[%s0 + $0x38] sm:$0xff]
  %v29 = vpack.c.bf16 %v22, %v21
  %v30 = vpack.c.bf16 %v24, %v23
  %v31 = vpack.c.bf16 %v26, %v25
  %v32 = vpack.c.bf16 %v28, %v27
  %v33 = vld [vmem:[%s1] sm:$0xf]
  %v34 = vld [vmem:[%s1 + $0x4] sm:$0xf]
  %v35 = vld [vmem:[%s1 + $0x8] sm:$0xf]
  %v36 = vld [vmem:[%s1 + $0xc] sm:$0xf]
  %v37 = vld [vmem:[%s1 + $0x10] sm:$0xf]
  %v38 = vld [vmem:[%s1 + $0x14] sm:$0xf]
  %v39 = vld [vmem:[%s1 + $0x18] sm:$0xf]
  %v40 = vld [vmem:[%s1 + $0x1c] sm:$0xf]
  %v41 = vld [vmem:[%s1 + $0x20] sm:$0xf]
  %v42 = vld [vmem:[%s1 + $0x24] sm:$0xf]
  %v43 = vld [vmem:[%s1 + $0x28] sm:$0xf]
  %v44 = vld [vmem:[%s1 + $0x2c] sm:$0xf]
  %v45 = vld [vmem:[%s1 + $0x30] sm:$0xf]
  %v46 = vld [vmem:[%s1 + $0x34] sm:$0xf]
  %v47 = vld [vmem:[%s1 + $0x38] sm:$0xf]
  %v48 = vld [vmem:[%s1 + $0x3c] sm:$0xf]
  %v49 = vld [vmem:[%s2] sm:$0x1]
  %v51 = vperm.slane %v49, 0
  %v69 = vunpack.c.l.b16 %v33
  %v70 = vunpack.c.l.b16 %v34
  %v71 = vunpack.c.l.b16 %v35
  %v72 = vunpack.c.l.b16 %v36
  %v73 = vunpack.c.l.b16 %v37
  %v74 = vunpack.c.l.b16 %v38
  %v75 = vunpack.c.l.b16 %v39
  %v76 = vunpack.c.l.b16 %v40
  %v77 = vunpack.c.l.b16 %v41
  %v78 = vunpack.c.l.b16 %v42
  %v79 = vunpack.c.l.b16 %v43
  %v80 = vunpack.c.l.b16 %v44
  %v81 = vunpack.c.l.b16 %v45
  %v82 = vunpack.c.l.b16 %v46
  %v83 = vunpack.c.l.b16 %v47
  %v84 = vunpack.c.l.b16 %v48
  %v85 = vpack.c.b16 %v70, %v69
  %v86 = vpack.c.b16 %v72, %v71
  %v87 = vpack.c.b16 %v74, %v73
  %v88 = vpack.c.b16 %v76, %v75
  %v89 = vpack.c.b16 %v78, %v77
  %v90 = vpack.c.b16 %v80, %v79
  %v91 = vpack.c.b16 %v82, %v81
  %v92 = vpack.c.b16 %v84, %v83
  %101 = vmatpush.bf16.msra.mxu0 %v92
  %102 = vmatpush.bf16.msra.mxu0 %v91
  %103 = vmatpush.bf16.msra.mxu0 %v90
  %104 = vmatpush.bf16.msra.mxu0 %v89
  %105 = vmatpush.bf16.msra.mxu0 %v88
  %106 = vmatpush.bf16.msra.mxu0 %v87
  %107 = vmatpush.bf16.msra.mxu0 %v86
  %108 = vmatpush.bf16.msra.mxu0 %v85
  %109 = vmatmul.bf16.gmra.mxu0 %v29
  %v110 = vpop.f32.mrf.mxu0
  %v111 = vadd.f32 %v51, %v110
  %v112 = vpop.f32.mrf.mxu0
  %v113 = vadd.f32 %v51, %v112
  %114 = vmatmul.bf16.gmra.mxu0 %v30
  %v115 = vpop.f32.mrf.mxu0
  %v116 = vadd.f32 %v51, %v115
  %v117 = vpop.f32.mrf.mxu0
  %v118 = vadd.f32 %v51, %v117
  %119 = vmatmul.bf16.gmra.mxu0 %v31
  %v120 = vpop.f32.mrf.mxu0
  %v121 = vadd.f32 %v51, %v120
  %v122 = vpop.f32.mrf.mxu0
  %v123 = vadd.f32 %v51, %v122
  %124 = vmatmul.bf16.gmra.mxu0 %v32
  %v125 = vpop.f32.mrf.mxu0
  %v126 = vadd.f32 %v51, %v125
  %v127 = vpop.f32.mrf.mxu0
  %v128 = vadd.f32 %v51, %v127
  %129 = vdwg.mxu0
  %vm130 = vcmp.ge.f32.partialorder %v111, 0.0
  %vm131 = vcmp.ge.f32.partialorder %v113, 0.0
  %vm132 = vcmp.ge.f32.partialorder %v116, 0.0
  %vm133 = vcmp.ge.f32.partialorder %v118, 0.0
  %vm134 = vcmp.ge.f32.partialorder %v121, 0.0
  %vm135 = vcmp.ge.f32.partialorder %v123, 0.0
  %vm136 = vcmp.ge.f32.partialorder %v126, 0.0
  %vm137 = vcmp.ge.f32.partialorder %v128, 0.0
  %v138 = vmul.f32 %v111, 0.01
  %v139 = vmul.f32 %v113, 0.01
  %v140 = vmul.f32 %v116, 0.01
  %v141 = vmul.f32 %v118, 0.01
  %v142 = vmul.f32 %v121, 0.01
  %v143 = vmul.f32 %v123, 0.01
  %v144 = vmul.f32 %v126, 0.01
  %v145 = vmul.f32 %v128, 0.01
  %v146 = vsel %vm130, %v111, %v138
  %v147 = vsel %vm131, %v113, %v139
  %v148 = vsel %vm132, %v116, %v140
  %v149 = vsel %vm133, %v118, %v141
  %v150 = vsel %vm134, %v121, %v142
  %v151 = vsel %vm135, %v123, %v143
  %v152 = vsel %vm136, %v126, %v144
  %v153 = vsel %vm137, %v128, %v145
  %vm154 = vcmask 519168
  %155 = vst.msk [vmem:[#allocation2] sm:$0xf] %vm154, 0
  %vm156 = vcmask 517120
  %157 = vst.msk [vmem:[#allocation2 + $0x4] sm:$0x3] %vm156, 0
  %158 = vst.msk [vmem:[#allocation2 + $0x8] sm:$0xf] %vm154, 0
  %159 = vst.msk [vmem:[#allocation2 + $0xc] sm:$0x3] %vm156, 0
  %s160 = scalar_lea.vmem [#allocation2], 80
  %161 = vst.msk [vmem:[%s160] sm:$0xf] %vm154, 0
  %162 = vst.msk [vmem:[%s160 + $0x4] sm:$0x3] %vm156, 0
  %163 = vst.msk [vmem:[%s160 + $0x8] sm:$0xf] %vm154, 0
  %164 = vst.msk [vmem:[%s160 + $0xc] sm:$0x3] %vm156, 0
  %s165 = scalar_lea.vmem [#allocation2], 16
  %vm166 = vcmask 516096
  %167 = vst.msk [vmem:[%s165] sm:$0x1] %vm166, 0
  %168 = vst.msk [vmem:[%s165 + $0x8] sm:$0x1] %vm166, 0
  %169 = vst.msk [vmem:[%s165 + $0x10] sm:$0x1] %vm166, 0
  %170 = vst.msk [vmem:[%s165 + $0x18] sm:$0x1] %vm166, 0
  %171 = vst.msk [vmem:[%s165 + $0x20] sm:$0x1] %vm166, 0
  %172 = vst.msk [vmem:[%s165 + $0x28] sm:$0x1] %vm166, 0
  %173 = vst.msk [vmem:[%s165 + $0x30] sm:$0x1] %vm166, 0
  %174 = vst.msk [vmem:[%s165 + $0x38] sm:$0x1] %vm166, 0
  %vm175 = vcmask 517121
  %176 = vst.msk [vmem:[%s165 + $0x4] sm:$0x2] %vm175, 0
  %177 = vst.msk [vmem:[%s165 + $0xc] sm:$0x2] %vm175, 0
  %178 = vst.msk [vmem:[%s165 + $0x14] sm:$0x2] %vm175, 0
  %179 = vst.msk [vmem:[%s165 + $0x1c] sm:$0x2] %vm175, 0
  %180 = vst.msk [vmem:[%s165 + $0x24] sm:$0x2] %vm175, 0
  %181 = vst.msk [vmem:[%s165 + $0x2c] sm:$0x2] %vm175, 0
  %182 = vst.msk [vmem:[%s165 + $0x34] sm:$0x2] %vm175, 0
  %183 = vst.msk [vmem:[%s165 + $0x3c] sm:$0x2] %vm175, 0
  %v184 = vpack.c.bf16 %v146, %v146
  %v185 = vpack.c.bf16 %v147, %v147
  %v186 = vpack.c.bf16 %v148, %v148
  %v187 = vpack.c.bf16 %v149, %v149
  %v188 = vpack.c.bf16 %v150, %v150
  %v189 = vpack.c.bf16 %v151, %v151
  %v190 = vpack.c.bf16 %v152, %v152
  %v191 = vpack.c.bf16 %v153, %v153
  %v200 = vrot.slane %v184, 7
  %v201 = vrot.slane %v200, 4
  %v202 = vrot.slane %v185, 7
  %v203 = vrot.slane %v202, 4
  %v204 = vrot.slane %v186, 7
  %v205 = vrot.slane %v204, 4
  %v206 = vrot.slane %v187, 7
  %v207 = vrot.slane %v206, 4
  %v208 = vrot.slane %v188, 7
  %v209 = vrot.slane %v208, 4
  %v210 = vrot.slane %v189, 7
  %v211 = vrot.slane %v210, 4
  %v212 = vrot.slane %v190, 7
  %v213 = vrot.slane %v212, 4
  %v214 = vrot.slane %v191, 7
  %v215 = vrot.slane %v214, 4
  %vm232 = vcmask 519169
  %233 = vst.msk [vmem:[%s165] sm:$0xe] %vm232, %v200
  %234 = vst.msk [vmem:[%s165 + $0x4] sm:$0x1] %vm166, %v201
  %235 = vst.msk [vmem:[%s165 + $0x8] sm:$0xe] %vm232, %v202
  %236 = vst.msk [vmem:[%s165 + $0xc] sm:$0x1] %vm166, %v203
  %237 = vst.msk [vmem:[%s165 + $0x10] sm:$0xe] %vm232, %v204
  %238 = vst.msk [vmem:[%s165 + $0x14] sm:$0x1] %vm166, %v205
  %239 = vst.msk [vmem:[%s165 + $0x18] sm:$0xe] %vm232, %v206
  %240 = vst.msk [vmem:[%s165 + $0x1c] sm:$0x1] %vm166, %v207
  %241 = vst.msk [vmem:[%s165 + $0x20] sm:$0xe] %vm232, %v208
  %242 = vst.msk [vmem:[%s165 + $0x24] sm:$0x1] %vm166, %v209
  %243 = vst.msk [vmem:[%s165 + $0x28] sm:$0xe] %vm232, %v210
  %244 = vst.msk [vmem:[%s165 + $0x2c] sm:$0x1] %vm166, %v211
  %245 = vst.msk [vmem:[%s165 + $0x30] sm:$0xe] %vm232, %v212
  %246 = vst.msk [vmem:[%s165 + $0x34] sm:$0x1] %vm166, %v213
  %247 = vst.msk [vmem:[%s165 + $0x38] sm:$0xe] %vm232, %v214
  %248 = vst.msk [vmem:[%s165 + $0x3c] sm:$0x1] %vm166, %v215
  %v249 = vld [vmem:[%s3] sm:$0x7]
  %v250 = vld [vmem:[%s3 + $0x4] sm:$0x7]
  %v251 = vld [vmem:[%s3 + $0x8] sm:$0x7]
  %v252 = vld [vmem:[%s3 + $0xc] sm:$0x7]
  %v253 = vld [vmem:[%s3 + $0x10] sm:$0x7]
  %v254 = vld [vmem:[#allocation2] sm:$0xf]
  %v255 = vld [vmem:[#allocation2 + $0x8] sm:$0xf]
  %v256 = vld [vmem:[#allocation2 + $0x10] sm:$0xf]
  %v257 = vld [vmem:[#allocation2 + $0x18] sm:$0xf]
  %v258 = vld [vmem:[#allocation2 + $0x20] sm:$0xf]
  %v259 = vld [vmem:[#allocation2 + $0x28] sm:$0xf]
  %v260 = vld [vmem:[#allocation2 + $0x30] sm:$0xf]
  %v261 = vld [vmem:[#allocation2 + $0x38] sm:$0xf]
  %v263 = vpack.i.b16 %v249, %v249
  %v265 = vperm.slane %v263, 0
  %v266 = vunpack.c.l.bf16 %v254
  %v267 = vunpack.c.l.bf16 %v255
  %v268 = vunpack.c.l.bf16 %v256
  %v269 = vunpack.c.l.bf16 %v257
  %v270 = vunpack.c.l.bf16 %v258
  %v271 = vunpack.c.l.bf16 %v259
  %v272 = vunpack.c.l.bf16 %v260
  %v273 = vunpack.c.l.bf16 %v261
  %v274 = vunpack.c.l.bf16 %v265
  %v275 = vmul.f32 %v266, %v274
  %v276 = vmul.f32 %v267, %v274
  %v277 = vmul.f32 %v268, %v274
  %v278 = vmul.f32 %v269, %v274
  %v279 = vmul.f32 %v270, %v274
  %v280 = vmul.f32 %v271, %v274
  %v281 = vmul.f32 %v272, %v274
  %v282 = vmul.f32 %v273, %v274
  %v283 = vpack.c.bf16 %v275, %v275
  %v284 = vpack.c.bf16 %v276, %v276
  %v285 = vpack.c.bf16 %v277, %v277
  %v286 = vpack.c.bf16 %v278, %v278
  %v287 = vpack.c.bf16 %v279, %v279
  %v288 = vpack.c.bf16 %v280, %v280
  %v289 = vpack.c.bf16 %v281, %v281
  %v290 = vpack.c.bf16 %v282, %v282
  %v291 = vunpack.c.l.bf16 %v283
  %v292 = vunpack.c.l.bf16 %v284
  %v293 = vunpack.c.l.bf16 %v285
  %v294 = vunpack.c.l.bf16 %v286
  %v295 = vunpack.c.l.bf16 %v287
  %v296 = vunpack.c.l.bf16 %v288
  %v297 = vunpack.c.l.bf16 %v289
  %v298 = vunpack.c.l.bf16 %v290
  %v299 = vadd.f32 %v291, 0.0
  %v300 = vadd.f32 %v292, 0.0
  %v301 = vadd.f32 %v293, 0.0
  %v302 = vadd.f32 %v294, 0.0
  %v303 = vadd.f32 %v295, 0.0
  %v304 = vadd.f32 %v296, 0.0
  %v305 = vadd.f32 %v297, 0.0
  %v306 = vadd.f32 %v298, 0.0
  %v307 = vpack.c.bf16 %v299, %v299
  %v308 = vpack.c.bf16 %v300, %v300
  %v309 = vpack.c.bf16 %v301, %v301
  %v310 = vpack.c.bf16 %v302, %v302
  %v311 = vpack.c.bf16 %v303, %v303
  %v312 = vpack.c.bf16 %v304, %v304
  %v313 = vpack.c.bf16 %v305, %v305
  %v314 = vpack.c.bf16 %v306, %v306
  %v315 = vld [vmem:[#allocation2 + $0x4] sm:$0x1]
  %v316 = vld [vmem:[#allocation2 + $0xc] sm:$0x1]
  %v317 = vld [vmem:[#allocation2 + $0x14] sm:$0x1]
  %v318 = vld [vmem:[#allocation2 + $0x1c] sm:$0x1]
  %v319 = vld [vmem:[#allocation2 + $0x24] sm:$0x1]
  %v320 = vld [vmem:[#allocation2 + $0x2c] sm:$0x1]
  %v321 = vld [vmem:[#allocation2 + $0x34] sm:$0x1]
  %v322 = vld [vmem:[#allocation2 + $0x3c] sm:$0x1]
  %v323 = vshrl.u32 %v249, 16
  %v324 = vpack.i.b16 %v323, %v323
  %v326 = vperm.slane %v324, 0
  %v327 = vunpack.c.l.bf16 %v315
  %v328 = vunpack.c.l.bf16 %v316
  %v329 = vunpack.c.l.bf16 %v317
  %v330 = vunpack.c.l.bf16 %v318
  %v331 = vunpack.c.l.bf16 %v319
  %v332 = vunpack.c.l.bf16 %v320
  %v333 = vunpack.c.l.bf16 %v321
  %v334 = vunpack.c.l.bf16 %v322
  %v335 = vunpack.c.l.bf16 %v326
  %v336 = vmul.f32 %v266, %v335
  %v337 = vmul.f32 %v327, %v335
  %v338 = vmul.f32 %v267, %v335
  %v339 = vmul.f32 %v328, %v335
  %v340 = vmul.f32 %v268, %v335
  %v341 = vmul.f32 %v329, %v335
  %v342 = vmul.f32 %v269, %v335
  %v343 = vmul.f32 %v330, %v335
  %v344 = vmul.f32 %v270, %v335
  %v345 = vmul.f32 %v331, %v335
  %v346 = vmul.f32 %v271, %v335
  %v347 = vmul.f32 %v332, %v335
  %v348 = vmul.f32 %v272, %v335
  %v349 = vmul.f32 %v333, %v335
  %v350 = vmul.f32 %v273, %v335
  %v351 = vmul.f32 %v334, %v335
  %v352 = vpack.c.bf16 %v336, %v336
  %v353 = vpack.c.bf16 %v337, %v337
  %v354 = vpack.c.bf16 %v338, %v338
  %v355 = vpack.c.bf16 %v339, %v339
  %v356 = vpack.c.bf16 %v340, %v340
  %v357 = vpack.c.bf16 %v341, %v341
  %v358 = vpack.c.bf16 %v342, %v342
  %v359 = vpack.c.bf16 %v343, %v343
  %v360 = vpack.c.bf16 %v344, %v344
  %v361 = vpack.c.bf16 %v345, %v345
  %v362 = vpack.c.bf16 %v346, %v346
  %v363 = vpack.c.bf16 %v347, %v347
  %v364 = vpack.c.bf16 %v348, %v348
  %v365 = vpack.c.bf16 %v349, %v349
  %v366 = vpack.c.bf16 %v350, %v350
  %v367 = vpack.c.bf16 %v351, %v351
  %v368 = vunpack.c.l.bf16 %v307
  %v369 = vunpack.c.l.bf16 %v308
  %v370 = vunpack.c.l.bf16 %v309
  %v371 = vunpack.c.l.bf16 %v310
  %v372 = vunpack.c.l.bf16 %v311
  %v373 = vunpack.c.l.bf16 %v312
  %v374 = vunpack.c.l.bf16 %v313
  %v375 = vunpack.c.l.bf16 %v314
  %v376 = vunpack.c.l.bf16 %v352
  %v377 = vunpack.c.l.bf16 %v353
  %v378 = vunpack.c.l.bf16 %v354
  %v379 = vunpack.c.l.bf16 %v355
  %v380 = vunpack.c.l.bf16 %v356
  %v381 = vunpack.c.l.bf16 %v357
  %v382 = vunpack.c.l.bf16 %v358
  %v383 = vunpack.c.l.bf16 %v359
  %v384 = vunpack.c.l.bf16 %v360
  %v385 = vunpack.c.l.bf16 %v361
  %v386 = vunpack.c.l.bf16 %v362
  %v387 = vunpack.c.l.bf16 %v363
  %v388 = vunpack.c.l.bf16 %v364
  %v389 = vunpack.c.l.bf16 %v365
  %v390 = vunpack.c.l.bf16 %v366
  %v391 = vunpack.c.l.bf16 %v367
  %vm408 = vcmask 1046528
  %v409 = vrot.slane %v376, 1
  %v410 = vrot.slane %v377, 1
  %v411 = vsel %vm408, %v409, %v410
  %v412 = vrot.slane %v378, 1
  %v413 = vrot.slane %v379, 1
  %v414 = vsel %vm408, %v412, %v413
  %v415 = vrot.slane %v380, 1
  %v416 = vrot.slane %v381, 1
  %v417 = vsel %vm408, %v415, %v416
  %v418 = vrot.slane %v382, 1
  %v419 = vrot.slane %v383, 1
  %v420 = vsel %vm408, %v418, %v419
  %v421 = vrot.slane %v384, 1
  %v422 = vrot.slane %v385, 1
  %v423 = vsel %vm408, %v421, %v422
  %v424 = vrot.slane %v386, 1
  %v425 = vrot.slane %v387, 1
  %v426 = vsel %vm408, %v424, %v425
  %v427 = vrot.slane %v388, 1
  %v428 = vrot.slane %v389, 1
  %v429 = vsel %vm408, %v427, %v428
  %v430 = vrot.slane %v390, 1
  %v431 = vrot.slane %v391, 1
  %v432 = vsel %vm408, %v430, %v431
  %v441 = vadd.f32 %v368, %v411
  %v442 = vadd.f32 %v369, %v414
  %v443 = vadd.f32 %v370, %v417
  %v444 = vadd.f32 %v371, %v420
  %v445 = vadd.f32 %v372, %v423
  %v446 = vadd.f32 %v373, %v426
  %v447 = vadd.f32 %v374, %v429
  %v448 = vadd.f32 %v375, %v432
  %v449 = vpack.c.bf16 %v441, %v441
  %v450 = vpack.c.bf16 %v442, %v442
  %v451 = vpack.c.bf16 %v443, %v443
  %v452 = vpack.c.bf16 %v444, %v444
  %v453 = vpack.c.bf16 %v445, %v445
  %v454 = vpack.c.bf16 %v446, %v446
  %v455 = vpack.c.bf16 %v447, %v447
  %v456 = vpack.c.bf16 %v448, %v448
  %v457 = vld [vmem:[#allocation2] sm:$0xe]
  %v458 = vld [vmem:[#allocation2 + $0x8] sm:$0xe]
  %v459 = vld [vmem:[#allocation2 + $0x10] sm:$0xe]
  %v460 = vld [vmem:[#allocation2 + $0x18] sm:$0xe]
  %v461 = vld [vmem:[#allocation2 + $0x20] sm:$0xe]
  %v462 = vld [vmem:[#allocation2 + $0x28] sm:$0xe]
  %v463 = vld [vmem:[#allocation2 + $0x30] sm:$0xe]
  %v464 = vld [vmem:[#allocation2 + $0x38] sm:$0xe]
  %v465 = vperm.slane %v263, 1
  %v466 = vunpack.c.l.bf16 %v457
  %v467 = vunpack.c.l.bf16 %v458
  %v468 = vunpack.c.l.bf16 %v459
  %v469 = vunpack.c.l.bf16 %v460
  %v470 = vunpack.c.l.bf16 %v461
  %v471 = vunpack.c.l.bf16 %v462
  %v472 = vunpack.c.l.bf16 %v463
  %v473 = vunpack.c.l.bf16 %v464
  %v474 = vunpack.c.l.bf16 %v465
  %v475 = vmul.f32 %v466, %v474
  %v476 = vmul.f32 %v327, %v474
  %v477 = vmul.f32 %v467, %v474
  %v478 = vmul.f32 %v328, %v474
  %v479 = vmul.f32 %v468, %v474
  %v480 = vmul.f32 %v329, %v474
  %v481 = vmul.f32 %v469, %v474
  %v482 = vmul.f32 %v330, %v474
  %v483 = vmul.f32 %v470, %v474
  %v484 = vmul.f32 %v331, %v474
  %v485 = vmul.f32 %v471, %v474
  %v486 = vmul.f32 %v332, %v474
  %v487 = vmul.f32 %v472, %v474
  %v488 = vmul.f32 %v333, %v474
  %v489 = vmul.f32 %v473, %v474
  %v490 = vmul.f32 %v334, %v474
  %v491 = vpack.c.bf16 %v475, %v475
  %v492 = vpack.c.bf16 %v476, %v476
  %v493 = vpack.c.bf16 %v477, %v477
  %v494 = vpack.c.bf16 %v478, %v478
  %v495 = vpack.c.bf16 %v479, %v479
  %v496 = vpack.c.bf16 %v480, %v480
  %v497 = vpack.c.bf16 %v481, %v481
  %v498 = vpack.c.bf16 %v482, %v482
  %v499 = vpack.c.bf16 %v483, %v483
  %v500 = vpack.c.bf16 %v484, %v484
  %v501 = vpack.c.bf16 %v485, %v485
  %v502 = vpack.c.bf16 %v486, %v486
  %v503 = vpack.c.bf16 %v487, %v487
  %v504 = vpack.c.bf16 %v488, %v488
  %v505 = vpack.c.bf16 %v489, %v489
  %v506 = vpack.c.bf16 %v490, %v490
  %v507 = vunpack.c.l.bf16 %v449
  %v508 = vunpack.c.l.bf16 %v450
  %v509 = vunpack.c.l.bf16 %v451
  %v510 = vunpack.c.l.bf16 %v452
  %v511 = vunpack.c.l.bf16 %v453
  %v512 = vunpack.c.l.bf16 %v454
  %v513 = vunpack.c.l.bf16 %v455
  %v514 = vunpack.c.l.bf16 %v456
  %v515 = vunpack.c.l.bf16 %v491
  %v516 = vunpack.c.l.bf16 %v492
  %v517 = vunpack.c.l.bf16 %v493
  %v518 = vunpack.c.l.bf16 %v494
  %v519 = vunpack.c.l.bf16 %v495
  %v520 = vunpack.c.l.bf16 %v496
  %v521 = vunpack.c.l.bf16 %v497
  %v522 = vunpack.c.l.bf16 %v498
  %v523 = vunpack.c.l.bf16 %v499
  %v524 = vunpack.c.l.bf16 %v500
  %v525 = vunpack.c.l.bf16 %v501
  %v526 = vunpack.c.l.bf16 %v502
  %v527 = vunpack.c.l.bf16 %v503
  %v528 = vunpack.c.l.bf16 %v504
  %v529 = vunpack.c.l.bf16 %v505
  %v530 = vunpack.c.l.bf16 %v506
  %vm547 = vcmask 1045504
  %v548 = vrot.slane %v515, 2
  %v549 = vrot.slane %v516, 2
  %v550 = vsel %vm547, %v548, %v549
  %v551 = vrot.slane %v517, 2
  %v552 = vrot.slane %v518, 2
  %v553 = vsel %vm547, %v551, %v552
  %v554 = vrot.slane %v519, 2
  %v555 = vrot.slane %v520, 2
  %v556 = vsel %vm547, %v554, %v555
  %v557 = vrot.slane %v521, 2
  %v558 = vrot.slane %v522, 2
  %v559 = vsel %vm547, %v557, %v558
  %v560 = vrot.slane %v523, 2
  %v561 = vrot.slane %v524, 2
  %v562 = vsel %vm547, %v560, %v561
  %v563 = vrot.slane %v525, 2
  %v564 = vrot.slane %v526, 2
  %v565 = vsel %vm547, %v563, %v564
  %v566 = vrot.slane %v527, 2
  %v567 = vrot.slane %v528, 2
  %v568 = vsel %vm547, %v566, %v567
  %v569 = vrot.slane %v529, 2
  %v570 = vrot.slane %v530, 2
  %v571 = vsel %vm547, %v569, %v570
  %v580 = vadd.f32 %v507, %v550
  %v581 = vadd.f32 %v508, %v553
  %v582 = vadd.f32 %v509, %v556
  %v583 = vadd.f32 %v510, %v559
  %v584 = vadd.f32 %v511, %v562
  %v585 = vadd.f32 %v512, %v565
  %v586 = vadd.f32 %v513, %v568
  %v587 = vadd.f32 %v514, %v571
  %v588 = vpack.c.bf16 %v580, %v580
  %v589 = vpack.c.bf16 %v581, %v581
  %v590 = vpack.c.bf16 %v582, %v582
  %v591 = vpack.c.bf16 %v583, %v583
  %v592 = vpack.c.bf16 %v584, %v584
  %v593 = vpack.c.bf16 %v585, %v585
  %v594 = vpack.c.bf16 %v586, %v586
  %v595 = vpack.c.bf16 %v587, %v587
  %v596 = vld [vmem:[#allocation2 + $0x4] sm:$0x3]
  %v597 = vld [vmem:[#allocation2 + $0xc] sm:$0x3]
  %v598 = vld [vmem:[#allocation2 + $0x14] sm:$0x3]
  %v599 = vld [vmem:[#allocation2 + $0x1c] sm:$0x3]
  %v600 = vld [vmem:[#allocation2 + $0x24] sm:$0x3]
  %v601 = vld [vmem:[#allocation2 + $0x2c] sm:$0x3]
  %v602 = vld [vmem:[#allocation2 + $0x34] sm:$0x3]
  %v603 = vld [vmem:[#allocation2 + $0x3c] sm:$0x3]
  %v604 = vperm.slane %v324, 1
  %v605 = vunpack.c.l.bf16 %v596
  %v606 = vunpack.c.l.bf16 %v597
  %v607 = vunpack.c.l.bf16 %v598
  %v608 = vunpack.c.l.bf16 %v599
  %v609 = vunpack.c.l.bf16 %v600
  %v610 = vunpack.c.l.bf16 %v601
  %v611 = vunpack.c.l.bf16 %v602
  %v612 = vunpack.c.l.bf16 %v603
  %v613 = vunpack.c.l.bf16 %v604
  %v614 = vmul.f32 %v466, %v613
  %v615 = vmul.f32 %v605, %v613
  %v616 = vmul.f32 %v467, %v613
  %v617 = vmul.f32 %v606, %v613
  %v618 = vmul.f32 %v468, %v613
  %v619 = vmul.f32 %v607, %v613
  %v620 = vmul.f32 %v469, %v613
  %v621 = vmul.f32 %v608, %v613
  %v622 = vmul.f32 %v470, %v613
  %v623 = vmul.f32 %v609, %v613
  %v624 = vmul.f32 %v471, %v613
  %v625 = vmul.f32 %v610, %v613
  %v626 = vmul.f32 %v472, %v613
  %v627 = vmul.f32 %v611, %v613
  %v628 = vmul.f32 %v473, %v613
  %v629 = vmul.f32 %v612, %v613
  %v630 = vpack.c.bf16 %v614, %v614
  %v631 = vpack.c.bf16 %v615, %v615
  %v632 = vpack.c.bf16 %v616, %v616
  %v633 = vpack.c.bf16 %v617, %v617
  %v634 = vpack.c.bf16 %v618, %v618
  %v635 = vpack.c.bf16 %v619, %v619
  %v636 = vpack.c.bf16 %v620, %v620
  %v637 = vpack.c.bf16 %v621, %v621
  %v638 = vpack.c.bf16 %v622, %v622
  %v639 = vpack.c.bf16 %v623, %v623
  %v640 = vpack.c.bf16 %v624, %v624
  %v641 = vpack.c.bf16 %v625, %v625
  %v642 = vpack.c.bf16 %v626, %v626
  %v643 = vpack.c.bf16 %v627, %v627
  %v644 = vpack.c.bf16 %v628, %v628
  %v645 = vpack.c.bf16 %v629, %v629
  %v646 = vunpack.c.l.bf16 %v588
  %v647 = vunpack.c.l.bf16 %v589
  %v648 = vunpack.c.l.bf16 %v590
  %v649 = vunpack.c.l.bf16 %v591
  %v650 = vunpack.c.l.bf16 %v592
  %v651 = vunpack.c.l.bf16 %v593
  %v652 = vunpack.c.l.bf16 %v594
  %v653 = vunpack.c.l.bf16 %v595
  %v654 = vunpack.c.l.bf16 %v630
  %v655 = vunpack.c.l.bf16 %v631
  %v656 = vunpack.c.l.bf16 %v632
  %v657 = vunpack.c.l.bf16 %v633
  %v658 = vunpack.c.l.bf16 %v634
  %v659 = vunpack.c.l.bf16 %v635
  %v660 = vunpack.c.l.bf16 %v636
  %v661 = vunpack.c.l.bf16 %v637
  %v662 = vunpack.c.l.bf16 %v638
  %v663 = vunpack.c.l.bf16 %v639
  %v664 = vunpack.c.l.bf16 %v640
  %v665 = vunpack.c.l.bf16 %v641
  %v666 = vunpack.c.l.bf16 %v642
  %v667 = vunpack.c.l.bf16 %v643
  %v668 = vunpack.c.l.bf16 %v644
  %v669 = vunpack.c.l.bf16 %v645
  %vm686 = vcmask 1044480
  %v687 = vrot.slane %v654, 3
  %v688 = vrot.slane %v655, 3
  %v689 = vsel %vm686, %v687, %v688
  %v690 = vrot.slane %v656, 3
  %v691 = vrot.slane %v657, 3
  %v692 = vsel %vm686, %v690, %v691
  %v693 = vrot.slane %v658, 3
  %v694 = vrot.slane %v659, 3
  %v695 = vsel %vm686, %v693, %v694
  %v696 = vrot.slane %v660, 3
  %v697 = vrot.slane %v661, 3
  %v698 = vsel %vm686, %v696, %v697
  %v699 = vrot.slane %v662, 3
  %v700 = vrot.slane %v663, 3
  %v701 = vsel %vm686, %v699, %v700
  %v702 = vrot.slane %v664, 3
  %v703 = vrot.slane %v665, 3
  %v704 = vsel %vm686, %v702, %v703
  %v705 = vrot.slane %v666, 3
  %v706 = vrot.slane %v667, 3
  %v707 = vsel %vm686, %v705, %v706
  %v708 = vrot.slane %v668, 3
  %v709 = vrot.slane %v669, 3
  %v710 = vsel %vm686, %v708, %v709
  %v719 = vadd.f32 %v646, %v689
  %v720 = vadd.f32 %v647, %v692
  %v721 = vadd.f32 %v648, %v695
  %v722 = vadd.f32 %v649, %v698
  %v723 = vadd.f32 %v650, %v701
  %v724 = vadd.f32 %v651, %v704
  %v725 = vadd.f32 %v652, %v707
  %v726 = vadd.f32 %v653, %v710
  %v727 = vpack.c.bf16 %v719, %v719
  %v728 = vpack.c.bf16 %v720, %v720
  %v729 = vpack.c.bf16 %v721, %v721
  %v730 = vpack.c.bf16 %v722, %v722
  %v731 = vpack.c.bf16 %v723, %v723
  %v732 = vpack.c.bf16 %v724, %v724
  %v733 = vpack.c.bf16 %v725, %v725
  %v734 = vpack.c.bf16 %v726, %v726
  %v735 = vld [vmem:[#allocation2] sm:$0xc]
  %v736 = vld [vmem:[#allocation2 + $0x8] sm:$0xc]
  %v737 = vld [vmem:[#allocation2 + $0x10] sm:$0xc]
  %v738 = vld [vmem:[#allocation2 + $0x18] sm:$0xc]
  %v739 = vld [vmem:[#allocation2 + $0x20] sm:$0xc]
  %v740 = vld [vmem:[#allocation2 + $0x28] sm:$0xc]
  %v741 = vld [vmem:[#allocation2 + $0x30] sm:$0xc]
  %v742 = vld [vmem:[#allocation2 + $0x38] sm:$0xc]
  %v743 = vperm.slane %v263, 2
  %v744 = vunpack.c.l.bf16 %v735
  %v745 = vunpack.c.l.bf16 %v736
  %v746 = vunpack.c.l.bf16 %v737
  %v747 = vunpack.c.l.bf16 %v738
  %v748 = vunpack.c.l.bf16 %v739
  %v749 = vunpack.c.l.bf16 %v740
  %v750 = vunpack.c.l.bf16 %v741
  %v751 = vunpack.c.l.bf16 %v742
  %v752 = vunpack.c.l.bf16 %v743
  %v753 = vmul.f32 %v744, %v752
  %v754 = vmul.f32 %v605, %v752
  %v755 = vmul.f32 %v745, %v752
  %v756 = vmul.f32 %v606, %v752
  %v757 = vmul.f32 %v746, %v752
  %v758 = vmul.f32 %v607, %v752
  %v759 = vmul.f32 %v747, %v752
  %v760 = vmul.f32 %v608, %v752
  %v761 = vmul.f32 %v748, %v752
  %v762 = vmul.f32 %v609, %v752
  %v763 = vmul.f32 %v749, %v752
  %v764 = vmul.f32 %v610, %v752
  %v765 = vmul.f32 %v750, %v752
  %v766 = vmul.f32 %v611, %v752
  %v767 = vmul.f32 %v751, %v752
  %v768 = vmul.f32 %v612, %v752
  %v769 = vpack.c.bf16 %v753, %v753
  %v770 = vpack.c.bf16 %v754, %v754
  %v771 = vpack.c.bf16 %v755, %v755
  %v772 = vpack.c.bf16 %v756, %v756
  %v773 = vpack.c.bf16 %v757, %v757
  %v774 = vpack.c.bf16 %v758, %v758
  %v775 = vpack.c.bf16 %v759, %v759
  %v776 = vpack.c.bf16 %v760, %v760
  %v777 = vpack.c.bf16 %v761, %v761
  %v778 = vpack.c.bf16 %v762, %v762
  %v779 = vpack.c.bf16 %v763, %v763
  %v780 = vpack.c.bf16 %v764, %v764
  %v781 = vpack.c.bf16 %v765, %v765
  %v782 = vpack.c.bf16 %v766, %v766
  %v783 = vpack.c.bf16 %v767, %v767
  %v784 = vpack.c.bf16 %v768, %v768
  %v785 = vunpack.c.l.bf16 %v727
  %v786 = vunpack.c.l.bf16 %v728
  %v787 = vunpack.c.l.bf16 %v729
  %v788 = vunpack.c.l.bf16 %v730
  %v789 = vunpack.c.l.bf16 %v731
  %v790 = vunpack.c.l.bf16 %v732
  %v791 = vunpack.c.l.bf16 %v733
  %v792 = vunpack.c.l.bf16 %v734
  %v793 = vunpack.c.l.bf16 %v769
  %v794 = vunpack.c.l.bf16 %v770
  %v795 = vunpack.c.l.bf16 %v771
  %v796 = vunpack.c.l.bf16 %v772
  %v797 = vunpack.c.l.bf16 %v773
  %v798 = vunpack.c.l.bf16 %v774
  %v799 = vunpack.c.l.bf16 %v775
  %v800 = vunpack.c.l.bf16 %v776
  %v801 = vunpack.c.l.bf16 %v777
  %v802 = vunpack.c.l.bf16 %v778
  %v803 = vunpack.c.l.bf16 %v779
  %v804 = vunpack.c.l.bf16 %v780
  %v805 = vunpack.c.l.bf16 %v781
  %v806 = vunpack.c.l.bf16 %v782
  %v807 = vunpack.c.l.bf16 %v783
  %v808 = vunpack.c.l.bf16 %v784
  %vm825 = vcmask 1043456
  %v826 = vrot.slane %v793, 4
  %v827 = vrot.slane %v794, 4
  %v828 = vsel %vm825, %v826, %v827
  %v829 = vrot.slane %v795, 4
  %v830 = vrot.slane %v796, 4
  %v831 = vsel %vm825, %v829, %v830
  %v832 = vrot.slane %v797, 4
  %v833 = vrot.slane %v798, 4
  %v834 = vsel %vm825, %v832, %v833
  %v835 = vrot.slane %v799, 4
  %v836 = vrot.slane %v800, 4
  %v837 = vsel %vm825, %v835, %v836
  %v838 = vrot.slane %v801, 4
  %v839 = vrot.slane %v802, 4
  %v840 = vsel %vm825, %v838, %v839
  %v841 = vrot.slane %v803, 4
  %v842 = vrot.slane %v804, 4
  %v843 = vsel %vm825, %v841, %v842
  %v844 = vrot.slane %v805, 4
  %v845 = vrot.slane %v806, 4
  %v846 = vsel %vm825, %v844, %v845
  %v847 = vrot.slane %v807, 4
  %v848 = vrot.slane %v808, 4
  %v849 = vsel %vm825, %v847, %v848
  %v858 = vadd.f32 %v785, %v828
  %v859 = vadd.f32 %v786, %v831
  %v860 = vadd.f32 %v787, %v834
  %v861 = vadd.f32 %v788, %v837
  %v862 = vadd.f32 %v789, %v840
  %v863 = vadd.f32 %v790, %v843
  %v864 = vadd.f32 %v791, %v846
  %v865 = vadd.f32 %v792, %v849
  %v866 = vpack.c.bf16 %v858, %v858
  %v867 = vpack.c.bf16 %v859, %v859
  %v868 = vpack.c.bf16 %v860, %v860
  %v869 = vpack.c.bf16 %v861, %v861
  %v870 = vpack.c.bf16 %v862, %v862
  %v871 = vpack.c.bf16 %v863, %v863
  %v872 = vpack.c.bf16 %v864, %v864
  %v873 = vpack.c.bf16 %v865, %v865
  %v874 = vunpack.c.l.bf16 %v866
  %v875 = vunpack.c.l.bf16 %v867
  %v876 = vunpack.c.l.bf16 %v868
  %v877 = vunpack.c.l.bf16 %v869
  %v878 = vunpack.c.l.bf16 %v870
  %v879 = vunpack.c.l.bf16 %v871
  %v880 = vunpack.c.l.bf16 %v872
  %v881 = vunpack.c.l.bf16 %v873
  %v882 = vadd.f32 %v874, 0.0
  %v883 = vadd.f32 %v875, 0.0
  %v884 = vadd.f32 %v876, 0.0
  %v885 = vadd.f32 %v877, 0.0
  %v886 = vadd.f32 %v878, 0.0
  %v887 = vadd.f32 %v879, 0.0
  %v888 = vadd.f32 %v880, 0.0
  %v889 = vadd.f32 %v881, 0.0
  %s890 = scalar_lea.vmem [#allocation2], 8
  %v891 = vld [vmem:[%s890] sm:$0xf]
  %v892 = vld [vmem:[%s890 + $0x8] sm:$0xf]
  %v893 = vld [vmem:[%s890 + $0x10] sm:$0xf]
  %v894 = vld [vmem:[%s890 + $0x18] sm:$0xf]
  %v895 = vld [vmem:[%s890 + $0x20] sm:$0xf]
  %v896 = vld [vmem:[%s890 + $0x28] sm:$0xf]
  %v897 = vld [vmem:[%s890 + $0x30] sm:$0xf]
  %v898 = vld [vmem:[%s890 + $0x38] sm:$0xf]
  %v900 = vpack.i.b16 %v250, %v250
  %v902 = vperm.slane %v900, 0
  %v903 = vunpack.c.l.bf16 %v891
  %v904 = vunpack.c.l.bf16 %v892
  %v905 = vunpack.c.l.bf16 %v893
  %v906 = vunpack.c.l.bf16 %v894
  %v907 = vunpack.c.l.bf16 %v895
  %v908 = vunpack.c.l.bf16 %v896
  %v909 = vunpack.c.l.bf16 %v897
  %v910 = vunpack.c.l.bf16 %v898
  %v911 = vunpack.c.l.bf16 %v902
  %v912 = vmul.f32 %v903, %v911
  %v913 = vmul.f32 %v904, %v911
  %v914 = vmul.f32 %v905, %v911
  %v915 = vmul.f32 %v906, %v911
  %v916 = vmul.f32 %v907, %v911
  %v917 = vmul.f32 %v908, %v911
  %v918 = vmul.f32 %v909, %v911
  %v919 = vmul.f32 %v910, %v911
  %v920 = vpack.c.bf16 %v912, %v912
  %v921 = vpack.c.bf16 %v913, %v913
  %v922 = vpack.c.bf16 %v914, %v914
  %v923 = vpack.c.bf16 %v915, %v915
  %v924 = vpack.c.bf16 %v916, %v916
  %v925 = vpack.c.bf16 %v917, %v917
  %v926 = vpack.c.bf16 %v918, %v918
  %v927 = vpack.c.bf16 %v919, %v919
  %v928 = vunpack.c.l.bf16 %v920
  %v929 = vunpack.c.l.bf16 %v921
  %v930 = vunpack.c.l.bf16 %v922
  %v931 = vunpack.c.l.bf16 %v923
  %v932 = vunpack.c.l.bf16 %v924
  %v933 = vunpack.c.l.bf16 %v925
  %v934 = vunpack.c.l.bf16 %v926
  %v935 = vunpack.c.l.bf16 %v927
  %v936 = vadd.f32 %v928, 0.0
  %v937 = vadd.f32 %v929, 0.0
  %v938 = vadd.f32 %v930, 0.0
  %v939 = vadd.f32 %v931, 0.0
  %v940 = vadd.f32 %v932, 0.0
  %v941 = vadd.f32 %v933, 0.0
  %v942 = vadd.f32 %v934, 0.0
  %v943 = vadd.f32 %v935, 0.0
  %v944 = vpack.c.bf16 %v936, %v936
  %v945 = vpack.c.bf16 %v937, %v937
  %v946 = vpack.c.bf16 %v938, %v938
  %v947 = vpack.c.bf16 %v939, %v939
  %v948 = vpack.c.bf16 %v940, %v940
  %v949 = vpack.c.bf16 %v941, %v941
  %v950 = vpack.c.bf16 %v942, %v942
  %v951 = vpack.c.bf16 %v943, %v943
  %v952 = vld [vmem:[%s890 + $0x4] sm:$0x1]
  %v953 = vld [vmem:[%s890 + $0xc] sm:$0x1]
  %v954 = vld [vmem:[%s890 + $0x14] sm:$0x1]
  %v955 = vld [vmem:[%s890 + $0x1c] sm:$0x1]
  %v956 = vld [vmem:[%s890 + $0x24] sm:$0x1]
  %v957 = vld [vmem:[%s890 + $0x2c] sm:$0x1]
  %v958 = vld [vmem:[%s890 + $0x34] sm:$0x1]
  %v959 = vld [vmem:[%s890 + $0x3c] sm:$0x1]
  %v960 = vshrl.u32 %v250, 16
  %v961 = vpack.i.b16 %v960, %v960
  %v963 = vperm.slane %v961, 0
  %v964 = vunpack.c.l.bf16 %v952
  %v965 = vunpack.c.l.bf16 %v953
  %v966 = vunpack.c.l.bf16 %v954
  %v967 = vunpack.c.l.bf16 %v955
  %v968 = vunpack.c.l.bf16 %v956
  %v969 = vunpack.c.l.bf16 %v957
  %v970 = vunpack.c.l.bf16 %v958
  %v971 = vunpack.c.l.bf16 %v959
  %v972 = vunpack.c.l.bf16 %v963
  %v973 = vmul.f32 %v903, %v972
  %v974 = vmul.f32 %v964, %v972
  %v975 = vmul.f32 %v904, %v972
  %v976 = vmul.f32 %v965, %v972
  %v977 = vmul.f32 %v905, %v972
  %v978 = vmul.f32 %v966, %v972
  %v979 = vmul.f32 %v906, %v972
  %v980 = vmul.f32 %v967, %v972
  %v981 = vmul.f32 %v907, %v972
  %v982 = vmul.f32 %v968, %v972
  %v983 = vmul.f32 %v908, %v972
  %v984 = vmul.f32 %v969, %v972
  %v985 = vmul.f32 %v909, %v972
  %v986 = vmul.f32 %v970, %v972
  %v987 = vmul.f32 %v910, %v972
  %v988 = vmul.f32 %v971, %v972
  %v989 = vpack.c.bf16 %v973, %v973
  %v990 = vpack.c.bf16 %v974, %v974
  %v991 = vpack.c.bf16 %v975, %v975
  %v992 = vpack.c.bf16 %v976, %v976
  %v993 = vpack.c.bf16 %v977, %v977
  %v994 = vpack.c.bf16 %v978, %v978
  %v995 = vpack.c.bf16 %v979, %v979
  %v996 = vpack.c.bf16 %v980, %v980
  %v997 = vpack.c.bf16 %v981, %v981
  %v998 = vpack.c.bf16 %v982, %v982
  %v999 = vpack.c.bf16 %v983, %v983
  %v1000 = vpack.c.bf16 %v984, %v984
  %v1001 = vpack.c.bf16 %v985, %v985
  %v1002 = vpack.c.bf16 %v986, %v986
  %v1003 = vpack.c.bf16 %v987, %v987
  %v1004 = vpack.c.bf16 %v988, %v988
  %v1005 = vunpack.c.l.bf16 %v944
  %v1006 = vunpack.c.l.bf16 %v945
  %v1007 = vunpack.c.l.bf16 %v946
  %v1008 = vunpack.c.l.bf16 %v947
  %v1009 = vunpack.c.l.bf16 %v948
  %v1010 = vunpack.c.l.bf16 %v949
  %v1011 = vunpack.c.l.bf16 %v950
  %v1012 = vunpack.c.l.bf16 %v951
  %v1013 = vunpack.c.l.bf16 %v989
  %v1014 = vunpack.c.l.bf16 %v990
  %v1015 = vunpack.c.l.bf16 %v991
  %v1016 = vunpack.c.l.bf16 %v992
  %v1017 = vunpack.c.l.bf16 %v993
  %v1018 = vunpack.c.l.bf16 %v994
  %v1019 = vunpack.c.l.bf16 %v995
  %v1020 = vunpack.c.l.bf16 %v996
  %v1021 = vunpack.c.l.bf16 %v997
  %v1022 = vunpack.c.l.bf16 %v998
  %v1023 = vunpack.c.l.bf16 %v999
  %v1024 = vunpack.c.l.bf16 %v1000
  %v1025 = vunpack.c.l.bf16 %v1001
  %v1026 = vunpack.c.l.bf16 %v1002
  %v1027 = vunpack.c.l.bf16 %v1003
  %v1028 = vunpack.c.l.bf16 %v1004
  %v1045 = vrot.slane %v1013, 1
  %v1046 = vrot.slane %v1014, 1
  %v1047 = vsel %vm408, %v1045, %v1046
  %v1048 = vrot.slane %v1015, 1
  %v1049 = vrot.slane %v1016, 1
  %v1050 = vsel %vm408, %v1048, %v1049
  %v1051 = vrot.slane %v1017, 1
  %v1052 = vrot.slane %v1018, 1
  %v1053 = vsel %vm408, %v1051, %v1052
  %v1054 = vrot.slane %v1019, 1
  %v1055 = vrot.slane %v1020, 1
  %v1056 = vsel %vm408, %v1054, %v1055
  %v1057 = vrot.slane %v1021, 1
  %v1058 = vrot.slane %v1022, 1
  %v1059 = vsel %vm408, %v1057, %v1058
  %v1060 = vrot.slane %v1023, 1
  %v1061 = vrot.slane %v1024, 1
  %v1062 = vsel %vm408, %v1060, %v1061
  %v1063 = vrot.slane %v1025, 1
  %v1064 = vrot.slane %v1026, 1
  %v1065 = vsel %vm408, %v1063, %v1064
  %v1066 = vrot.slane %v1027, 1
  %v1067 = vrot.slane %v1028, 1
  %v1068 = vsel %vm408, %v1066, %v1067
  %v1077 = vadd.f32 %v1005, %v1047
  %v1078 = vadd.f32 %v1006, %v1050
  %v1079 = vadd.f32 %v1007, %v1053
  %v1080 = vadd.f32 %v1008, %v1056
  %v1081 = vadd.f32 %v1009, %v1059
  %v1082 = vadd.f32 %v1010, %v1062
  %v1083 = vadd.f32 %v1011, %v1065
  %v1084 = vadd.f32 %v1012, %v1068
  %v1085 = vpack.c.bf16 %v1077, %v1077
  %v1086 = vpack.c.bf16 %v1078, %v1078
  %v1087 = vpack.c.bf16 %v1079, %v1079
  %v1088 = vpack.c.bf16 %v1080, %v1080
  %v1089 = vpack.c.bf16 %v1081, %v1081
  %v1090 = vpack.c.bf16 %v1082, %v1082
  %v1091 = vpack.c.bf16 %v1083, %v1083
  %v1092 = vpack.c.bf16 %v1084, %v1084
  %v1093 = vld [vmem:[%s890] sm:$0xe]
  %v1094 = vld [vmem:[%s890 + $0x8] sm:$0xe]
  %v1095 = vld [vmem:[%s890 + $0x10] sm:$0xe]
  %v1096 = vld [vmem:[%s890 + $0x18] sm:$0xe]
  %v1097 = vld [vmem:[%s890 + $0x20] sm:$0xe]
  %v1098 = vld [vmem:[%s890 + $0x28] sm:$0xe]
  %v1099 = vld [vmem:[%s890 + $0x30] sm:$0xe]
  %v1100 = vld [vmem:[%s890 + $0x38] sm:$0xe]
  %v1101 = vperm.slane %v900, 1
  %v1102 = vunpack.c.l.bf16 %v1093
  %v1103 = vunpack.c.l.bf16 %v1094
  %v1104 = vunpack.c.l.bf16 %v1095
  %v1105 = vunpack.c.l.bf16 %v1096
  %v1106 = vunpack.c.l.bf16 %v1097
  %v1107 = vunpack.c.l.bf16 %v1098
  %v1108 = vunpack.c.l.bf16 %v1099
  %v1109 = vunpack.c.l.bf16 %v1100
  %v1110 = vunpack.c.l.bf16 %v1101
  %v1111 = vmul.f32 %v1102, %v1110
  %v1112 = vmul.f32 %v964, %v1110
  %v1113 = vmul.f32 %v1103, %v1110
  %v1114 = vmul.f32 %v965, %v1110
  %v1115 = vmul.f32 %v1104, %v1110
  %v1116 = vmul.f32 %v966, %v1110
  %v1117 = vmul.f32 %v1105, %v1110
  %v1118 = vmul.f32 %v967, %v1110
  %v1119 = vmul.f32 %v1106, %v1110
  %v1120 = vmul.f32 %v968, %v1110
  %v1121 = vmul.f32 %v1107, %v1110
  %v1122 = vmul.f32 %v969, %v1110
  %v1123 = vmul.f32 %v1108, %v1110
  %v1124 = vmul.f32 %v970, %v1110
  %v1125 = vmul.f32 %v1109, %v1110
  %v1126 = vmul.f32 %v971, %v1110
  %v1127 = vpack.c.bf16 %v1111, %v1111
  %v1128 = vpack.c.bf16 %v1112, %v1112
  %v1129 = vpack.c.bf16 %v1113, %v1113
  %v1130 = vpack.c.bf16 %v1114, %v1114
  %v1131 = vpack.c.bf16 %v1115, %v1115
  %v1132 = vpack.c.bf16 %v1116, %v1116
  %v1133 = vpack.c.bf16 %v1117, %v1117
  %v1134 = vpack.c.bf16 %v1118, %v1118
  %v1135 = vpack.c.bf16 %v1119, %v1119
  %v1136 = vpack.c.bf16 %v1120, %v1120
  %v1137 = vpack.c.bf16 %v1121, %v1121
  %v1138 = vpack.c.bf16 %v1122, %v1122
  %v1139 = vpack.c.bf16 %v1123, %v1123
  %v1140 = vpack.c.bf16 %v1124, %v1124
  %v1141 = vpack.c.bf16 %v1125, %v1125
  %v1142 = vpack.c.bf16 %v1126, %v1126
  %v1143 = vunpack.c.l.bf16 %v1085
  %v1144 = vunpack.c.l.bf16 %v1086
  %v1145 = vunpack.c.l.bf16 %v1087
  %v1146 = vunpack.c.l.bf16 %v1088
  %v1147 = vunpack.c.l.bf16 %v1089
  %v1148 = vunpack.c.l.bf16 %v1090
  %v1149 = vunpack.c.l.bf16 %v1091
  %v1150 = vunpack.c.l.bf16 %v1092
  %v1151 = vunpack.c.l.bf16 %v1127
  %v1152 = vunpack.c.l.bf16 %v1128
  %v1153 = vunpack.c.l.bf16 %v1129
  %v1154 = vunpack.c.l.bf16 %v1130
  %v1155 = vunpack.c.l.bf16 %v1131
  %v1156 = vunpack.c.l.bf16 %v1132
  %v1157 = vunpack.c.l.bf16 %v1133
  %v1158 = vunpack.c.l.bf16 %v1134
  %v1159 = vunpack.c.l.bf16 %v1135
  %v1160 = vunpack.c.l.bf16 %v1136
  %v1161 = vunpack.c.l.bf16 %v1137
  %v1162 = vunpack.c.l.bf16 %v1138
  %v1163 = vunpack.c.l.bf16 %v1139
  %v1164 = vunpack.c.l.bf16 %v1140
  %v1165 = vunpack.c.l.bf16 %v1141
  %v1166 = vunpack.c.l.bf16 %v1142
  %v1183 = vrot.slane %v1151, 2
  %v1184 = vrot.slane %v1152, 2
  %v1185 = vsel %vm547, %v1183, %v1184
  %v1186 = vrot.slane %v1153, 2
  %v1187 = vrot.slane %v1154, 2
  %v1188 = vsel %vm547, %v1186, %v1187
  %v1189 = vrot.slane %v1155, 2
  %v1190 = vrot.slane %v1156, 2
  %v1191 = vsel %vm547, %v1189, %v1190
  %v1192 = vrot.slane %v1157, 2
  %v1193 = vrot.slane %v1158, 2
  %v1194 = vsel %vm547, %v1192, %v1193
  %v1195 = vrot.slane %v1159, 2
  %v1196 = vrot.slane %v1160, 2
  %v1197 = vsel %vm547, %v1195, %v1196
  %v1198 = vrot.slane %v1161, 2
  %v1199 = vrot.slane %v1162, 2
  %v1200 = vsel %vm547, %v1198, %v1199
  %v1201 = vrot.slane %v1163, 2
  %v1202 = vrot.slane %v1164, 2
  %v1203 = vsel %vm547, %v1201, %v1202
  %v1204 = vrot.slane %v1165, 2
  %v1205 = vrot.slane %v1166, 2
  %v1206 = vsel %vm547, %v1204, %v1205
  %v1215 = vadd.f32 %v1143, %v1185
  %v1216 = vadd.f32 %v1144, %v1188
  %v1217 = vadd.f32 %v1145, %v1191
  %v1218 = vadd.f32 %v1146, %v1194
  %v1219 = vadd.f32 %v1147, %v1197
  %v1220 = vadd.f32 %v1148, %v1200
  %v1221 = vadd.f32 %v1149, %v1203
  %v1222 = vadd.f32 %v1150, %v1206
  %v1223 = vpack.c.bf16 %v1215, %v1215
  %v1224 = vpack.c.bf16 %v1216, %v1216
  %v1225 = vpack.c.bf16 %v1217, %v1217
  %v1226 = vpack.c.bf16 %v1218, %v1218
  %v1227 = vpack.c.bf16 %v1219, %v1219
  %v1228 = vpack.c.bf16 %v1220, %v1220
  %v1229 = vpack.c.bf16 %v1221, %v1221
  %v1230 = vpack.c.bf16 %v1222, %v1222
  %v1231 = vld [vmem:[%s890 + $0x4] sm:$0x3]
  %v1232 = vld [vmem:[%s890 + $0xc] sm:$0x3]
  %v1233 = vld [vmem:[%s890 + $0x14] sm:$0x3]
  %v1234 = vld [vmem:[%s890 + $0x1c] sm:$0x3]
  %v1235 = vld [vmem:[%s890 + $0x24] sm:$0x3]
  %v1236 = vld [vmem:[%s890 + $0x2c] sm:$0x3]
  %v1237 = vld [vmem:[%s890 + $0x34] sm:$0x3]
  %v1238 = vld [vmem:[%s890 + $0x3c] sm:$0x3]
  %v1239 = vperm.slane %v961, 1
  %v1240 = vunpack.c.l.bf16 %v1231
  %v1241 = vunpack.c.l.bf16 %v1232
  %v1242 = vunpack.c.l.bf16 %v1233
  %v1243 = vunpack.c.l.bf16 %v1234
  %v1244 = vunpack.c.l.bf16 %v1235
  %v1245 = vunpack.c.l.bf16 %v1236
  %v1246 = vunpack.c.l.bf16 %v1237
  %v1247 = vunpack.c.l.bf16 %v1238
  %v1248 = vunpack.c.l.bf16 %v1239
  %v1249 = vmul.f32 %v1102, %v1248
  %v1250 = vmul.f32 %v1240, %v1248
  %v1251 = vmul.f32 %v1103, %v1248
  %v1252 = vmul.f32 %v1241, %v1248
  %v1253 = vmul.f32 %v1104, %v1248
  %v1254 = vmul.f32 %v1242, %v1248
  %v1255 = vmul.f32 %v1105, %v1248
  %v1256 = vmul.f32 %v1243, %v1248
  %v1257 = vmul.f32 %v1106, %v1248
  %v1258 = vmul.f32 %v1244, %v1248
  %v1259 = vmul.f32 %v1107, %v1248
  %v1260 = vmul.f32 %v1245, %v1248
  %v1261 = vmul.f32 %v1108, %v1248
  %v1262 = vmul.f32 %v1246, %v1248
  %v1263 = vmul.f32 %v1109, %v1248
  %v1264 = vmul.f32 %v1247, %v1248
  %v1265 = vpack.c.bf16 %v1249, %v1249
  %v1266 = vpack.c.bf16 %v1250, %v1250
  %v1267 = vpack.c.bf16 %v1251, %v1251
  %v1268 = vpack.c.bf16 %v1252, %v1252
  %v1269 = vpack.c.bf16 %v1253, %v1253
  %v1270 = vpack.c.bf16 %v1254, %v1254
  %v1271 = vpack.c.bf16 %v1255, %v1255
  %v1272 = vpack.c.bf16 %v1256, %v1256
  %v1273 = vpack.c.bf16 %v1257, %v1257
  %v1274 = vpack.c.bf16 %v1258, %v1258
  %v1275 = vpack.c.bf16 %v1259, %v1259
  %v1276 = vpack.c.bf16 %v1260, %v1260
  %v1277 = vpack.c.bf16 %v1261, %v1261
  %v1278 = vpack.c.bf16 %v1262, %v1262
  %v1279 = vpack.c.bf16 %v1263, %v1263
  %v1280 = vpack.c.bf16 %v1264, %v1264
  %v1281 = vunpack.c.l.bf16 %v1223
  %v1282 = vunpack.c.l.bf16 %v1224
  %v1283 = vunpack.c.l.bf16 %v1225
  %v1284 = vunpack.c.l.bf16 %v1226
  %v1285 = vunpack.c.l.bf16 %v1227
  %v1286 = vunpack.c.l.bf16 %v1228
  %v1287 = vunpack.c.l.bf16 %v1229
  %v1288 = vunpack.c.l.bf16 %v1230
  %v1289 = vunpack.c.l.bf16 %v1265
  %v1290 = vunpack.c.l.bf16 %v1266
  %v1291 = vunpack.c.l.bf16 %v1267
  %v1292 = vunpack.c.l.bf16 %v1268
  %v1293 = vunpack.c.l.bf16 %v1269
  %v1294 = vunpack.c.l.bf16 %v1270
  %v1295 = vunpack.c.l.bf16 %v1271
  %v1296 = vunpack.c.l.bf16 %v1272
  %v1297 = vunpack.c.l.bf16 %v1273
  %v1298 = vunpack.c.l.bf16 %v1274
  %v1299 = vunpack.c.l.bf16 %v1275
  %v1300 = vunpack.c.l.bf16 %v1276
  %v1301 = vunpack.c.l.bf16 %v1277
  %v1302 = vunpack.c.l.bf16 %v1278
  %v1303 = vunpack.c.l.bf16 %v1279
  %v1304 = vunpack.c.l.bf16 %v1280
  %v1321 = vrot.slane %v1289, 3
  %v1322 = vrot.slane %v1290, 3
  %v1323 = vsel %vm686, %v1321, %v1322
  %v1324 = vrot.slane %v1291, 3
  %v1325 = vrot.slane %v1292, 3
  %v1326 = vsel %vm686, %v1324, %v1325
  %v1327 = vrot.slane %v1293, 3
  %v1328 = vrot.slane %v1294, 3
  %v1329 = vsel %vm686, %v1327, %v1328
  %v1330 = vrot.slane %v1295, 3
  %v1331 = vrot.slane %v1296, 3
  %v1332 = vsel %vm686, %v1330, %v1331
  %v1333 = vrot.slane %v1297, 3
  %v1334 = vrot.slane %v1298, 3
  %v1335 = vsel %vm686, %v1333, %v1334
  %v1336 = vrot.slane %v1299, 3
  %v1337 = vrot.slane %v1300, 3
  %v1338 = vsel %vm686, %v1336, %v1337
  %v1339 = vrot.slane %v1301, 3
  %v1340 = vrot.slane %v1302, 3
  %v1341 = vsel %vm686, %v1339, %v1340
  %v1342 = vrot.slane %v1303, 3
  %v1343 = vrot.slane %v1304, 3
  %v1344 = vsel %vm686, %v1342, %v1343
  %v1353 = vadd.f32 %v1281, %v1323
  %v1354 = vadd.f32 %v1282, %v1326
  %v1355 = vadd.f32 %v1283, %v1329
  %v1356 = vadd.f32 %v1284, %v1332
  %v1357 = vadd.f32 %v1285, %v1335
  %v1358 = vadd.f32 %v1286, %v1338
  %v1359 = vadd.f32 %v1287, %v1341
  %v1360 = vadd.f32 %v1288, %v1344
  %v1361 = vpack.c.bf16 %v1353, %v1353
  %v1362 = vpack.c.bf16 %v1354, %v1354
  %v1363 = vpack.c.bf16 %v1355, %v1355
  %v1364 = vpack.c.bf16 %v1356, %v1356
  %v1365 = vpack.c.bf16 %v1357, %v1357
  %v1366 = vpack.c.bf16 %v1358, %v1358
  %v1367 = vpack.c.bf16 %v1359, %v1359
  %v1368 = vpack.c.bf16 %v1360, %v1360
  %v1369 = vld [vmem:[%s890] sm:$0xc]
  %v1370 = vld [vmem:[%s890 + $0x8] sm:$0xc]
  %v1371 = vld [vmem:[%s890 + $0x10] sm:$0xc]
  %v1372 = vld [vmem:[%s890 + $0x18] sm:$0xc]
  %v1373 = vld [vmem:[%s890 + $0x20] sm:$0xc]
  %v1374 = vld [vmem:[%s890 + $0x28] sm:$0xc]
  %v1375 = vld [vmem:[%s890 + $0x30] sm:$0xc]
  %v1376 = vld [vmem:[%s890 + $0x38] sm:$0xc]
  %v1377 = vperm.slane %v900, 2
  %v1378 = vunpack.c.l.bf16 %v1369
  %v1379 = vunpack.c.l.bf16 %v1370
  %v1380 = vunpack.c.l.bf16 %v1371
  %v1381 = vunpack.c.l.bf16 %v1372
  %v1382 = vunpack.c.l.bf16 %v1373
  %v1383 = vunpack.c.l.bf16 %v1374
  %v1384 = vunpack.c.l.bf16 %v1375
  %v1385 = vunpack.c.l.bf16 %v1376
  %v1386 = vunpack.c.l.bf16 %v1377
  %v1387 = vmul.f32 %v1378, %v1386
  %v1388 = vmul.f32 %v1240, %v1386
  %v1389 = vmul.f32 %v1379, %v1386
  %v1390 = vmul.f32 %v1241, %v1386
  %v1391 = vmul.f32 %v1380, %v1386
  %v1392 = vmul.f32 %v1242, %v1386
  %v1393 = vmul.f32 %v1381, %v1386
  %v1394 = vmul.f32 %v1243, %v1386
  %v1395 = vmul.f32 %v1382, %v1386
  %v1396 = vmul.f32 %v1244, %v1386
  %v1397 = vmul.f32 %v1383, %v1386
  %v1398 = vmul.f32 %v1245, %v1386
  %v1399 = vmul.f32 %v1384, %v1386
  %v1400 = vmul.f32 %v1246, %v1386
  %v1401 = vmul.f32 %v1385, %v1386
  %v1402 = vmul.f32 %v1247, %v1386
  %v1403 = vpack.c.bf16 %v1387, %v1387
  %v1404 = vpack.c.bf16 %v1388, %v1388
  %v1405 = vpack.c.bf16 %v1389, %v1389
  %v1406 = vpack.c.bf16 %v1390, %v1390
  %v1407 = vpack.c.bf16 %v1391, %v1391
  %v1408 = vpack.c.bf16 %v1392, %v1392
  %v1409 = vpack.c.bf16 %v1393, %v1393
  %v1410 = vpack.c.bf16 %v1394, %v1394
  %v1411 = vpack.c.bf16 %v1395, %v1395
  %v1412 = vpack.c.bf16 %v1396, %v1396
  %v1413 = vpack.c.bf16 %v1397, %v1397
  %v1414 = vpack.c.bf16 %v1398, %v1398
  %v1415 = vpack.c.bf16 %v1399, %v1399
  %v1416 = vpack.c.bf16 %v1400, %v1400
  %v1417 = vpack.c.bf16 %v1401, %v1401
  %v1418 = vpack.c.bf16 %v1402, %v1402
  %v1419 = vunpack.c.l.bf16 %v1361
  %v1420 = vunpack.c.l.bf16 %v1362
  %v1421 = vunpack.c.l.bf16 %v1363
  %v1422 = vunpack.c.l.bf16 %v1364
  %v1423 = vunpack.c.l.bf16 %v1365
  %v1424 = vunpack.c.l.bf16 %v1366
  %v1425 = vunpack.c.l.bf16 %v1367
  %v1426 = vunpack.c.l.bf16 %v1368
  %v1427 = vunpack.c.l.bf16 %v1403
  %v1428 = vunpack.c.l.bf16 %v1404
  %v1429 = vunpack.c.l.bf16 %v1405
  %v1430 = vunpack.c.l.bf16 %v1406
  %v1431 = vunpack.c.l.bf16 %v1407
  %v1432 = vunpack.c.l.bf16 %v1408
  %v1433 = vunpack.c.l.bf16 %v1409
  %v1434 = vunpack.c.l.bf16 %v1410
  %v1435 = vunpack.c.l.bf16 %v1411
  %v1436 = vunpack.c.l.bf16 %v1412
  %v1437 = vunpack.c.l.bf16 %v1413
  %v1438 = vunpack.c.l.bf16 %v1414
  %v1439 = vunpack.c.l.bf16 %v1415
  %v1440 = vunpack.c.l.bf16 %v1416
  %v1441 = vunpack.c.l.bf16 %v1417
  %v1442 = vunpack.c.l.bf16 %v1418
  %v1459 = vrot.slane %v1427, 4
  %v1460 = vrot.slane %v1428, 4
  %v1461 = vsel %vm825, %v1459, %v1460
  %v1462 = vrot.slane %v1429, 4
  %v1463 = vrot.slane %v1430, 4
  %v1464 = vsel %vm825, %v1462, %v1463
  %v1465 = vrot.slane %v1431, 4
  %v1466 = vrot.slane %v1432, 4
  %v1467 = vsel %vm825, %v1465, %v1466
  %v1468 = vrot.slane %v1433, 4
  %v1469 = vrot.slane %v1434, 4
  %v1470 = vsel %vm825, %v1468, %v1469
  %v1471 = vrot.slane %v1435, 4
  %v1472 = vrot.slane %v1436, 4
  %v1473 = vsel %vm825, %v1471, %v1472
  %v1474 = vrot.slane %v1437, 4
  %v1475 = vrot.slane %v1438, 4
  %v1476 = vsel %vm825, %v1474, %v1475
  %v1477 = vrot.slane %v1439, 4
  %v1478 = vrot.slane %v1440, 4
  %v1479 = vsel %vm825, %v1477, %v1478
  %v1480 = vrot.slane %v1441, 4
  %v1481 = vrot.slane %v1442, 4
  %v1482 = vsel %vm825, %v1480, %v1481
  %v1491 = vadd.f32 %v1419, %v1461
  %v1492 = vadd.f32 %v1420, %v1464
  %v1493 = vadd.f32 %v1421, %v1467
  %v1494 = vadd.f32 %v1422, %v1470
  %v1495 = vadd.f32 %v1423, %v1473
  %v1496 = vadd.f32 %v1424, %v1476
  %v1497 = vadd.f32 %v1425, %v1479
  %v1498 = vadd.f32 %v1426, %v1482
  %v1499 = vpack.c.bf16 %v1491, %v1491
  %v1500 = vpack.c.bf16 %v1492, %v1492
  %v1501 = vpack.c.bf16 %v1493, %v1493
  %v1502 = vpack.c.bf16 %v1494, %v1494
  %v1503 = vpack.c.bf16 %v1495, %v1495
  %v1504 = vpack.c.bf16 %v1496, %v1496
  %v1505 = vpack.c.bf16 %v1497, %v1497
  %v1506 = vpack.c.bf16 %v1498, %v1498
  %v1507 = vunpack.c.l.bf16 %v1499
  %v1508 = vunpack.c.l.bf16 %v1500
  %v1509 = vunpack.c.l.bf16 %v1501
  %v1510 = vunpack.c.l.bf16 %v1502
  %v1511 = vunpack.c.l.bf16 %v1503
  %v1512 = vunpack.c.l.bf16 %v1504
  %v1513 = vunpack.c.l.bf16 %v1505
  %v1514 = vunpack.c.l.bf16 %v1506
  %v1515 = vadd.f32 %v882, %v1507
  %v1516 = vadd.f32 %v883, %v1508
  %v1517 = vadd.f32 %v884, %v1509
  %v1518 = vadd.f32 %v885, %v1510
  %v1519 = vadd.f32 %v886, %v1511
  %v1520 = vadd.f32 %v887, %v1512
  %v1521 = vadd.f32 %v888, %v1513
  %v1522 = vadd.f32 %v889, %v1514
  %v1523 = vld [vmem:[%s165] sm:$0xf]
  %v1524 = vld [vmem:[%s165 + $0x8] sm:$0xf]
  %v1525 = vld [vmem:[%s165 + $0x10] sm:$0xf]
  %v1526 = vld [vmem:[%s165 + $0x18] sm:$0xf]
  %v1527 = vld [vmem:[%s165 + $0x20] sm:$0xf]
  %v1528 = vld [vmem:[%s165 + $0x28] sm:$0xf]
  %v1529 = vld [vmem:[%s165 + $0x30] sm:$0xf]
  %v1530 = vld [vmem:[%s165 + $0x38] sm:$0xf]
  %v1532 = vpack.i.b16 %v251, %v251
  %v1534 = vperm.slane %v1532, 0
  %v1535 = vunpack.c.l.bf16 %v1523
  %v1536 = vunpack.c.l.bf16 %v1524
  %v1537 = vunpack.c.l.bf16 %v1525
  %v1538 = vunpack.c.l.bf16 %v1526
  %v1539 = vunpack.c.l.bf16 %v1527
  %v1540 = vunpack.c.l.bf16 %v1528
  %v1541 = vunpack.c.l.bf16 %v1529
  %v1542 = vunpack.c.l.bf16 %v1530
  %v1543 = vunpack.c.l.bf16 %v1534
  %v1544 = vmul.f32 %v1535, %v1543
  %v1545 = vmul.f32 %v1536, %v1543
  %v1546 = vmul.f32 %v1537, %v1543
  %v1547 = vmul.f32 %v1538, %v1543
  %v1548 = vmul.f32 %v1539, %v1543
  %v1549 = vmul.f32 %v1540, %v1543
  %v1550 = vmul.f32 %v1541, %v1543
  %v1551 = vmul.f32 %v1542, %v1543
  %v1552 = vpack.c.bf16 %v1544, %v1544
  %v1553 = vpack.c.bf16 %v1545, %v1545
  %v1554 = vpack.c.bf16 %v1546, %v1546
  %v1555 = vpack.c.bf16 %v1547, %v1547
  %v1556 = vpack.c.bf16 %v1548, %v1548
  %v1557 = vpack.c.bf16 %v1549, %v1549
  %v1558 = vpack.c.bf16 %v1550, %v1550
  %v1559 = vpack.c.bf16 %v1551, %v1551
  %v1560 = vunpack.c.l.bf16 %v1552
  %v1561 = vunpack.c.l.bf16 %v1553
  %v1562 = vunpack.c.l.bf16 %v1554
  %v1563 = vunpack.c.l.bf16 %v1555
  %v1564 = vunpack.c.l.bf16 %v1556
  %v1565 = vunpack.c.l.bf16 %v1557
  %v1566 = vunpack.c.l.bf16 %v1558
  %v1567 = vunpack.c.l.bf16 %v1559
  %v1568 = vadd.f32 %v1560, 0.0
  %v1569 = vadd.f32 %v1561, 0.0
  %v1570 = vadd.f32 %v1562, 0.0
  %v1571 = vadd.f32 %v1563, 0.0
  %v1572 = vadd.f32 %v1564, 0.0
  %v1573 = vadd.f32 %v1565, 0.0
  %v1574 = vadd.f32 %v1566, 0.0
  %v1575 = vadd.f32 %v1567, 0.0
  %v1576 = vpack.c.bf16 %v1568, %v1568
  %v1577 = vpack.c.bf16 %v1569, %v1569
  %v1578 = vpack.c.bf16 %v1570, %v1570
  %v1579 = vpack.c.bf16 %v1571, %v1571
  %v1580 = vpack.c.bf16 %v1572, %v1572
  %v1581 = vpack.c.bf16 %v1573, %v1573
  %v1582 = vpack.c.bf16 %v1574, %v1574
  %v1583 = vpack.c.bf16 %v1575, %v1575
  %v1584 = vld [vmem:[%s165 + $0x4] sm:$0x1]
  %v1585 = vld [vmem:[%s165 + $0xc] sm:$0x1]
  %v1586 = vld [vmem:[%s165 + $0x14] sm:$0x1]
  %v1587 = vld [vmem:[%s165 + $0x1c] sm:$0x1]
  %v1588 = vld [vmem:[%s165 + $0x24] sm:$0x1]
  %v1589 = vld [vmem:[%s165 + $0x2c] sm:$0x1]
  %v1590 = vld [vmem:[%s165 + $0x34] sm:$0x1]
  %v1591 = vld [vmem:[%s165 + $0x3c] sm:$0x1]
  %v1592 = vshrl.u32 %v251, 16
  %v1593 = vpack.i.b16 %v1592, %v1592
  %v1595 = vperm.slane %v1593, 0
  %v1596 = vunpack.c.l.bf16 %v1584
  %v1597 = vunpack.c.l.bf16 %v1585
  %v1598 = vunpack.c.l.bf16 %v1586
  %v1599 = vunpack.c.l.bf16 %v1587
  %v1600 = vunpack.c.l.bf16 %v1588
  %v1601 = vunpack.c.l.bf16 %v1589
  %v1602 = vunpack.c.l.bf16 %v1590
  %v1603 = vunpack.c.l.bf16 %v1591
  %v1604 = vunpack.c.l.bf16 %v1595
  %v1605 = vmul.f32 %v1535, %v1604
  %v1606 = vmul.f32 %v1596, %v1604
  %v1607 = vmul.f32 %v1536, %v1604
  %v1608 = vmul.f32 %v1597, %v1604
  %v1609 = vmul.f32 %v1537, %v1604
  %v1610 = vmul.f32 %v1598, %v1604
  %v1611 = vmul.f32 %v1538, %v1604
  %v1612 = vmul.f32 %v1599, %v1604
  %v1613 = vmul.f32 %v1539, %v1604
  %v1614 = vmul.f32 %v1600, %v1604
  %v1615 = vmul.f32 %v1540, %v1604
  %v1616 = vmul.f32 %v1601, %v1604
  %v1617 = vmul.f32 %v1541, %v1604
  %v1618 = vmul.f32 %v1602, %v1604
  %v1619 = vmul.f32 %v1542, %v1604
  %v1620 = vmul.f32 %v1603, %v1604
  %v1621 = vpack.c.bf16 %v1605, %v1605
  %v1622 = vpack.c.bf16 %v1606, %v1606
  %v1623 = vpack.c.bf16 %v1607, %v1607
  %v1624 = vpack.c.bf16 %v1608, %v1608
  %v1625 = vpack.c.bf16 %v1609, %v1609
  %v1626 = vpack.c.bf16 %v1610, %v1610
  %v1627 = vpack.c.bf16 %v1611, %v1611
  %v1628 = vpack.c.bf16 %v1612, %v1612
  %v1629 = vpack.c.bf16 %v1613, %v1613
  %v1630 = vpack.c.bf16 %v1614, %v1614
  %v1631 = vpack.c.bf16 %v1615, %v1615
  %v1632 = vpack.c.bf16 %v1616, %v1616
  %v1633 = vpack.c.bf16 %v1617, %v1617
  %v1634 = vpack.c.bf16 %v1618, %v1618
  %v1635 = vpack.c.bf16 %v1619, %v1619
  %v1636 = vpack.c.bf16 %v1620, %v1620
  %v1637 = vunpack.c.l.bf16 %v1576
  %v1638 = vunpack.c.l.bf16 %v1577
  %v1639 = vunpack.c.l.bf16 %v1578
  %v1640 = vunpack.c.l.bf16 %v1579
  %v1641 = vunpack.c.l.bf16 %v1580
  %v1642 = vunpack.c.l.bf16 %v1581
  %v1643 = vunpack.c.l.bf16 %v1582
  %v1644 = vunpack.c.l.bf16 %v1583
  %v1645 = vunpack.c.l.bf16 %v1621
  %v1646 = vunpack.c.l.bf16 %v1622
  %v1647 = vunpack.c.l.bf16 %v1623
  %v1648 = vunpack.c.l.bf16 %v1624
  %v1649 = vunpack.c.l.bf16 %v1625
  %v1650 = vunpack.c.l.bf16 %v1626
  %v1651 = vunpack.c.l.bf16 %v1627
  %v1652 = vunpack.c.l.bf16 %v1628
  %v1653 = vunpack.c.l.bf16 %v1629
  %v1654 = vunpack.c.l.bf16 %v1630
  %v1655 = vunpack.c.l.bf16 %v1631
  %v1656 = vunpack.c.l.bf16 %v1632
  %v1657 = vunpack.c.l.bf16 %v1633
  %v1658 = vunpack.c.l.bf16 %v1634
  %v1659 = vunpack.c.l.bf16 %v1635
  %v1660 = vunpack.c.l.bf16 %v1636
  %v1677 = vrot.slane %v1645, 1
  %v1678 = vrot.slane %v1646, 1
  %v1679 = vsel %vm408, %v1677, %v1678
  %v1680 = vrot.slane %v1647, 1
  %v1681 = vrot.slane %v1648, 1
  %v1682 = vsel %vm408, %v1680, %v1681
  %v1683 = vrot.slane %v1649, 1
  %v1684 = vrot.slane %v1650, 1
  %v1685 = vsel %vm408, %v1683, %v1684
  %v1686 = vrot.slane %v1651, 1
  %v1687 = vrot.slane %v1652, 1
  %v1688 = vsel %vm408, %v1686, %v1687
  %v1689 = vrot.slane %v1653, 1
  %v1690 = vrot.slane %v1654, 1
  %v1691 = vsel %vm408, %v1689, %v1690
  %v1692 = vrot.slane %v1655, 1
  %v1693 = vrot.slane %v1656, 1
  %v1694 = vsel %vm408, %v1692, %v1693
  %v1695 = vrot.slane %v1657, 1
  %v1696 = vrot.slane %v1658, 1
  %v1697 = vsel %vm408, %v1695, %v1696
  %v1698 = vrot.slane %v1659, 1
  %v1699 = vrot.slane %v1660, 1
  %v1700 = vsel %vm408, %v1698, %v1699
  %v1709 = vadd.f32 %v1637, %v1679
  %v1710 = vadd.f32 %v1638, %v1682
  %v1711 = vadd.f32 %v1639, %v1685
  %v1712 = vadd.f32 %v1640, %v1688
  %v1713 = vadd.f32 %v1641, %v1691
  %v1714 = vadd.f32 %v1642, %v1694
  %v1715 = vadd.f32 %v1643, %v1697
  %v1716 = vadd.f32 %v1644, %v1700
  %v1717 = vpack.c.bf16 %v1709, %v1709
  %v1718 = vpack.c.bf16 %v1710, %v1710
  %v1719 = vpack.c.bf16 %v1711, %v1711
  %v1720 = vpack.c.bf16 %v1712, %v1712
  %v1721 = vpack.c.bf16 %v1713, %v1713
  %v1722 = vpack.c.bf16 %v1714, %v1714
  %v1723 = vpack.c.bf16 %v1715, %v1715
  %v1724 = vpack.c.bf16 %v1716, %v1716
  %v1725 = vld [vmem:[%s165] sm:$0xe]
  %v1726 = vld [vmem:[%s165 + $0x8] sm:$0xe]
  %v1727 = vld [vmem:[%s165 + $0x10] sm:$0xe]
  %v1728 = vld [vmem:[%s165 + $0x18] sm:$0xe]
  %v1729 = vld [vmem:[%s165 + $0x20] sm:$0xe]
  %v1730 = vld [vmem:[%s165 + $0x28] sm:$0xe]
  %v1731 = vld [vmem:[%s165 + $0x30] sm:$0xe]
  %v1732 = vld [vmem:[%s165 + $0x38] sm:$0xe]
  %v1733 = vperm.slane %v1532, 1
  %v1734 = vunpack.c.l.bf16 %v1725
  %v1735 = vunpack.c.l.bf16 %v1726
  %v1736 = vunpack.c.l.bf16 %v1727
  %v1737 = vunpack.c.l.bf16 %v1728
  %v1738 = vunpack.c.l.bf16 %v1729
  %v1739 = vunpack.c.l.bf16 %v1730
  %v1740 = vunpack.c.l.bf16 %v1731
  %v1741 = vunpack.c.l.bf16 %v1732
  %v1742 = vunpack.c.l.bf16 %v1733
  %v1743 = vmul.f32 %v1734, %v1742
  %v1744 = vmul.f32 %v1596, %v1742
  %v1745 = vmul.f32 %v1735, %v1742
  %v1746 = vmul.f32 %v1597, %v1742
  %v1747 = vmul.f32 %v1736, %v1742
  %v1748 = vmul.f32 %v1598, %v1742
  %v1749 = vmul.f32 %v1737, %v1742
  %v1750 = vmul.f32 %v1599, %v1742
  %v1751 = vmul.f32 %v1738, %v1742
  %v1752 = vmul.f32 %v1600, %v1742
  %v1753 = vmul.f32 %v1739, %v1742
  %v1754 = vmul.f32 %v1601, %v1742
  %v1755 = vmul.f32 %v1740, %v1742
  %v1756 = vmul.f32 %v1602, %v1742
  %v1757 = vmul.f32 %v1741, %v1742
  %v1758 = vmul.f32 %v1603, %v1742
  %v1759 = vpack.c.bf16 %v1743, %v1743
  %v1760 = vpack.c.bf16 %v1744, %v1744
  %v1761 = vpack.c.bf16 %v1745, %v1745
  %v1762 = vpack.c.bf16 %v1746, %v1746
  %v1763 = vpack.c.bf16 %v1747, %v1747
  %v1764 = vpack.c.bf16 %v1748, %v1748
  %v1765 = vpack.c.bf16 %v1749, %v1749
  %v1766 = vpack.c.bf16 %v1750, %v1750
  %v1767 = vpack.c.bf16 %v1751, %v1751
  %v1768 = vpack.c.bf16 %v1752, %v1752
  %v1769 = vpack.c.bf16 %v1753, %v1753
  %v1770 = vpack.c.bf16 %v1754, %v1754
  %v1771 = vpack.c.bf16 %v1755, %v1755
  %v1772 = vpack.c.bf16 %v1756, %v1756
  %v1773 = vpack.c.bf16 %v1757, %v1757
  %v1774 = vpack.c.bf16 %v1758, %v1758
  %v1775 = vunpack.c.l.bf16 %v1717
  %v1776 = vunpack.c.l.bf16 %v1718
  %v1777 = vunpack.c.l.bf16 %v1719
  %v1778 = vunpack.c.l.bf16 %v1720
  %v1779 = vunpack.c.l.bf16 %v1721
  %v1780 = vunpack.c.l.bf16 %v1722
  %v1781 = vunpack.c.l.bf16 %v1723
  %v1782 = vunpack.c.l.bf16 %v1724
  %v1783 = vunpack.c.l.bf16 %v1759
  %v1784 = vunpack.c.l.bf16 %v1760
  %v1785 = vunpack.c.l.bf16 %v1761
  %v1786 = vunpack.c.l.bf16 %v1762
  %v1787 = vunpack.c.l.bf16 %v1763
  %v1788 = vunpack.c.l.bf16 %v1764
  %v1789 = vunpack.c.l.bf16 %v1765
  %v1790 = vunpack.c.l.bf16 %v1766
  %v1791 = vunpack.c.l.bf16 %v1767
  %v1792 = vunpack.c.l.bf16 %v1768
  %v1793 = vunpack.c.l.bf16 %v1769
  %v1794 = vunpack.c.l.bf16 %v1770
  %v1795 = vunpack.c.l.bf16 %v1771
  %v1796 = vunpack.c.l.bf16 %v1772
  %v1797 = vunpack.c.l.bf16 %v1773
  %v1798 = vunpack.c.l.bf16 %v1774
  %v1815 = vrot.slane %v1783, 2
  %v1816 = vrot.slane %v1784, 2
  %v1817 = vsel %vm547, %v1815, %v1816
  %v1818 = vrot.slane %v1785, 2
  %v1819 = vrot.slane %v1786, 2
  %v1820 = vsel %vm547, %v1818, %v1819
  %v1821 = vrot.slane %v1787, 2
  %v1822 = vrot.slane %v1788, 2
  %v1823 = vsel %vm547, %v1821, %v1822
  %v1824 = vrot.slane %v1789, 2
  %v1825 = vrot.slane %v1790, 2
  %v1826 = vsel %vm547, %v1824, %v1825
  %v1827 = vrot.slane %v1791, 2
  %v1828 = vrot.slane %v1792, 2
  %v1829 = vsel %vm547, %v1827, %v1828
  %v1830 = vrot.slane %v1793, 2
  %v1831 = vrot.slane %v1794, 2
  %v1832 = vsel %vm547, %v1830, %v1831
  %v1833 = vrot.slane %v1795, 2
  %v1834 = vrot.slane %v1796, 2
  %v1835 = vsel %vm547, %v1833, %v1834
  %v1836 = vrot.slane %v1797, 2
  %v1837 = vrot.slane %v1798, 2
  %v1838 = vsel %vm547, %v1836, %v1837
  %v1847 = vadd.f32 %v1775, %v1817
  %v1848 = vadd.f32 %v1776, %v1820
  %v1849 = vadd.f32 %v1777, %v1823
  %v1850 = vadd.f32 %v1778, %v1826
  %v1851 = vadd.f32 %v1779, %v1829
  %v1852 = vadd.f32 %v1780, %v1832
  %v1853 = vadd.f32 %v1781, %v1835
  %v1854 = vadd.f32 %v1782, %v1838
  %v1855 = vpack.c.bf16 %v1847, %v1847
  %v1856 = vpack.c.bf16 %v1848, %v1848
  %v1857 = vpack.c.bf16 %v1849, %v1849
  %v1858 = vpack.c.bf16 %v1850, %v1850
  %v1859 = vpack.c.bf16 %v1851, %v1851
  %v1860 = vpack.c.bf16 %v1852, %v1852
  %v1861 = vpack.c.bf16 %v1853, %v1853
  %v1862 = vpack.c.bf16 %v1854, %v1854
  %v1863 = vld [vmem:[%s165 + $0x4] sm:$0x3]
  %v1864 = vld [vmem:[%s165 + $0xc] sm:$0x3]
  %v1865 = vld [vmem:[%s165 + $0x14] sm:$0x3]
  %v1866 = vld [vmem:[%s165 + $0x1c] sm:$0x3]
  %v1867 = vld [vmem:[%s165 + $0x24] sm:$0x3]
  %v1868 = vld [vmem:[%s165 + $0x2c] sm:$0x3]
  %v1869 = vld [vmem:[%s165 + $0x34] sm:$0x3]
  %v1870 = vld [vmem:[%s165 + $0x3c] sm:$0x3]
  %v1871 = vperm.slane %v1593, 1
  %v1872 = vunpack.c.l.bf16 %v1863
  %v1873 = vunpack.c.l.bf16 %v1864
  %v1874 = vunpack.c.l.bf16 %v1865
  %v1875 = vunpack.c.l.bf16 %v1866
  %v1876 = vunpack.c.l.bf16 %v1867
  %v1877 = vunpack.c.l.bf16 %v1868
  %v1878 = vunpack.c.l.bf16 %v1869
  %v1879 = vunpack.c.l.bf16 %v1870
  %v1880 = vunpack.c.l.bf16 %v1871
  %v1881 = vmul.f32 %v1734, %v1880
  %v1882 = vmul.f32 %v1872, %v1880
  %v1883 = vmul.f32 %v1735, %v1880
  %v1884 = vmul.f32 %v1873, %v1880
  %v1885 = vmul.f32 %v1736, %v1880
  %v1886 = vmul.f32 %v1874, %v1880
  %v1887 = vmul.f32 %v1737, %v1880
  %v1888 = vmul.f32 %v1875, %v1880
  %v1889 = vmul.f32 %v1738, %v1880
  %v1890 = vmul.f32 %v1876, %v1880
  %v1891 = vmul.f32 %v1739, %v1880
  %v1892 = vmul.f32 %v1877, %v1880
  %v1893 = vmul.f32 %v1740, %v1880
  %v1894 = vmul.f32 %v1878, %v1880
  %v1895 = vmul.f32 %v1741, %v1880
  %v1896 = vmul.f32 %v1879, %v1880
  %v1897 = vpack.c.bf16 %v1881, %v1881
  %v1898 = vpack.c.bf16 %v1882, %v1882
  %v1899 = vpack.c.bf16 %v1883, %v1883
  %v1900 = vpack.c.bf16 %v1884, %v1884
  %v1901 = vpack.c.bf16 %v1885, %v1885
  %v1902 = vpack.c.bf16 %v1886, %v1886
  %v1903 = vpack.c.bf16 %v1887, %v1887
  %v1904 = vpack.c.bf16 %v1888, %v1888
  %v1905 = vpack.c.bf16 %v1889, %v1889
  %v1906 = vpack.c.bf16 %v1890, %v1890
  %v1907 = vpack.c.bf16 %v1891, %v1891
  %v1908 = vpack.c.bf16 %v1892, %v1892
  %v1909 = vpack.c.bf16 %v1893, %v1893
  %v1910 = vpack.c.bf16 %v1894, %v1894
  %v1911 = vpack.c.bf16 %v1895, %v1895
  %v1912 = vpack.c.bf16 %v1896, %v1896
  %v1913 = vunpack.c.l.bf16 %v1855
  %v1914 = vunpack.c.l.bf16 %v1856
  %v1915 = vunpack.c.l.bf16 %v1857
  %v1916 = vunpack.c.l.bf16 %v1858
  %v1917 = vunpack.c.l.bf16 %v1859
  %v1918 = vunpack.c.l.bf16 %v1860
  %v1919 = vunpack.c.l.bf16 %v1861
  %v1920 = vunpack.c.l.bf16 %v1862
  %v1921 = vunpack.c.l.bf16 %v1897
  %v1922 = vunpack.c.l.bf16 %v1898
  %v1923 = vunpack.c.l.bf16 %v1899
  %v1924 = vunpack.c.l.bf16 %v1900
  %v1925 = vunpack.c.l.bf16 %v1901
  %v1926 = vunpack.c.l.bf16 %v1902
  %v1927 = vunpack.c.l.bf16 %v1903
  %v1928 = vunpack.c.l.bf16 %v1904
  %v1929 = vunpack.c.l.bf16 %v1905
  %v1930 = vunpack.c.l.bf16 %v1906
  %v1931 = vunpack.c.l.bf16 %v1907
  %v1932 = vunpack.c.l.bf16 %v1908
  %v1933 = vunpack.c.l.bf16 %v1909
  %v1934 = vunpack.c.l.bf16 %v1910
  %v1935 = vunpack.c.l.bf16 %v1911
  %v1936 = vunpack.c.l.bf16 %v1912
  %v1953 = vrot.slane %v1921, 3
  %v1954 = vrot.slane %v1922, 3
  %v1955 = vsel %vm686, %v1953, %v1954
  %v1956 = vrot.slane %v1923, 3
  %v1957 = vrot.slane %v1924, 3
  %v1958 = vsel %vm686, %v1956, %v1957
  %v1959 = vrot.slane %v1925, 3
  %v1960 = vrot.slane %v1926, 3
  %v1961 = vsel %vm686, %v1959, %v1960
  %v1962 = vrot.slane %v1927, 3
  %v1963 = vrot.slane %v1928, 3
  %v1964 = vsel %vm686, %v1962, %v1963
  %v1965 = vrot.slane %v1929, 3
  %v1966 = vrot.slane %v1930, 3
  %v1967 = vsel %vm686, %v1965, %v1966
  %v1968 = vrot.slane %v1931, 3
  %v1969 = vrot.slane %v1932, 3
  %v1970 = vsel %vm686, %v1968, %v1969
  %v1971 = vrot.slane %v1933, 3
  %v1972 = vrot.slane %v1934, 3
  %v1973 = vsel %vm686, %v1971, %v1972
  %v1974 = vrot.slane %v1935, 3
  %v1975 = vrot.slane %v1936, 3
  %v1976 = vsel %vm686, %v1974, %v1975
  %v1985 = vadd.f32 %v1913, %v1955
  %v1986 = vadd.f32 %v1914, %v1958
  %v1987 = vadd.f32 %v1915, %v1961
  %v1988 = vadd.f32 %v1916, %v1964
  %v1989 = vadd.f32 %v1917, %v1967
  %v1990 = vadd.f32 %v1918, %v1970
  %v1991 = vadd.f32 %v1919, %v1973
  %v1992 = vadd.f32 %v1920, %v1976
  %v1993 = vpack.c.bf16 %v1985, %v1985
  %v1994 = vpack.c.bf16 %v1986, %v1986
  %v1995 = vpack.c.bf16 %v1987, %v1987
  %v1996 = vpack.c.bf16 %v1988, %v1988
  %v1997 = vpack.c.bf16 %v1989, %v1989
  %v1998 = vpack.c.bf16 %v1990, %v1990
  %v1999 = vpack.c.bf16 %v1991, %v1991
  %v2000 = vpack.c.bf16 %v1992, %v1992
  %v2001 = vld [vmem:[%s165] sm:$0xc]
  %v2002 = vld [vmem:[%s165 + $0x8] sm:$0xc]
  %v2003 = vld [vmem:[%s165 + $0x10] sm:$0xc]
  %v2004 = vld [vmem:[%s165 + $0x18] sm:$0xc]
  %v2005 = vld [vmem:[%s165 + $0x20] sm:$0xc]
  %v2006 = vld [vmem:[%s165 + $0x28] sm:$0xc]
  %v2007 = vld [vmem:[%s165 + $0x30] sm:$0xc]
  %v2008 = vld [vmem:[%s165 + $0x38] sm:$0xc]
  %v2009 = vperm.slane %v1532, 2
  %v2010 = vunpack.c.l.bf16 %v2001
  %v2011 = vunpack.c.l.bf16 %v2002
  %v2012 = vunpack.c.l.bf16 %v2003
  %v2013 = vunpack.c.l.bf16 %v2004
  %v2014 = vunpack.c.l.bf16 %v2005
  %v2015 = vunpack.c.l.bf16 %v2006
  %v2016 = vunpack.c.l.bf16 %v2007
  %v2017 = vunpack.c.l.bf16 %v2008
  %v2018 = vunpack.c.l.bf16 %v2009
  %v2019 = vmul.f32 %v2010, %v2018
  %v2020 = vmul.f32 %v1872, %v2018
  %v2021 = vmul.f32 %v2011, %v2018
  %v2022 = vmul.f32 %v1873, %v2018
  %v2023 = vmul.f32 %v2012, %v2018
  %v2024 = vmul.f32 %v1874, %v2018
  %v2025 = vmul.f32 %v2013, %v2018
  %v2026 = vmul.f32 %v1875, %v2018
  %v2027 = vmul.f32 %v2014, %v2018
  %v2028 = vmul.f32 %v1876, %v2018
  %v2029 = vmul.f32 %v2015, %v2018
  %v2030 = vmul.f32 %v1877, %v2018
  %v2031 = vmul.f32 %v2016, %v2018
  %v2032 = vmul.f32 %v1878, %v2018
  %v2033 = vmul.f32 %v2017, %v2018
  %v2034 = vmul.f32 %v1879, %v2018
  %v2035 = vpack.c.bf16 %v2019, %v2019
  %v2036 = vpack.c.bf16 %v2020, %v2020
  %v2037 = vpack.c.bf16 %v2021, %v2021
  %v2038 = vpack.c.bf16 %v2022, %v2022
  %v2039 = vpack.c.bf16 %v2023, %v2023
  %v2040 = vpack.c.bf16 %v2024, %v2024
  %v2041 = vpack.c.bf16 %v2025, %v2025
  %v2042 = vpack.c.bf16 %v2026, %v2026
  %v2043 = vpack.c.bf16 %v2027, %v2027
  %v2044 = vpack.c.bf16 %v2028, %v2028
  %v2045 = vpack.c.bf16 %v2029, %v2029
  %v2046 = vpack.c.bf16 %v2030, %v2030
  %v2047 = vpack.c.bf16 %v2031, %v2031
  %v2048 = vpack.c.bf16 %v2032, %v2032
  %v2049 = vpack.c.bf16 %v2033, %v2033
  %v2050 = vpack.c.bf16 %v2034, %v2034
  %v2051 = vunpack.c.l.bf16 %v1993
  %v2052 = vunpack.c.l.bf16 %v1994
  %v2053 = vunpack.c.l.bf16 %v1995
  %v2054 = vunpack.c.l.bf16 %v1996
  %v2055 = vunpack.c.l.bf16 %v1997
  %v2056 = vunpack.c.l.bf16 %v1998
  %v2057 = vunpack.c.l.bf16 %v1999
  %v2058 = vunpack.c.l.bf16 %v2000
  %v2059 = vunpack.c.l.bf16 %v2035
  %v2060 = vunpack.c.l.bf16 %v2036
  %v2061 = vunpack.c.l.bf16 %v2037
  %v2062 = vunpack.c.l.bf16 %v2038
  %v2063 = vunpack.c.l.bf16 %v2039
  %v2064 = vunpack.c.l.bf16 %v2040
  %v2065 = vunpack.c.l.bf16 %v2041
  %v2066 = vunpack.c.l.bf16 %v2042
  %v2067 = vunpack.c.l.bf16 %v2043
  %v2068 = vunpack.c.l.bf16 %v2044
  %v2069 = vunpack.c.l.bf16 %v2045
  %v2070 = vunpack.c.l.bf16 %v2046
  %v2071 = vunpack.c.l.bf16 %v2047
  %v2072 = vunpack.c.l.bf16 %v2048
  %v2073 = vunpack.c.l.bf16 %v2049
  %v2074 = vunpack.c.l.bf16 %v2050
  %v2091 = vrot.slane %v2059, 4
  %v2092 = vrot.slane %v2060, 4
  %v2093 = vsel %vm825, %v2091, %v2092
  %v2094 = vrot.slane %v2061, 4
  %v2095 = vrot.slane %v2062, 4
  %v2096 = vsel %vm825, %v2094, %v2095
  %v2097 = vrot.slane %v2063, 4
  %v2098 = vrot.slane %v2064, 4
  %v2099 = vsel %vm825, %v2097, %v2098
  %v2100 = vrot.slane %v2065, 4
  %v2101 = vrot.slane %v2066, 4
  %v2102 = vsel %vm825, %v2100, %v2101
  %v2103 = vrot.slane %v2067, 4
  %v2104 = vrot.slane %v2068, 4
  %v2105 = vsel %vm825, %v2103, %v2104
  %v2106 = vrot.slane %v2069, 4
  %v2107 = vrot.slane %v2070, 4
  %v2108 = vsel %vm825, %v2106, %v2107
  %v2109 = vrot.slane %v2071, 4
  %v2110 = vrot.slane %v2072, 4
  %v2111 = vsel %vm825, %v2109, %v2110
  %v2112 = vrot.slane %v2073, 4
  %v2113 = vrot.slane %v2074, 4
  %v2114 = vsel %vm825, %v2112, %v2113
  %v2123 = vadd.f32 %v2051, %v2093
  %v2124 = vadd.f32 %v2052, %v2096
  %v2125 = vadd.f32 %v2053, %v2099
  %v2126 = vadd.f32 %v2054, %v2102
  %v2127 = vadd.f32 %v2055, %v2105
  %v2128 = vadd.f32 %v2056, %v2108
  %v2129 = vadd.f32 %v2057, %v2111
  %v2130 = vadd.f32 %v2058, %v2114
  %v2131 = vpack.c.bf16 %v2123, %v2123
  %v2132 = vpack.c.bf16 %v2124, %v2124
  %v2133 = vpack.c.bf16 %v2125, %v2125
  %v2134 = vpack.c.bf16 %v2126, %v2126
  %v2135 = vpack.c.bf16 %v2127, %v2127
  %v2136 = vpack.c.bf16 %v2128, %v2128
  %v2137 = vpack.c.bf16 %v2129, %v2129
  %v2138 = vpack.c.bf16 %v2130, %v2130
  %v2139 = vunpack.c.l.bf16 %v2131
  %v2140 = vunpack.c.l.bf16 %v2132
  %v2141 = vunpack.c.l.bf16 %v2133
  %v2142 = vunpack.c.l.bf16 %v2134
  %v2143 = vunpack.c.l.bf16 %v2135
  %v2144 = vunpack.c.l.bf16 %v2136
  %v2145 = vunpack.c.l.bf16 %v2137
  %v2146 = vunpack.c.l.bf16 %v2138
  %v2147 = vadd.f32 %v1515, %v2139
  %v2148 = vadd.f32 %v1516, %v2140
  %v2149 = vadd.f32 %v1517, %v2141
  %v2150 = vadd.f32 %v1518, %v2142
  %v2151 = vadd.f32 %v1519, %v2143
  %v2152 = vadd.f32 %v1520, %v2144
  %v2153 = vadd.f32 %v1521, %v2145
  %v2154 = vadd.f32 %v1522, %v2146
  %s2155 = scalar_lea.vmem [#allocation2], 24
  %v2156 = vld [vmem:[%s2155] sm:$0xf]
  %v2157 = vld [vmem:[%s2155 + $0x8] sm:$0xf]
  %v2158 = vld [vmem:[%s2155 + $0x10] sm:$0xf]
  %v2159 = vld [vmem:[%s2155 + $0x18] sm:$0xf]
  %v2160 = vld [vmem:[%s2155 + $0x20] sm:$0xf]
  %v2161 = vld [vmem:[%s2155 + $0x28] sm:$0xf]
  %v2162 = vld [vmem:[%s2155 + $0x30] sm:$0xf]
  %v2163 = vld [vmem:[%s2155 + $0x38] sm:$0xf]
  %v2165 = vpack.i.b16 %v252, %v252
  %v2167 = vperm.slane %v2165, 0
  %v2168 = vunpack.c.l.bf16 %v2156
  %v2169 = vunpack.c.l.bf16 %v2157
  %v2170 = vunpack.c.l.bf16 %v2158
  %v2171 = vunpack.c.l.bf16 %v2159
  %v2172 = vunpack.c.l.bf16 %v2160
  %v2173 = vunpack.c.l.bf16 %v2161
  %v2174 = vunpack.c.l.bf16 %v2162
  %v2175 = vunpack.c.l.bf16 %v2163
  %v2176 = vunpack.c.l.bf16 %v2167
  %v2177 = vmul.f32 %v2168, %v2176
  %v2178 = vmul.f32 %v2169, %v2176
  %v2179 = vmul.f32 %v2170, %v2176
  %v2180 = vmul.f32 %v2171, %v2176
  %v2181 = vmul.f32 %v2172, %v2176
  %v2182 = vmul.f32 %v2173, %v2176
  %v2183 = vmul.f32 %v2174, %v2176
  %v2184 = vmul.f32 %v2175, %v2176
  %v2185 = vpack.c.bf16 %v2177, %v2177
  %v2186 = vpack.c.bf16 %v2178, %v2178
  %v2187 = vpack.c.bf16 %v2179, %v2179
  %v2188 = vpack.c.bf16 %v2180, %v2180
  %v2189 = vpack.c.bf16 %v2181, %v2181
  %v2190 = vpack.c.bf16 %v2182, %v2182
  %v2191 = vpack.c.bf16 %v2183, %v2183
  %v2192 = vpack.c.bf16 %v2184, %v2184
  %v2193 = vunpack.c.l.bf16 %v2185
  %v2194 = vunpack.c.l.bf16 %v2186
  %v2195 = vunpack.c.l.bf16 %v2187
  %v2196 = vunpack.c.l.bf16 %v2188
  %v2197 = vunpack.c.l.bf16 %v2189
  %v2198 = vunpack.c.l.bf16 %v2190
  %v2199 = vunpack.c.l.bf16 %v2191
  %v2200 = vunpack.c.l.bf16 %v2192
  %v2201 = vadd.f32 %v2193, 0.0
  %v2202 = vadd.f32 %v2194, 0.0
  %v2203 = vadd.f32 %v2195, 0.0
  %v2204 = vadd.f32 %v2196, 0.0
  %v2205 = vadd.f32 %v2197, 0.0
  %v2206 = vadd.f32 %v2198, 0.0
  %v2207 = vadd.f32 %v2199, 0.0
  %v2208 = vadd.f32 %v2200, 0.0
  %v2209 = vpack.c.bf16 %v2201, %v2201
  %v2210 = vpack.c.bf16 %v2202, %v2202
  %v2211 = vpack.c.bf16 %v2203, %v2203
  %v2212 = vpack.c.bf16 %v2204, %v2204
  %v2213 = vpack.c.bf16 %v2205, %v2205
  %v2214 = vpack.c.bf16 %v2206, %v2206
  %v2215 = vpack.c.bf16 %v2207, %v2207
  %v2216 = vpack.c.bf16 %v2208, %v2208
  %v2217 = vld [vmem:[%s2155 + $0x4] sm:$0x1]
  %v2218 = vld [vmem:[%s2155 + $0xc] sm:$0x1]
  %v2219 = vld [vmem:[%s2155 + $0x14] sm:$0x1]
  %v2220 = vld [vmem:[%s2155 + $0x1c] sm:$0x1]
  %v2221 = vld [vmem:[%s2155 + $0x24] sm:$0x1]
  %v2222 = vld [vmem:[%s2155 + $0x2c] sm:$0x1]
  %v2223 = vld [vmem:[%s2155 + $0x34] sm:$0x1]
  %v2224 = vld [vmem:[%s2155 + $0x3c] sm:$0x1]
  %v2225 = vshrl.u32 %v252, 16
  %v2226 = vpack.i.b16 %v2225, %v2225
  %v2228 = vperm.slane %v2226, 0
  %v2229 = vunpack.c.l.bf16 %v2217
  %v2230 = vunpack.c.l.bf16 %v2218
  %v2231 = vunpack.c.l.bf16 %v2219
  %v2232 = vunpack.c.l.bf16 %v2220
  %v2233 = vunpack.c.l.bf16 %v2221
  %v2234 = vunpack.c.l.bf16 %v2222
  %v2235 = vunpack.c.l.bf16 %v2223
  %v2236 = vunpack.c.l.bf16 %v2224
  %v2237 = vunpack.c.l.bf16 %v2228
  %v2238 = vmul.f32 %v2168, %v2237
  %v2239 = vmul.f32 %v2229, %v2237
  %v2240 = vmul.f32 %v2169, %v2237
  %v2241 = vmul.f32 %v2230, %v2237
  %v2242 = vmul.f32 %v2170, %v2237
  %v2243 = vmul.f32 %v2231, %v2237
  %v2244 = vmul.f32 %v2171, %v2237
  %v2245 = vmul.f32 %v2232, %v2237
  %v2246 = vmul.f32 %v2172, %v2237
  %v2247 = vmul.f32 %v2233, %v2237
  %v2248 = vmul.f32 %v2173, %v2237
  %v2249 = vmul.f32 %v2234, %v2237
  %v2250 = vmul.f32 %v2174, %v2237
  %v2251 = vmul.f32 %v2235, %v2237
  %v2252 = vmul.f32 %v2175, %v2237
  %v2253 = vmul.f32 %v2236, %v2237
  %v2254 = vpack.c.bf16 %v2238, %v2238
  %v2255 = vpack.c.bf16 %v2239, %v2239
  %v2256 = vpack.c.bf16 %v2240, %v2240
  %v2257 = vpack.c.bf16 %v2241, %v2241
  %v2258 = vpack.c.bf16 %v2242, %v2242
  %v2259 = vpack.c.bf16 %v2243, %v2243
  %v2260 = vpack.c.bf16 %v2244, %v2244
  %v2261 = vpack.c.bf16 %v2245, %v2245
  %v2262 = vpack.c.bf16 %v2246, %v2246
  %v2263 = vpack.c.bf16 %v2247, %v2247
  %v2264 = vpack.c.bf16 %v2248, %v2248
  %v2265 = vpack.c.bf16 %v2249, %v2249
  %v2266 = vpack.c.bf16 %v2250, %v2250
  %v2267 = vpack.c.bf16 %v2251, %v2251
  %v2268 = vpack.c.bf16 %v2252, %v2252
  %v2269 = vpack.c.bf16 %v2253, %v2253
  %v2270 = vunpack.c.l.bf16 %v2209
  %v2271 = vunpack.c.l.bf16 %v2210
  %v2272 = vunpack.c.l.bf16 %v2211
  %v2273 = vunpack.c.l.bf16 %v2212
  %v2274 = vunpack.c.l.bf16 %v2213
  %v2275 = vunpack.c.l.bf16 %v2214
  %v2276 = vunpack.c.l.bf16 %v2215
  %v2277 = vunpack.c.l.bf16 %v2216
  %v2278 = vunpack.c.l.bf16 %v2254
  %v2279 = vunpack.c.l.bf16 %v2255
  %v2280 = vunpack.c.l.bf16 %v2256
  %v2281 = vunpack.c.l.bf16 %v2257
  %v2282 = vunpack.c.l.bf16 %v2258
  %v2283 = vunpack.c.l.bf16 %v2259
  %v2284 = vunpack.c.l.bf16 %v2260
  %v2285 = vunpack.c.l.bf16 %v2261
  %v2286 = vunpack.c.l.bf16 %v2262
  %v2287 = vunpack.c.l.bf16 %v2263
  %v2288 = vunpack.c.l.bf16 %v2264
  %v2289 = vunpack.c.l.bf16 %v2265
  %v2290 = vunpack.c.l.bf16 %v2266
  %v2291 = vunpack.c.l.bf16 %v2267
  %v2292 = vunpack.c.l.bf16 %v2268
  %v2293 = vunpack.c.l.bf16 %v2269
  %v2310 = vrot.slane %v2278, 1
  %v2311 = vrot.slane %v2279, 1
  %v2312 = vsel %vm408, %v2310, %v2311
  %v2313 = vrot.slane %v2280, 1
  %v2314 = vrot.slane %v2281, 1
  %v2315 = vsel %vm408, %v2313, %v2314
  %v2316 = vrot.slane %v2282, 1
  %v2317 = vrot.slane %v2283, 1
  %v2318 = vsel %vm408, %v2316, %v2317
  %v2319 = vrot.slane %v2284, 1
  %v2320 = vrot.slane %v2285, 1
  %v2321 = vsel %vm408, %v2319, %v2320
  %v2322 = vrot.slane %v2286, 1
  %v2323 = vrot.slane %v2287, 1
  %v2324 = vsel %vm408, %v2322, %v2323
  %v2325 = vrot.slane %v2288, 1
  %v2326 = vrot.slane %v2289, 1
  %v2327 = vsel %vm408, %v2325, %v2326
  %v2328 = vrot.slane %v2290, 1
  %v2329 = vrot.slane %v2291, 1
  %v2330 = vsel %vm408, %v2328, %v2329
  %v2331 = vrot.slane %v2292, 1
  %v2332 = vrot.slane %v2293, 1
  %v2333 = vsel %vm408, %v2331, %v2332
  %v2342 = vadd.f32 %v2270, %v2312
  %v2343 = vadd.f32 %v2271, %v2315
  %v2344 = vadd.f32 %v2272, %v2318
  %v2345 = vadd.f32 %v2273, %v2321
  %v2346 = vadd.f32 %v2274, %v2324
  %v2347 = vadd.f32 %v2275, %v2327
  %v2348 = vadd.f32 %v2276, %v2330
  %v2349 = vadd.f32 %v2277, %v2333
  %v2350 = vpack.c.bf16 %v2342, %v2342
  %v2351 = vpack.c.bf16 %v2343, %v2343
  %v2352 = vpack.c.bf16 %v2344, %v2344
  %v2353 = vpack.c.bf16 %v2345, %v2345
  %v2354 = vpack.c.bf16 %v2346, %v2346
  %v2355 = vpack.c.bf16 %v2347, %v2347
  %v2356 = vpack.c.bf16 %v2348, %v2348
  %v2357 = vpack.c.bf16 %v2349, %v2349
  %v2358 = vld [vmem:[%s2155] sm:$0xe]
  %v2359 = vld [vmem:[%s2155 + $0x8] sm:$0xe]
  %v2360 = vld [vmem:[%s2155 + $0x10] sm:$0xe]
  %v2361 = vld [vmem:[%s2155 + $0x18] sm:$0xe]
  %v2362 = vld [vmem:[%s2155 + $0x20] sm:$0xe]
  %v2363 = vld [vmem:[%s2155 + $0x28] sm:$0xe]
  %v2364 = vld [vmem:[%s2155 + $0x30] sm:$0xe]
  %v2365 = vld [vmem:[%s2155 + $0x38] sm:$0xe]
  %v2366 = vperm.slane %v2165, 1
  %v2367 = vunpack.c.l.bf16 %v2358
  %v2368 = vunpack.c.l.bf16 %v2359
  %v2369 = vunpack.c.l.bf16 %v2360
  %v2370 = vunpack.c.l.bf16 %v2361
  %v2371 = vunpack.c.l.bf16 %v2362
  %v2372 = vunpack.c.l.bf16 %v2363
  %v2373 = vunpack.c.l.bf16 %v2364
  %v2374 = vunpack.c.l.bf16 %v2365
  %v2375 = vunpack.c.l.bf16 %v2366
  %v2376 = vmul.f32 %v2367, %v2375
  %v2377 = vmul.f32 %v2229, %v2375
  %v2378 = vmul.f32 %v2368, %v2375
  %v2379 = vmul.f32 %v2230, %v2375
  %v2380 = vmul.f32 %v2369, %v2375
  %v2381 = vmul.f32 %v2231, %v2375
  %v2382 = vmul.f32 %v2370, %v2375
  %v2383 = vmul.f32 %v2232, %v2375
  %v2384 = vmul.f32 %v2371, %v2375
  %v2385 = vmul.f32 %v2233, %v2375
  %v2386 = vmul.f32 %v2372, %v2375
  %v2387 = vmul.f32 %v2234, %v2375
  %v2388 = vmul.f32 %v2373, %v2375
  %v2389 = vmul.f32 %v2235, %v2375
  %v2390 = vmul.f32 %v2374, %v2375
  %v2391 = vmul.f32 %v2236, %v2375
  %v2392 = vpack.c.bf16 %v2376, %v2376
  %v2393 = vpack.c.bf16 %v2377, %v2377
  %v2394 = vpack.c.bf16 %v2378, %v2378
  %v2395 = vpack.c.bf16 %v2379, %v2379
  %v2396 = vpack.c.bf16 %v2380, %v2380
  %v2397 = vpack.c.bf16 %v2381, %v2381
  %v2398 = vpack.c.bf16 %v2382, %v2382
  %v2399 = vpack.c.bf16 %v2383, %v2383
  %v2400 = vpack.c.bf16 %v2384, %v2384
  %v2401 = vpack.c.bf16 %v2385, %v2385
  %v2402 = vpack.c.bf16 %v2386, %v2386
  %v2403 = vpack.c.bf16 %v2387, %v2387
  %v2404 = vpack.c.bf16 %v2388, %v2388
  %v2405 = vpack.c.bf16 %v2389, %v2389
  %v2406 = vpack.c.bf16 %v2390, %v2390
  %v2407 = vpack.c.bf16 %v2391, %v2391
  %v2408 = vunpack.c.l.bf16 %v2350
  %v2409 = vunpack.c.l.bf16 %v2351
  %v2410 = vunpack.c.l.bf16 %v2352
  %v2411 = vunpack.c.l.bf16 %v2353
  %v2412 = vunpack.c.l.bf16 %v2354
  %v2413 = vunpack.c.l.bf16 %v2355
  %v2414 = vunpack.c.l.bf16 %v2356
  %v2415 = vunpack.c.l.bf16 %v2357
  %v2416 = vunpack.c.l.bf16 %v2392
  %v2417 = vunpack.c.l.bf16 %v2393
  %v2418 = vunpack.c.l.bf16 %v2394
  %v2419 = vunpack.c.l.bf16 %v2395
  %v2420 = vunpack.c.l.bf16 %v2396
  %v2421 = vunpack.c.l.bf16 %v2397
  %v2422 = vunpack.c.l.bf16 %v2398
  %v2423 = vunpack.c.l.bf16 %v2399
  %v2424 = vunpack.c.l.bf16 %v2400
  %v2425 = vunpack.c.l.bf16 %v2401
  %v2426 = vunpack.c.l.bf16 %v2402
  %v2427 = vunpack.c.l.bf16 %v2403
  %v2428 = vunpack.c.l.bf16 %v2404
  %v2429 = vunpack.c.l.bf16 %v2405
  %v2430 = vunpack.c.l.bf16 %v2406
  %v2431 = vunpack.c.l.bf16 %v2407
  %v2448 = vrot.slane %v2416, 2
  %v2449 = vrot.slane %v2417, 2
  %v2450 = vsel %vm547, %v2448, %v2449
  %v2451 = vrot.slane %v2418, 2
  %v2452 = vrot.slane %v2419, 2
  %v2453 = vsel %vm547, %v2451, %v2452
  %v2454 = vrot.slane %v2420, 2
  %v2455 = vrot.slane %v2421, 2
  %v2456 = vsel %vm547, %v2454, %v2455
  %v2457 = vrot.slane %v2422, 2
  %v2458 = vrot.slane %v2423, 2
  %v2459 = vsel %vm547, %v2457, %v2458
  %v2460 = vrot.slane %v2424, 2
  %v2461 = vrot.slane %v2425, 2
  %v2462 = vsel %vm547, %v2460, %v2461
  %v2463 = vrot.slane %v2426, 2
  %v2464 = vrot.slane %v2427, 2
  %v2465 = vsel %vm547, %v2463, %v2464
  %v2466 = vrot.slane %v2428, 2
  %v2467 = vrot.slane %v2429, 2
  %v2468 = vsel %vm547, %v2466, %v2467
  %v2469 = vrot.slane %v2430, 2
  %v2470 = vrot.slane %v2431, 2
  %v2471 = vsel %vm547, %v2469, %v2470
  %v2480 = vadd.f32 %v2408, %v2450
  %v2481 = vadd.f32 %v2409, %v2453
  %v2482 = vadd.f32 %v2410, %v2456
  %v2483 = vadd.f32 %v2411, %v2459
  %v2484 = vadd.f32 %v2412, %v2462
  %v2485 = vadd.f32 %v2413, %v2465
  %v2486 = vadd.f32 %v2414, %v2468
  %v2487 = vadd.f32 %v2415, %v2471
  %v2488 = vpack.c.bf16 %v2480, %v2480
  %v2489 = vpack.c.bf16 %v2481, %v2481
  %v2490 = vpack.c.bf16 %v2482, %v2482
  %v2491 = vpack.c.bf16 %v2483, %v2483
  %v2492 = vpack.c.bf16 %v2484, %v2484
  %v2493 = vpack.c.bf16 %v2485, %v2485
  %v2494 = vpack.c.bf16 %v2486, %v2486
  %v2495 = vpack.c.bf16 %v2487, %v2487
  %v2496 = vld [vmem:[%s2155 + $0x4] sm:$0x3]
  %v2497 = vld [vmem:[%s2155 + $0xc] sm:$0x3]
  %v2498 = vld [vmem:[%s2155 + $0x14] sm:$0x3]
  %v2499 = vld [vmem:[%s2155 + $0x1c] sm:$0x3]
  %v2500 = vld [vmem:[%s2155 + $0x24] sm:$0x3]
  %v2501 = vld [vmem:[%s2155 + $0x2c] sm:$0x3]
  %v2502 = vld [vmem:[%s2155 + $0x34] sm:$0x3]
  %v2503 = vld [vmem:[%s2155 + $0x3c] sm:$0x3]
  %v2504 = vperm.slane %v2226, 1
  %v2505 = vunpack.c.l.bf16 %v2496
  %v2506 = vunpack.c.l.bf16 %v2497
  %v2507 = vunpack.c.l.bf16 %v2498
  %v2508 = vunpack.c.l.bf16 %v2499
  %v2509 = vunpack.c.l.bf16 %v2500
  %v2510 = vunpack.c.l.bf16 %v2501
  %v2511 = vunpack.c.l.bf16 %v2502
  %v2512 = vunpack.c.l.bf16 %v2503
  %v2513 = vunpack.c.l.bf16 %v2504
  %v2514 = vmul.f32 %v2367, %v2513
  %v2515 = vmul.f32 %v2505, %v2513
  %v2516 = vmul.f32 %v2368, %v2513
  %v2517 = vmul.f32 %v2506, %v2513
  %v2518 = vmul.f32 %v2369, %v2513
  %v2519 = vmul.f32 %v2507, %v2513
  %v2520 = vmul.f32 %v2370, %v2513
  %v2521 = vmul.f32 %v2508, %v2513
  %v2522 = vmul.f32 %v2371, %v2513
  %v2523 = vmul.f32 %v2509, %v2513
  %v2524 = vmul.f32 %v2372, %v2513
  %v2525 = vmul.f32 %v2510, %v2513
  %v2526 = vmul.f32 %v2373, %v2513
  %v2527 = vmul.f32 %v2511, %v2513
  %v2528 = vmul.f32 %v2374, %v2513
  %v2529 = vmul.f32 %v2512, %v2513
  %v2530 = vpack.c.bf16 %v2514, %v2514
  %v2531 = vpack.c.bf16 %v2515, %v2515
  %v2532 = vpack.c.bf16 %v2516, %v2516
  %v2533 = vpack.c.bf16 %v2517, %v2517
  %v2534 = vpack.c.bf16 %v2518, %v2518
  %v2535 = vpack.c.bf16 %v2519, %v2519
  %v2536 = vpack.c.bf16 %v2520, %v2520
  %v2537 = vpack.c.bf16 %v2521, %v2521
  %v2538 = vpack.c.bf16 %v2522, %v2522
  %v2539 = vpack.c.bf16 %v2523, %v2523
  %v2540 = vpack.c.bf16 %v2524, %v2524
  %v2541 = vpack.c.bf16 %v2525, %v2525
  %v2542 = vpack.c.bf16 %v2526, %v2526
  %v2543 = vpack.c.bf16 %v2527, %v2527
  %v2544 = vpack.c.bf16 %v2528, %v2528
  %v2545 = vpack.c.bf16 %v2529, %v2529
  %v2546 = vunpack.c.l.bf16 %v2488
  %v2547 = vunpack.c.l.bf16 %v2489
  %v2548 = vunpack.c.l.bf16 %v2490
  %v2549 = vunpack.c.l.bf16 %v2491
  %v2550 = vunpack.c.l.bf16 %v2492
  %v2551 = vunpack.c.l.bf16 %v2493
  %v2552 = vunpack.c.l.bf16 %v2494
  %v2553 = vunpack.c.l.bf16 %v2495
  %v2554 = vunpack.c.l.bf16 %v2530
  %v2555 = vunpack.c.l.bf16 %v2531
  %v2556 = vunpack.c.l.bf16 %v2532
  %v2557 = vunpack.c.l.bf16 %v2533
  %v2558 = vunpack.c.l.bf16 %v2534
  %v2559 = vunpack.c.l.bf16 %v2535
  %v2560 = vunpack.c.l.bf16 %v2536
  %v2561 = vunpack.c.l.bf16 %v2537
  %v2562 = vunpack.c.l.bf16 %v2538
  %v2563 = vunpack.c.l.bf16 %v2539
  %v2564 = vunpack.c.l.bf16 %v2540
  %v2565 = vunpack.c.l.bf16 %v2541
  %v2566 = vunpack.c.l.bf16 %v2542
  %v2567 = vunpack.c.l.bf16 %v2543
  %v2568 = vunpack.c.l.bf16 %v2544
  %v2569 = vunpack.c.l.bf16 %v2545
  %v2586 = vrot.slane %v2554, 3
  %v2587 = vrot.slane %v2555, 3
  %v2588 = vsel %vm686, %v2586, %v2587
  %v2589 = vrot.slane %v2556, 3
  %v2590 = vrot.slane %v2557, 3
  %v2591 = vsel %vm686, %v2589, %v2590
  %v2592 = vrot.slane %v2558, 3
  %v2593 = vrot.slane %v2559, 3
  %v2594 = vsel %vm686, %v2592, %v2593
  %v2595 = vrot.slane %v2560, 3
  %v2596 = vrot.slane %v2561, 3
  %v2597 = vsel %vm686, %v2595, %v2596
  %v2598 = vrot.slane %v2562, 3
  %v2599 = vrot.slane %v2563, 3
  %v2600 = vsel %vm686, %v2598, %v2599
  %v2601 = vrot.slane %v2564, 3
  %v2602 = vrot.slane %v2565, 3
  %v2603 = vsel %vm686, %v2601, %v2602
  %v2604 = vrot.slane %v2566, 3
  %v2605 = vrot.slane %v2567, 3
  %v2606 = vsel %vm686, %v2604, %v2605
  %v2607 = vrot.slane %v2568, 3
  %v2608 = vrot.slane %v2569, 3
  %v2609 = vsel %vm686, %v2607, %v2608
  %v2618 = vadd.f32 %v2546, %v2588
  %v2619 = vadd.f32 %v2547, %v2591
  %v2620 = vadd.f32 %v2548, %v2594
  %v2621 = vadd.f32 %v2549, %v2597
  %v2622 = vadd.f32 %v2550, %v2600
  %v2623 = vadd.f32 %v2551, %v2603
  %v2624 = vadd.f32 %v2552, %v2606
  %v2625 = vadd.f32 %v2553, %v2609
  %v2626 = vpack.c.bf16 %v2618, %v2618
  %v2627 = vpack.c.bf16 %v2619, %v2619
  %v2628 = vpack.c.bf16 %v2620, %v2620
  %v2629 = vpack.c.bf16 %v2621, %v2621
  %v2630 = vpack.c.bf16 %v2622, %v2622
  %v2631 = vpack.c.bf16 %v2623, %v2623
  %v2632 = vpack.c.bf16 %v2624, %v2624
  %v2633 = vpack.c.bf16 %v2625, %v2625
  %v2634 = vld [vmem:[%s2155] sm:$0xc]
  %v2635 = vld [vmem:[%s2155 + $0x8] sm:$0xc]
  %v2636 = vld [vmem:[%s2155 + $0x10] sm:$0xc]
  %v2637 = vld [vmem:[%s2155 + $0x18] sm:$0xc]
  %v2638 = vld [vmem:[%s2155 + $0x20] sm:$0xc]
  %v2639 = vld [vmem:[%s2155 + $0x28] sm:$0xc]
  %v2640 = vld [vmem:[%s2155 + $0x30] sm:$0xc]
  %v2641 = vld [vmem:[%s2155 + $0x38] sm:$0xc]
  %v2642 = vperm.slane %v2165, 2
  %v2643 = vunpack.c.l.bf16 %v2634
  %v2644 = vunpack.c.l.bf16 %v2635
  %v2645 = vunpack.c.l.bf16 %v2636
  %v2646 = vunpack.c.l.bf16 %v2637
  %v2647 = vunpack.c.l.bf16 %v2638
  %v2648 = vunpack.c.l.bf16 %v2639
  %v2649 = vunpack.c.l.bf16 %v2640
  %v2650 = vunpack.c.l.bf16 %v2641
  %v2651 = vunpack.c.l.bf16 %v2642
  %v2652 = vmul.f32 %v2643, %v2651
  %v2653 = vmul.f32 %v2505, %v2651
  %v2654 = vmul.f32 %v2644, %v2651
  %v2655 = vmul.f32 %v2506, %v2651
  %v2656 = vmul.f32 %v2645, %v2651
  %v2657 = vmul.f32 %v2507, %v2651
  %v2658 = vmul.f32 %v2646, %v2651
  %v2659 = vmul.f32 %v2508, %v2651
  %v2660 = vmul.f32 %v2647, %v2651
  %v2661 = vmul.f32 %v2509, %v2651
  %v2662 = vmul.f32 %v2648, %v2651
  %v2663 = vmul.f32 %v2510, %v2651
  %v2664 = vmul.f32 %v2649, %v2651
  %v2665 = vmul.f32 %v2511, %v2651
  %v2666 = vmul.f32 %v2650, %v2651
  %v2667 = vmul.f32 %v2512, %v2651
  %v2668 = vpack.c.bf16 %v2652, %v2652
  %v2669 = vpack.c.bf16 %v2653, %v2653
  %v2670 = vpack.c.bf16 %v2654, %v2654
  %v2671 = vpack.c.bf16 %v2655, %v2655
  %v2672 = vpack.c.bf16 %v2656, %v2656
  %v2673 = vpack.c.bf16 %v2657, %v2657
  %v2674 = vpack.c.bf16 %v2658, %v2658
  %v2675 = vpack.c.bf16 %v2659, %v2659
  %v2676 = vpack.c.bf16 %v2660, %v2660
  %v2677 = vpack.c.bf16 %v2661, %v2661
  %v2678 = vpack.c.bf16 %v2662, %v2662
  %v2679 = vpack.c.bf16 %v2663, %v2663
  %v2680 = vpack.c.bf16 %v2664, %v2664
  %v2681 = vpack.c.bf16 %v2665, %v2665
  %v2682 = vpack.c.bf16 %v2666, %v2666
  %v2683 = vpack.c.bf16 %v2667, %v2667
  %v2684 = vunpack.c.l.bf16 %v2626
  %v2685 = vunpack.c.l.bf16 %v2627
  %v2686 = vunpack.c.l.bf16 %v2628
  %v2687 = vunpack.c.l.bf16 %v2629
  %v2688 = vunpack.c.l.bf16 %v2630
  %v2689 = vunpack.c.l.bf16 %v2631
  %v2690 = vunpack.c.l.bf16 %v2632
  %v2691 = vunpack.c.l.bf16 %v2633
  %v2692 = vunpack.c.l.bf16 %v2668
  %v2693 = vunpack.c.l.bf16 %v2669
  %v2694 = vunpack.c.l.bf16 %v2670
  %v2695 = vunpack.c.l.bf16 %v2671
  %v2696 = vunpack.c.l.bf16 %v2672
  %v2697 = vunpack.c.l.bf16 %v2673
  %v2698 = vunpack.c.l.bf16 %v2674
  %v2699 = vunpack.c.l.bf16 %v2675
  %v2700 = vunpack.c.l.bf16 %v2676
  %v2701 = vunpack.c.l.bf16 %v2677
  %v2702 = vunpack.c.l.bf16 %v2678
  %v2703 = vunpack.c.l.bf16 %v2679
  %v2704 = vunpack.c.l.bf16 %v2680
  %v2705 = vunpack.c.l.bf16 %v2681
  %v2706 = vunpack.c.l.bf16 %v2682
  %v2707 = vunpack.c.l.bf16 %v2683
  %v2724 = vrot.slane %v2692, 4
  %v2725 = vrot.slane %v2693, 4
  %v2726 = vsel %vm825, %v2724, %v2725
  %v2727 = vrot.slane %v2694, 4
  %v2728 = vrot.slane %v2695, 4
  %v2729 = vsel %vm825, %v2727, %v2728
  %v2730 = vrot.slane %v2696, 4
  %v2731 = vrot.slane %v2697, 4
  %v2732 = vsel %vm825, %v2730, %v2731
  %v2733 = vrot.slane %v2698, 4
  %v2734 = vrot.slane %v2699, 4
  %v2735 = vsel %vm825, %v2733, %v2734
  %v2736 = vrot.slane %v2700, 4
  %v2737 = vrot.slane %v2701, 4
  %v2738 = vsel %vm825, %v2736, %v2737
  %v2739 = vrot.slane %v2702, 4
  %v2740 = vrot.slane %v2703, 4
  %v2741 = vsel %vm825, %v2739, %v2740
  %v2742 = vrot.slane %v2704, 4
  %v2743 = vrot.slane %v2705, 4
  %v2744 = vsel %vm825, %v2742, %v2743
  %v2745 = vrot.slane %v2706, 4
  %v2746 = vrot.slane %v2707, 4
  %v2747 = vsel %vm825, %v2745, %v2746
  %v2756 = vadd.f32 %v2684, %v2726
  %v2757 = vadd.f32 %v2685, %v2729
  %v2758 = vadd.f32 %v2686, %v2732
  %v2759 = vadd.f32 %v2687, %v2735
  %v2760 = vadd.f32 %v2688, %v2738
  %v2761 = vadd.f32 %v2689, %v2741
  %v2762 = vadd.f32 %v2690, %v2744
  %v2763 = vadd.f32 %v2691, %v2747
  %v2764 = vpack.c.bf16 %v2756, %v2756
  %v2765 = vpack.c.bf16 %v2757, %v2757
  %v2766 = vpack.c.bf16 %v2758, %v2758
  %v2767 = vpack.c.bf16 %v2759, %v2759
  %v2768 = vpack.c.bf16 %v2760, %v2760
  %v2769 = vpack.c.bf16 %v2761, %v2761
  %v2770 = vpack.c.bf16 %v2762, %v2762
  %v2771 = vpack.c.bf16 %v2763, %v2763
  %v2772 = vunpack.c.l.bf16 %v2764
  %v2773 = vunpack.c.l.bf16 %v2765
  %v2774 = vunpack.c.l.bf16 %v2766
  %v2775 = vunpack.c.l.bf16 %v2767
  %v2776 = vunpack.c.l.bf16 %v2768
  %v2777 = vunpack.c.l.bf16 %v2769
  %v2778 = vunpack.c.l.bf16 %v2770
  %v2779 = vunpack.c.l.bf16 %v2771
  %v2780 = vadd.f32 %v2147, %v2772
  %v2781 = vadd.f32 %v2148, %v2773
  %v2782 = vadd.f32 %v2149, %v2774
  %v2783 = vadd.f32 %v2150, %v2775
  %v2784 = vadd.f32 %v2151, %v2776
  %v2785 = vadd.f32 %v2152, %v2777
  %v2786 = vadd.f32 %v2153, %v2778
  %v2787 = vadd.f32 %v2154, %v2779
  %s2788 = scalar_lea.vmem [#allocation2], 32
  %v2789 = vld [vmem:[%s2788] sm:$0xf]
  %v2790 = vld [vmem:[%s2788 + $0x8] sm:$0xf]
  %v2791 = vld [vmem:[%s2788 + $0x10] sm:$0xf]
  %v2792 = vld [vmem:[%s2788 + $0x18] sm:$0xf]
  %v2793 = vld [vmem:[%s2788 + $0x20] sm:$0xf]
  %v2794 = vld [vmem:[%s2788 + $0x28] sm:$0xf]
  %v2795 = vld [vmem:[%s2788 + $0x30] sm:$0xf]
  %v2796 = vld [vmem:[%s2788 + $0x38] sm:$0xf]
  %v2798 = vpack.i.b16 %v253, %v253
  %v2800 = vperm.slane %v2798, 0
  %v2801 = vunpack.c.l.bf16 %v2789
  %v2802 = vunpack.c.l.bf16 %v2790
  %v2803 = vunpack.c.l.bf16 %v2791
  %v2804 = vunpack.c.l.bf16 %v2792
  %v2805 = vunpack.c.l.bf16 %v2793
  %v2806 = vunpack.c.l.bf16 %v2794
  %v2807 = vunpack.c.l.bf16 %v2795
  %v2808 = vunpack.c.l.bf16 %v2796
  %v2809 = vunpack.c.l.bf16 %v2800
  %v2810 = vmul.f32 %v2801, %v2809
  %v2811 = vmul.f32 %v2802, %v2809
  %v2812 = vmul.f32 %v2803, %v2809
  %v2813 = vmul.f32 %v2804, %v2809
  %v2814 = vmul.f32 %v2805, %v2809
  %v2815 = vmul.f32 %v2806, %v2809
  %v2816 = vmul.f32 %v2807, %v2809
  %v2817 = vmul.f32 %v2808, %v2809
  %v2818 = vpack.c.bf16 %v2810, %v2810
  %v2819 = vpack.c.bf16 %v2811, %v2811
  %v2820 = vpack.c.bf16 %v2812, %v2812
  %v2821 = vpack.c.bf16 %v2813, %v2813
  %v2822 = vpack.c.bf16 %v2814, %v2814
  %v2823 = vpack.c.bf16 %v2815, %v2815
  %v2824 = vpack.c.bf16 %v2816, %v2816
  %v2825 = vpack.c.bf16 %v2817, %v2817
  %v2826 = vunpack.c.l.bf16 %v2818
  %v2827 = vunpack.c.l.bf16 %v2819
  %v2828 = vunpack.c.l.bf16 %v2820
  %v2829 = vunpack.c.l.bf16 %v2821
  %v2830 = vunpack.c.l.bf16 %v2822
  %v2831 = vunpack.c.l.bf16 %v2823
  %v2832 = vunpack.c.l.bf16 %v2824
  %v2833 = vunpack.c.l.bf16 %v2825
  %v2834 = vadd.f32 %v2826, 0.0
  %v2835 = vadd.f32 %v2827, 0.0
  %v2836 = vadd.f32 %v2828, 0.0
  %v2837 = vadd.f32 %v2829, 0.0
  %v2838 = vadd.f32 %v2830, 0.0
  %v2839 = vadd.f32 %v2831, 0.0
  %v2840 = vadd.f32 %v2832, 0.0
  %v2841 = vadd.f32 %v2833, 0.0
  %v2842 = vpack.c.bf16 %v2834, %v2834
  %v2843 = vpack.c.bf16 %v2835, %v2835
  %v2844 = vpack.c.bf16 %v2836, %v2836
  %v2845 = vpack.c.bf16 %v2837, %v2837
  %v2846 = vpack.c.bf16 %v2838, %v2838
  %v2847 = vpack.c.bf16 %v2839, %v2839
  %v2848 = vpack.c.bf16 %v2840, %v2840
  %v2849 = vpack.c.bf16 %v2841, %v2841
  %v2850 = vld [vmem:[%s2788 + $0x4] sm:$0x1]
  %v2851 = vld [vmem:[%s2788 + $0xc] sm:$0x1]
  %v2852 = vld [vmem:[%s2788 + $0x14] sm:$0x1]
  %v2853 = vld [vmem:[%s2788 + $0x1c] sm:$0x1]
  %v2854 = vld [vmem:[%s2788 + $0x24] sm:$0x1]
  %v2855 = vld [vmem:[%s2788 + $0x2c] sm:$0x1]
  %v2856 = vld [vmem:[%s2788 + $0x34] sm:$0x1]
  %v2857 = vld [vmem:[%s2788 + $0x3c] sm:$0x1]
  %v2858 = vshrl.u32 %v253, 16
  %v2859 = vpack.i.b16 %v2858, %v2858
  %v2861 = vperm.slane %v2859, 0
  %v2862 = vunpack.c.l.bf16 %v2850
  %v2863 = vunpack.c.l.bf16 %v2851
  %v2864 = vunpack.c.l.bf16 %v2852
  %v2865 = vunpack.c.l.bf16 %v2853
  %v2866 = vunpack.c.l.bf16 %v2854
  %v2867 = vunpack.c.l.bf16 %v2855
  %v2868 = vunpack.c.l.bf16 %v2856
  %v2869 = vunpack.c.l.bf16 %v2857
  %v2870 = vunpack.c.l.bf16 %v2861
  %v2871 = vmul.f32 %v2801, %v2870
  %v2872 = vmul.f32 %v2862, %v2870
  %v2873 = vmul.f32 %v2802, %v2870
  %v2874 = vmul.f32 %v2863, %v2870
  %v2875 = vmul.f32 %v2803, %v2870
  %v2876 = vmul.f32 %v2864, %v2870
  %v2877 = vmul.f32 %v2804, %v2870
  %v2878 = vmul.f32 %v2865, %v2870
  %v2879 = vmul.f32 %v2805, %v2870
  %v2880 = vmul.f32 %v2866, %v2870
  %v2881 = vmul.f32 %v2806, %v2870
  %v2882 = vmul.f32 %v2867, %v2870
  %v2883 = vmul.f32 %v2807, %v2870
  %v2884 = vmul.f32 %v2868, %v2870
  %v2885 = vmul.f32 %v2808, %v2870
  %v2886 = vmul.f32 %v2869, %v2870
  %v2887 = vpack.c.bf16 %v2871, %v2871
  %v2888 = vpack.c.bf16 %v2872, %v2872
  %v2889 = vpack.c.bf16 %v2873, %v2873
  %v2890 = vpack.c.bf16 %v2874, %v2874
  %v2891 = vpack.c.bf16 %v2875, %v2875
  %v2892 = vpack.c.bf16 %v2876, %v2876
  %v2893 = vpack.c.bf16 %v2877, %v2877
  %v2894 = vpack.c.bf16 %v2878, %v2878
  %v2895 = vpack.c.bf16 %v2879, %v2879
  %v2896 = vpack.c.bf16 %v2880, %v2880
  %v2897 = vpack.c.bf16 %v2881, %v2881
  %v2898 = vpack.c.bf16 %v2882, %v2882
  %v2899 = vpack.c.bf16 %v2883, %v2883
  %v2900 = vpack.c.bf16 %v2884, %v2884
  %v2901 = vpack.c.bf16 %v2885, %v2885
  %v2902 = vpack.c.bf16 %v2886, %v2886
  %v2903 = vunpack.c.l.bf16 %v2842
  %v2904 = vunpack.c.l.bf16 %v2843
  %v2905 = vunpack.c.l.bf16 %v2844
  %v2906 = vunpack.c.l.bf16 %v2845
  %v2907 = vunpack.c.l.bf16 %v2846
  %v2908 = vunpack.c.l.bf16 %v2847
  %v2909 = vunpack.c.l.bf16 %v2848
  %v2910 = vunpack.c.l.bf16 %v2849
  %v2911 = vunpack.c.l.bf16 %v2887
  %v2912 = vunpack.c.l.bf16 %v2888
  %v2913 = vunpack.c.l.bf16 %v2889
  %v2914 = vunpack.c.l.bf16 %v2890
  %v2915 = vunpack.c.l.bf16 %v2891
  %v2916 = vunpack.c.l.bf16 %v2892
  %v2917 = vunpack.c.l.bf16 %v2893
  %v2918 = vunpack.c.l.bf16 %v2894
  %v2919 = vunpack.c.l.bf16 %v2895
  %v2920 = vunpack.c.l.bf16 %v2896
  %v2921 = vunpack.c.l.bf16 %v2897
  %v2922 = vunpack.c.l.bf16 %v2898
  %v2923 = vunpack.c.l.bf16 %v2899
  %v2924 = vunpack.c.l.bf16 %v2900
  %v2925 = vunpack.c.l.bf16 %v2901
  %v2926 = vunpack.c.l.bf16 %v2902
  %v2943 = vrot.slane %v2911, 1
  %v2944 = vrot.slane %v2912, 1
  %v2945 = vsel %vm408, %v2943, %v2944
  %v2946 = vrot.slane %v2913, 1
  %v2947 = vrot.slane %v2914, 1
  %v2948 = vsel %vm408, %v2946, %v2947
  %v2949 = vrot.slane %v2915, 1
  %v2950 = vrot.slane %v2916, 1
  %v2951 = vsel %vm408, %v2949, %v2950
  %v2952 = vrot.slane %v2917, 1
  %v2953 = vrot.slane %v2918, 1
  %v2954 = vsel %vm408, %v2952, %v2953
  %v2955 = vrot.slane %v2919, 1
  %v2956 = vrot.slane %v2920, 1
  %v2957 = vsel %vm408, %v2955, %v2956
  %v2958 = vrot.slane %v2921, 1
  %v2959 = vrot.slane %v2922, 1
  %v2960 = vsel %vm408, %v2958, %v2959
  %v2961 = vrot.slane %v2923, 1
  %v2962 = vrot.slane %v2924, 1
  %v2963 = vsel %vm408, %v2961, %v2962
  %v2964 = vrot.slane %v2925, 1
  %v2965 = vrot.slane %v2926, 1
  %v2966 = vsel %vm408, %v2964, %v2965
  %v2975 = vadd.f32 %v2903, %v2945
  %v2976 = vadd.f32 %v2904, %v2948
  %v2977 = vadd.f32 %v2905, %v2951
  %v2978 = vadd.f32 %v2906, %v2954
  %v2979 = vadd.f32 %v2907, %v2957
  %v2980 = vadd.f32 %v2908, %v2960
  %v2981 = vadd.f32 %v2909, %v2963
  %v2982 = vadd.f32 %v2910, %v2966
  %v2983 = vpack.c.bf16 %v2975, %v2975
  %v2984 = vpack.c.bf16 %v2976, %v2976
  %v2985 = vpack.c.bf16 %v2977, %v2977
  %v2986 = vpack.c.bf16 %v2978, %v2978
  %v2987 = vpack.c.bf16 %v2979, %v2979
  %v2988 = vpack.c.bf16 %v2980, %v2980
  %v2989 = vpack.c.bf16 %v2981, %v2981
  %v2990 = vpack.c.bf16 %v2982, %v2982
  %v2991 = vld [vmem:[%s2788] sm:$0xe]
  %v2992 = vld [vmem:[%s2788 + $0x8] sm:$0xe]
  %v2993 = vld [vmem:[%s2788 + $0x10] sm:$0xe]
  %v2994 = vld [vmem:[%s2788 + $0x18] sm:$0xe]
  %v2995 = vld [vmem:[%s2788 + $0x20] sm:$0xe]
  %v2996 = vld [vmem:[%s2788 + $0x28] sm:$0xe]
  %v2997 = vld [vmem:[%s2788 + $0x30] sm:$0xe]
  %v2998 = vld [vmem:[%s2788 + $0x38] sm:$0xe]
  %v2999 = vperm.slane %v2798, 1
  %v3000 = vunpack.c.l.bf16 %v2991
  %v3001 = vunpack.c.l.bf16 %v2992
  %v3002 = vunpack.c.l.bf16 %v2993
  %v3003 = vunpack.c.l.bf16 %v2994
  %v3004 = vunpack.c.l.bf16 %v2995
  %v3005 = vunpack.c.l.bf16 %v2996
  %v3006 = vunpack.c.l.bf16 %v2997
  %v3007 = vunpack.c.l.bf16 %v2998
  %v3008 = vunpack.c.l.bf16 %v2999
  %v3009 = vmul.f32 %v3000, %v3008
  %v3010 = vmul.f32 %v2862, %v3008
  %v3011 = vmul.f32 %v3001, %v3008
  %v3012 = vmul.f32 %v2863, %v3008
  %v3013 = vmul.f32 %v3002, %v3008
  %v3014 = vmul.f32 %v2864, %v3008
  %v3015 = vmul.f32 %v3003, %v3008
  %v3016 = vmul.f32 %v2865, %v3008
  %v3017 = vmul.f32 %v3004, %v3008
  %v3018 = vmul.f32 %v2866, %v3008
  %v3019 = vmul.f32 %v3005, %v3008
  %v3020 = vmul.f32 %v2867, %v3008
  %v3021 = vmul.f32 %v3006, %v3008
  %v3022 = vmul.f32 %v2868, %v3008
  %v3023 = vmul.f32 %v3007, %v3008
  %v3024 = vmul.f32 %v2869, %v3008
  %v3025 = vpack.c.bf16 %v3009, %v3009
  %v3026 = vpack.c.bf16 %v3010, %v3010
  %v3027 = vpack.c.bf16 %v3011, %v3011
  %v3028 = vpack.c.bf16 %v3012, %v3012
  %v3029 = vpack.c.bf16 %v3013, %v3013
  %v3030 = vpack.c.bf16 %v3014, %v3014
  %v3031 = vpack.c.bf16 %v3015, %v3015
  %v3032 = vpack.c.bf16 %v3016, %v3016
  %v3033 = vpack.c.bf16 %v3017, %v3017
  %v3034 = vpack.c.bf16 %v3018, %v3018
  %v3035 = vpack.c.bf16 %v3019, %v3019
  %v3036 = vpack.c.bf16 %v3020, %v3020
  %v3037 = vpack.c.bf16 %v3021, %v3021
  %v3038 = vpack.c.bf16 %v3022, %v3022
  %v3039 = vpack.c.bf16 %v3023, %v3023
  %v3040 = vpack.c.bf16 %v3024, %v3024
  %v3041 = vunpack.c.l.bf16 %v2983
  %v3042 = vunpack.c.l.bf16 %v2984
  %v3043 = vunpack.c.l.bf16 %v2985
  %v3044 = vunpack.c.l.bf16 %v2986
  %v3045 = vunpack.c.l.bf16 %v2987
  %v3046 = vunpack.c.l.bf16 %v2988
  %v3047 = vunpack.c.l.bf16 %v2989
  %v3048 = vunpack.c.l.bf16 %v2990
  %v3049 = vunpack.c.l.bf16 %v3025
  %v3050 = vunpack.c.l.bf16 %v3026
  %v3051 = vunpack.c.l.bf16 %v3027
  %v3052 = vunpack.c.l.bf16 %v3028
  %v3053 = vunpack.c.l.bf16 %v3029
  %v3054 = vunpack.c.l.bf16 %v3030
  %v3055 = vunpack.c.l.bf16 %v3031
  %v3056 = vunpack.c.l.bf16 %v3032
  %v3057 = vunpack.c.l.bf16 %v3033
  %v3058 = vunpack.c.l.bf16 %v3034
  %v3059 = vunpack.c.l.bf16 %v3035
  %v3060 = vunpack.c.l.bf16 %v3036
  %v3061 = vunpack.c.l.bf16 %v3037
  %v3062 = vunpack.c.l.bf16 %v3038
  %v3063 = vunpack.c.l.bf16 %v3039
  %v3064 = vunpack.c.l.bf16 %v3040
  %v3081 = vrot.slane %v3049, 2
  %v3082 = vrot.slane %v3050, 2
  %v3083 = vsel %vm547, %v3081, %v3082
  %v3084 = vrot.slane %v3051, 2
  %v3085 = vrot.slane %v3052, 2
  %v3086 = vsel %vm547, %v3084, %v3085
  %v3087 = vrot.slane %v3053, 2
  %v3088 = vrot.slane %v3054, 2
  %v3089 = vsel %vm547, %v3087, %v3088
  %v3090 = vrot.slane %v3055, 2
  %v3091 = vrot.slane %v3056, 2
  %v3092 = vsel %vm547, %v3090, %v3091
  %v3093 = vrot.slane %v3057, 2
  %v3094 = vrot.slane %v3058, 2
  %v3095 = vsel %vm547, %v3093, %v3094
  %v3096 = vrot.slane %v3059, 2
  %v3097 = vrot.slane %v3060, 2
  %v3098 = vsel %vm547, %v3096, %v3097
  %v3099 = vrot.slane %v3061, 2
  %v3100 = vrot.slane %v3062, 2
  %v3101 = vsel %vm547, %v3099, %v3100
  %v3102 = vrot.slane %v3063, 2
  %v3103 = vrot.slane %v3064, 2
  %v3104 = vsel %vm547, %v3102, %v3103
  %v3113 = vadd.f32 %v3041, %v3083
  %v3114 = vadd.f32 %v3042, %v3086
  %v3115 = vadd.f32 %v3043, %v3089
  %v3116 = vadd.f32 %v3044, %v3092
  %v3117 = vadd.f32 %v3045, %v3095
  %v3118 = vadd.f32 %v3046, %v3098
  %v3119 = vadd.f32 %v3047, %v3101
  %v3120 = vadd.f32 %v3048, %v3104
  %v3121 = vpack.c.bf16 %v3113, %v3113
  %v3122 = vpack.c.bf16 %v3114, %v3114
  %v3123 = vpack.c.bf16 %v3115, %v3115
  %v3124 = vpack.c.bf16 %v3116, %v3116
  %v3125 = vpack.c.bf16 %v3117, %v3117
  %v3126 = vpack.c.bf16 %v3118, %v3118
  %v3127 = vpack.c.bf16 %v3119, %v3119
  %v3128 = vpack.c.bf16 %v3120, %v3120
  %v3129 = vld [vmem:[%s2788 + $0x4] sm:$0x3]
  %v3130 = vld [vmem:[%s2788 + $0xc] sm:$0x3]
  %v3131 = vld [vmem:[%s2788 + $0x14] sm:$0x3]
  %v3132 = vld [vmem:[%s2788 + $0x1c] sm:$0x3]
  %v3133 = vld [vmem:[%s2788 + $0x24] sm:$0x3]
  %v3134 = vld [vmem:[%s2788 + $0x2c] sm:$0x3]
  %v3135 = vld [vmem:[%s2788 + $0x34] sm:$0x3]
  %v3136 = vld [vmem:[%s2788 + $0x3c] sm:$0x3]
  %v3137 = vperm.slane %v2859, 1
  %v3138 = vunpack.c.l.bf16 %v3129
  %v3139 = vunpack.c.l.bf16 %v3130
  %v3140 = vunpack.c.l.bf16 %v3131
  %v3141 = vunpack.c.l.bf16 %v3132
  %v3142 = vunpack.c.l.bf16 %v3133
  %v3143 = vunpack.c.l.bf16 %v3134
  %v3144 = vunpack.c.l.bf16 %v3135
  %v3145 = vunpack.c.l.bf16 %v3136
  %v3146 = vunpack.c.l.bf16 %v3137
  %v3147 = vmul.f32 %v3000, %v3146
  %v3148 = vmul.f32 %v3138, %v3146
  %v3149 = vmul.f32 %v3001, %v3146
  %v3150 = vmul.f32 %v3139, %v3146
  %v3151 = vmul.f32 %v3002, %v3146
  %v3152 = vmul.f32 %v3140, %v3146
  %v3153 = vmul.f32 %v3003, %v3146
  %v3154 = vmul.f32 %v3141, %v3146
  %v3155 = vmul.f32 %v3004, %v3146
  %v3156 = vmul.f32 %v3142, %v3146
  %v3157 = vmul.f32 %v3005, %v3146
  %v3158 = vmul.f32 %v3143, %v3146
  %v3159 = vmul.f32 %v3006, %v3146
  %v3160 = vmul.f32 %v3144, %v3146
  %v3161 = vmul.f32 %v3007, %v3146
  %v3162 = vmul.f32 %v3145, %v3146
  %v3163 = vpack.c.bf16 %v3147, %v3147
  %v3164 = vpack.c.bf16 %v3148, %v3148
  %v3165 = vpack.c.bf16 %v3149, %v3149
  %v3166 = vpack.c.bf16 %v3150, %v3150
  %v3167 = vpack.c.bf16 %v3151, %v3151
  %v3168 = vpack.c.bf16 %v3152, %v3152
  %v3169 = vpack.c.bf16 %v3153, %v3153
  %v3170 = vpack.c.bf16 %v3154, %v3154
  %v3171 = vpack.c.bf16 %v3155, %v3155
  %v3172 = vpack.c.bf16 %v3156, %v3156
  %v3173 = vpack.c.bf16 %v3157, %v3157
  %v3174 = vpack.c.bf16 %v3158, %v3158
  %v3175 = vpack.c.bf16 %v3159, %v3159
  %v3176 = vpack.c.bf16 %v3160, %v3160
  %v3177 = vpack.c.bf16 %v3161, %v3161
  %v3178 = vpack.c.bf16 %v3162, %v3162
  %v3179 = vunpack.c.l.bf16 %v3121
  %v3180 = vunpack.c.l.bf16 %v3122
  %v3181 = vunpack.c.l.bf16 %v3123
  %v3182 = vunpack.c.l.bf16 %v3124
  %v3183 = vunpack.c.l.bf16 %v3125
  %v3184 = vunpack.c.l.bf16 %v3126
  %v3185 = vunpack.c.l.bf16 %v3127
  %v3186 = vunpack.c.l.bf16 %v3128
  %v3187 = vunpack.c.l.bf16 %v3163
  %v3188 = vunpack.c.l.bf16 %v3164
  %v3189 = vunpack.c.l.bf16 %v3165
  %v3190 = vunpack.c.l.bf16 %v3166
  %v3191 = vunpack.c.l.bf16 %v3167
  %v3192 = vunpack.c.l.bf16 %v3168
  %v3193 = vunpack.c.l.bf16 %v3169
  %v3194 = vunpack.c.l.bf16 %v3170
  %v3195 = vunpack.c.l.bf16 %v3171
  %v3196 = vunpack.c.l.bf16 %v3172
  %v3197 = vunpack.c.l.bf16 %v3173
  %v3198 = vunpack.c.l.bf16 %v3174
  %v3199 = vunpack.c.l.bf16 %v3175
  %v3200 = vunpack.c.l.bf16 %v3176
  %v3201 = vunpack.c.l.bf16 %v3177
  %v3202 = vunpack.c.l.bf16 %v3178
  %v3219 = vrot.slane %v3187, 3
  %v3220 = vrot.slane %v3188, 3
  %v3221 = vsel %vm686, %v3219, %v3220
  %v3222 = vrot.slane %v3189, 3
  %v3223 = vrot.slane %v3190, 3
  %v3224 = vsel %vm686, %v3222, %v3223
  %v3225 = vrot.slane %v3191, 3
  %v3226 = vrot.slane %v3192, 3
  %v3227 = vsel %vm686, %v3225, %v3226
  %v3228 = vrot.slane %v3193, 3
  %v3229 = vrot.slane %v3194, 3
  %v3230 = vsel %vm686, %v3228, %v3229
  %v3231 = vrot.slane %v3195, 3
  %v3232 = vrot.slane %v3196, 3
  %v3233 = vsel %vm686, %v3231, %v3232
  %v3234 = vrot.slane %v3197, 3
  %v3235 = vrot.slane %v3198, 3
  %v3236 = vsel %vm686, %v3234, %v3235
  %v3237 = vrot.slane %v3199, 3
  %v3238 = vrot.slane %v3200, 3
  %v3239 = vsel %vm686, %v3237, %v3238
  %v3240 = vrot.slane %v3201, 3
  %v3241 = vrot.slane %v3202, 3
  %v3242 = vsel %vm686, %v3240, %v3241
  %v3251 = vadd.f32 %v3179, %v3221
  %v3252 = vadd.f32 %v3180, %v3224
  %v3253 = vadd.f32 %v3181, %v3227
  %v3254 = vadd.f32 %v3182, %v3230
  %v3255 = vadd.f32 %v3183, %v3233
  %v3256 = vadd.f32 %v3184, %v3236
  %v3257 = vadd.f32 %v3185, %v3239
  %v3258 = vadd.f32 %v3186, %v3242
  %v3259 = vpack.c.bf16 %v3251, %v3251
  %v3260 = vpack.c.bf16 %v3252, %v3252
  %v3261 = vpack.c.bf16 %v3253, %v3253
  %v3262 = vpack.c.bf16 %v3254, %v3254
  %v3263 = vpack.c.bf16 %v3255, %v3255
  %v3264 = vpack.c.bf16 %v3256, %v3256
  %v3265 = vpack.c.bf16 %v3257, %v3257
  %v3266 = vpack.c.bf16 %v3258, %v3258
  %v3267 = vld [vmem:[%s2788] sm:$0xc]
  %v3268 = vld [vmem:[%s2788 + $0x8] sm:$0xc]
  %v3269 = vld [vmem:[%s2788 + $0x10] sm:$0xc]
  %v3270 = vld [vmem:[%s2788 + $0x18] sm:$0xc]
  %v3271 = vld [vmem:[%s2788 + $0x20] sm:$0xc]
  %v3272 = vld [vmem:[%s2788 + $0x28] sm:$0xc]
  %v3273 = vld [vmem:[%s2788 + $0x30] sm:$0xc]
  %v3274 = vld [vmem:[%s2788 + $0x38] sm:$0xc]
  %v3275 = vperm.slane %v2798, 2
  %v3276 = vunpack.c.l.bf16 %v3267
  %v3277 = vunpack.c.l.bf16 %v3268
  %v3278 = vunpack.c.l.bf16 %v3269
  %v3279 = vunpack.c.l.bf16 %v3270
  %v3280 = vunpack.c.l.bf16 %v3271
  %v3281 = vunpack.c.l.bf16 %v3272
  %v3282 = vunpack.c.l.bf16 %v3273
  %v3283 = vunpack.c.l.bf16 %v3274
  %v3284 = vunpack.c.l.bf16 %v3275
  %v3285 = vmul.f32 %v3276, %v3284
  %v3286 = vmul.f32 %v3138, %v3284
  %v3287 = vmul.f32 %v3277, %v3284
  %v3288 = vmul.f32 %v3139, %v3284
  %v3289 = vmul.f32 %v3278, %v3284
  %v3290 = vmul.f32 %v3140, %v3284
  %v3291 = vmul.f32 %v3279, %v3284
  %v3292 = vmul.f32 %v3141, %v3284
  %v3293 = vmul.f32 %v3280, %v3284
  %v3294 = vmul.f32 %v3142, %v3284
  %v3295 = vmul.f32 %v3281, %v3284
  %v3296 = vmul.f32 %v3143, %v3284
  %v3297 = vmul.f32 %v3282, %v3284
  %v3298 = vmul.f32 %v3144, %v3284
  %v3299 = vmul.f32 %v3283, %v3284
  %v3300 = vmul.f32 %v3145, %v3284
  %v3301 = vpack.c.bf16 %v3285, %v3285
  %v3302 = vpack.c.bf16 %v3286, %v3286
  %v3303 = vpack.c.bf16 %v3287, %v3287
  %v3304 = vpack.c.bf16 %v3288, %v3288
  %v3305 = vpack.c.bf16 %v3289, %v3289
  %v3306 = vpack.c.bf16 %v3290, %v3290
  %v3307 = vpack.c.bf16 %v3291, %v3291
  %v3308 = vpack.c.bf16 %v3292, %v3292
  %v3309 = vpack.c.bf16 %v3293, %v3293
  %v3310 = vpack.c.bf16 %v3294, %v3294
  %v3311 = vpack.c.bf16 %v3295, %v3295
  %v3312 = vpack.c.bf16 %v3296, %v3296
  %v3313 = vpack.c.bf16 %v3297, %v3297
  %v3314 = vpack.c.bf16 %v3298, %v3298
  %v3315 = vpack.c.bf16 %v3299, %v3299
  %v3316 = vpack.c.bf16 %v3300, %v3300
  %v3317 = vunpack.c.l.bf16 %v3259
  %v3318 = vunpack.c.l.bf16 %v3260
  %v3319 = vunpack.c.l.bf16 %v3261
  %v3320 = vunpack.c.l.bf16 %v3262
  %v3321 = vunpack.c.l.bf16 %v3263
  %v3322 = vunpack.c.l.bf16 %v3264
  %v3323 = vunpack.c.l.bf16 %v3265
  %v3324 = vunpack.c.l.bf16 %v3266
  %v3325 = vunpack.c.l.bf16 %v3301
  %v3326 = vunpack.c.l.bf16 %v3302
  %v3327 = vunpack.c.l.bf16 %v3303
  %v3328 = vunpack.c.l.bf16 %v3304
  %v3329 = vunpack.c.l.bf16 %v3305
  %v3330 = vunpack.c.l.bf16 %v3306
  %v3331 = vunpack.c.l.bf16 %v3307
  %v3332 = vunpack.c.l.bf16 %v3308
  %v3333 = vunpack.c.l.bf16 %v3309
  %v3334 = vunpack.c.l.bf16 %v3310
  %v3335 = vunpack.c.l.bf16 %v3311
  %v3336 = vunpack.c.l.bf16 %v3312
  %v3337 = vunpack.c.l.bf16 %v3313
  %v3338 = vunpack.c.l.bf16 %v3314
  %v3339 = vunpack.c.l.bf16 %v3315
  %v3340 = vunpack.c.l.bf16 %v3316
  %v3357 = vrot.slane %v3325, 4
  %v3358 = vrot.slane %v3326, 4
  %v3359 = vsel %vm825, %v3357, %v3358
  %v3360 = vrot.slane %v3327, 4
  %v3361 = vrot.slane %v3328, 4
  %v3362 = vsel %vm825, %v3360, %v3361
  %v3363 = vrot.slane %v3329, 4
  %v3364 = vrot.slane %v3330, 4
  %v3365 = vsel %vm825, %v3363, %v3364
  %v3366 = vrot.slane %v3331, 4
  %v3367 = vrot.slane %v3332, 4
  %v3368 = vsel %vm825, %v3366, %v3367
  %v3369 = vrot.slane %v3333, 4
  %v3370 = vrot.slane %v3334, 4
  %v3371 = vsel %vm825, %v3369, %v3370
  %v3372 = vrot.slane %v3335, 4
  %v3373 = vrot.slane %v3336, 4
  %v3374 = vsel %vm825, %v3372, %v3373
  %v3375 = vrot.slane %v3337, 4
  %v3376 = vrot.slane %v3338, 4
  %v3377 = vsel %vm825, %v3375, %v3376
  %v3378 = vrot.slane %v3339, 4
  %v3379 = vrot.slane %v3340, 4
  %v3380 = vsel %vm825, %v3378, %v3379
  %v3389 = vadd.f32 %v3317, %v3359
  %v3390 = vadd.f32 %v3318, %v3362
  %v3391 = vadd.f32 %v3319, %v3365
  %v3392 = vadd.f32 %v3320, %v3368
  %v3393 = vadd.f32 %v3321, %v3371
  %v3394 = vadd.f32 %v3322, %v3374
  %v3395 = vadd.f32 %v3323, %v3377
  %v3396 = vadd.f32 %v3324, %v3380
  %v3397 = vpack.c.bf16 %v3389, %v3389
  %v3398 = vpack.c.bf16 %v3390, %v3390
  %v3399 = vpack.c.bf16 %v3391, %v3391
  %v3400 = vpack.c.bf16 %v3392, %v3392
  %v3401 = vpack.c.bf16 %v3393, %v3393
  %v3402 = vpack.c.bf16 %v3394, %v3394
  %v3403 = vpack.c.bf16 %v3395, %v3395
  %v3404 = vpack.c.bf16 %v3396, %v3396
  %v3405 = vunpack.c.l.bf16 %v3397
  %v3406 = vunpack.c.l.bf16 %v3398
  %v3407 = vunpack.c.l.bf16 %v3399
  %v3408 = vunpack.c.l.bf16 %v3400
  %v3409 = vunpack.c.l.bf16 %v3401
  %v3410 = vunpack.c.l.bf16 %v3402
  %v3411 = vunpack.c.l.bf16 %v3403
  %v3412 = vunpack.c.l.bf16 %v3404
  %v3413 = vadd.f32 %v2780, %v3405
  %v3414 = vadd.f32 %v2781, %v3406
  %v3415 = vadd.f32 %v2782, %v3407
  %v3416 = vadd.f32 %v2783, %v3408
  %v3417 = vadd.f32 %v2784, %v3409
  %v3418 = vadd.f32 %v2785, %v3410
  %v3419 = vadd.f32 %v2786, %v3411
  %v3420 = vadd.f32 %v2787, %v3412
  %v3421 = vld [vmem:[%s4] sm:$0x1]
  %v3423 = vperm.slane %v3421, 0
  %v3425 = vadd.f32 %v3413, %v3423
  %v3426 = vadd.f32 %v3414, %v3423
  %v3427 = vadd.f32 %v3415, %v3423
  %v3428 = vadd.f32 %v3416, %v3423
  %v3429 = vadd.f32 %v3417, %v3423
  %v3430 = vadd.f32 %v3418, %v3423
  %v3431 = vadd.f32 %v3419, %v3423
  %v3432 = vadd.f32 %v3420, %v3423
  %vm3433 = vcmp.ge.f32.partialorder %v3425, 0.0
  %vm3434 = vcmp.ge.f32.partialorder %v3426, 0.0
  %vm3435 = vcmp.ge.f32.partialorder %v3427, 0.0
  %vm3436 = vcmp.ge.f32.partialorder %v3428, 0.0
  %vm3437 = vcmp.ge.f32.partialorder %v3429, 0.0
  %vm3438 = vcmp.ge.f32.partialorder %v3430, 0.0
  %vm3439 = vcmp.ge.f32.partialorder %v3431, 0.0
  %vm3440 = vcmp.ge.f32.partialorder %v3432, 0.0
  %v3441 = vmul.f32 %v3425, 0.01
  %v3442 = vmul.f32 %v3426, 0.01
  %v3443 = vmul.f32 %v3427, 0.01
  %v3444 = vmul.f32 %v3428, 0.01
  %v3445 = vmul.f32 %v3429, 0.01
  %v3446 = vmul.f32 %v3430, 0.01
  %v3447 = vmul.f32 %v3431, 0.01
  %v3448 = vmul.f32 %v3432, 0.01
  %v3449 = vsel %vm3433, %v3425, %v3441
  %v3450 = vsel %vm3434, %v3426, %v3442
  %v3451 = vsel %vm3435, %v3427, %v3443
  %v3452 = vsel %vm3436, %v3428, %v3444
  %v3453 = vsel %vm3437, %v3429, %v3445
  %v3454 = vsel %vm3438, %v3430, %v3446
  %v3455 = vsel %vm3439, %v3431, %v3447
  %v3456 = vsel %vm3440, %v3432, %v3448
  %v3457 = vpack.c.bf16 %v3449, %v3449
  %v3458 = vpack.c.bf16 %v3450, %v3450
  %v3459 = vpack.c.bf16 %v3451, %v3451
  %v3460 = vpack.c.bf16 %v3452, %v3452
  %v3461 = vpack.c.bf16 %v3453, %v3453
  %v3462 = vpack.c.bf16 %v3454, %v3454
  %v3463 = vpack.c.bf16 %v3455, %v3455
  %v3464 = vpack.c.bf16 %v3456, %v3456
  %3465 = vst.msk [vmem:[%s5] sm:$0xf] %vm154, %v3457
  %3466 = vst.msk [vmem:[%s5 + $0x4] sm:$0xf] %vm154, %v3458
  %3467 = vst.msk [vmem:[%s5 + $0x8] sm:$0xf] %vm154, %v3459
  %3468 = vst.msk [vmem:[%s5 + $0xc] sm:$0xf] %vm154, %v3460
  %3469 = vst.msk [vmem:[%s5 + $0x10] sm:$0xf] %vm154, %v3461
  %3470 = vst.msk [vmem:[%s5 + $0x14] sm:$0xf] %vm154, %v3462
  %3471 = vst.msk [vmem:[%s5 + $0x18] sm:$0xf] %vm154, %v3463
  %3472 = vst.msk [vmem:[%s5 + $0x1c] sm:$0xf] %vm154, %v3464
  // Predicated region
  $region22: #{mpnncnn_forward.4} parent=0 // pred_check
    _
  $region23: #{mpnncnn_forward.4} parent=0 // pred_check_branch
    %3474 = sbr.rel (0) target = $region25
  $region24: #{mpnncnn_forward.4} parent=0 // pred_region
    _
  $region25: #{mpnncnn_forward.4} parent=0 // pred_fallthru
    _
  // Predicated region
  $region26: #{mpnncnn_forward.4} parent=0 // pred_check
    _
  $region27: #{mpnncnn_forward.4} parent=0 // pred_check_branch
    %3476 = sbr.rel (0) target = $region29
  $region28: #{mpnncnn_forward.4} parent=0 // pred_region
    _
  $region29: #{mpnncnn_forward.4} parent=0 // pred_fallthru
    _

</llo_original>
